<compile_context>
chip_gen: v5e
topology: v5e:2x2
jax: 0.10.0
libtpu: 0.0.40
codegen_flags: <defaults>
</compile_context>

<pallas_src>
import jax
import jax.numpy as jnp
from jax.experimental import pallas as pl
from jax.experimental.pallas import tpu as pltpu

BN_EPS = 1e-5


def _vmem_specs(n):
    return [pl.BlockSpec(memory_space=pltpu.MemorySpace.VMEM) for _ in range(n)]


# ---------------------------- Pallas kernels ----------------------------

def _conv_bn_relu_pool_body(patches_ref, w_ref, b_ref, g_ref, beta_ref, pp):
    """Fused Conv (as p*p im2col matmuls) + train-mode BN + ReLU + MaxPool.

    patches_ref: (pp, K, Mpool) bf16 -- one patch matrix per pool-window offset.
                 The pp offsets tile the conv output exactly, so BN statistics
                 accumulated over all of them == BN over (N, Ho, Wo).
    Returns the pooled activation, (Cout, Mpool) f32 (lane-dense).
    """
    w = w_ref[...]                       # (Cout, K) bf16
    b = b_ref[...]                       # (Cout, 1) f32
    ys = []
    s1 = None
    s2 = None
    for off in range(pp):                # static unroll; pp in {9, 9, 4}
        y = jnp.dot(w, patches_ref[off],
                    preferred_element_type=jnp.float32) + b     # MXU, f32 acc
        ys.append(y)                                            # (Cout, Mpool)
        ps = jnp.sum(y, axis=1, keepdims=True)                  # lane reduce
        pq = jnp.sum(y * y, axis=1, keepdims=True)
        s1 = ps if s1 is None else s1 + ps
        s2 = pq if s2 is None else s2 + pq
    # One-pass batch statistics (biased variance) == BatchNorm2d train forward.
    inv_count = 1.0 / float(pp * ys[0].shape[1])                # 1/(N*Ho*Wo)
    mean = s1 * inv_count
    var = jnp.maximum(s2 * inv_count - mean * mean, 0.0)
    scale = jax.lax.rsqrt(var + BN_EPS) * g_ref[...]            # rsqrt on EUP
    shift = beta_ref[...] - mean * scale
    pooled = None
    for off in range(pp):
        z = jnp.maximum(ys[off] * scale + shift, 0.0)           # BN + ReLU
        pooled = z if pooled is None else jnp.maximum(pooled, z)  # MaxPool
    return pooled


def make_conv_bn_relu_pool_kernel(pp):
    def kernel(patches_ref, w_ref, b_ref, g_ref, beta_ref, o_ref):
        o_ref[...] = _conv_bn_relu_pool_body(
            patches_ref, w_ref, b_ref, g_ref, beta_ref, pp)
    return kernel


def make_head_kernel(pp):
    """Stage 3 (Conv+BN+ReLU+Pool) fused with stage 4 (1x1 Conv + Sigmoid)."""
    def kernel(patches_ref, w_ref, b_ref, g_ref, beta_ref,
               w4_ref, b4_ref, o_ref):
        pooled = _conv_bn_relu_pool_body(
            patches_ref, w_ref, b_ref, g_ref, beta_ref, pp)     # (24, M) f32
        # 1x1 conv == per-channel weighted sum over the sublane (channel) axis.
        y = jnp.sum(w4_ref[...] * pooled, axis=0, keepdims=True) + b4_ref[...]
        o_ref[...] = 1.0 / (1.0 + jnp.exp(-y))                  # Sigmoid (EUP)
    return kernel


# ------------------------------ JAX glue --------------------------------

def extract_pool_patches(x, k, s, p, q):
    """x: (C, N, H, W) -> (p*p, C*k*k, N*Hp*Wp) bf16 patch stacks.

    Patch-row order is (ci, kh, kw), matching a PyTorch (Cout, Cin, kh, kw)
    weight flattened to (Cout, Cin*k*k).  Offset (pi, pj) collects the conv
    outputs feeding pool cell (a, b) at conv position (q*a+pi, q*b+pj), i.e.
    input pixel (s*(q*a+pi)+kh, s*(q*b+pj)+kw).  For every stage of this model
    the p*p offsets tile the conv output exactly (no overlap, no gaps).
    """
    C, N, H, W = x.shape
    Ho = (H - k) // s + 1
    Wo = (W - k) // s + 1
    Hp = (Ho - p) // q + 1
    Wp = (Wo - p) // q + 1
    step = s * q
    x = x.astype(jnp.bfloat16)
    offsets = []
    for pi in range(p):
        for pj in range(p):
            taps = []
            for kh in range(k):
                for kw in range(k):
                    h0 = s * pi + kh
                    w0 = s * pj + kw
                    taps.append(
                        x[:, :,
                          h0:h0 + step * (Hp - 1) + 1:step,
                          w0:w0 + step * (Wp - 1) + 1:step])  # (C, N, Hp, Wp)
            pat = jnp.stack(taps, axis=1)                     # (C, k*k, N, Hp, Wp)
            offsets.append(pat.reshape(C * k * k, N * Hp * Wp))
    return jnp.stack(offsets, axis=0), N, Hp, Wp              # (p*p, K, M)


def conv_bn_relu_pool(x_cnhw, w, b, gamma, beta, *, k, s, p, q):
    patches, N, Hp, Wp = extract_pool_patches(x_cnhw, k, s, p, q)
    pp, _, M = patches.shape
    Cout = w.shape[0]
    out = pl.pallas_call(
        make_conv_bn_relu_pool_kernel(pp),
        out_shape=jax.ShapeDtypeStruct((Cout, M), jnp.float32),
        in_specs=_vmem_specs(5),
        out_specs=pl.BlockSpec(memory_space=pltpu.MemorySpace.VMEM),
    )(patches, w.astype(jnp.bfloat16), b.reshape(Cout, 1),
      gamma.reshape(Cout, 1), beta.reshape(Cout, 1))
    return out.reshape(Cout, N, Hp, Wp)                        # (C, N, H, W)


def conv_head(x_cnhw, w, b, gamma, beta, w4, b4, *, k, s, p, q):
    patches, N, Hp, Wp = extract_pool_patches(x_cnhw, k, s, p, q)
    pp, _, M = patches.shape                                   # M = N*Hp*Wp
    Cout = w.shape[0]
    out = pl.pallas_call(
        make_head_kernel(pp),
        out_shape=jax.ShapeDtypeStruct((1, M), jnp.float32),
        in_specs=_vmem_specs(7),
        out_specs=pl.BlockSpec(memory_space=pltpu.MemorySpace.VMEM),
    )(patches, w.astype(jnp.bfloat16), b.reshape(Cout, 1),
      gamma.reshape(Cout, 1), beta.reshape(Cout, 1),
      w4.reshape(Cout, 1), b4.reshape(1, 1))
    return out.reshape(N, Hp, Wp)[:, None, :, :]               # NCHW (N,1,1,1)


# --------------------------- params & forward ---------------------------

def init_params(key):
    """PyTorch-style conv init (U(+/-1/sqrt(fan_in))); weights stored as
    (Cout, Cin*k*k), i.e. PyTorch (Cout, Cin, kh, kw) flattened row-major."""
    def conv_w(k_, ksz, cin, cout):
        fan_in = cin * ksz * ksz
        bound = 1.0 / (fan_in ** 0.5)
        kw_, kb_ = jax.random.split(k_)
        w = jax.random.uniform(kw_, (cout, cin, ksz, ksz), jnp.float32,
                               -bound, bound)
        b = jax.random.uniform(kb_, (cout,), jnp.float32, -bound, bound)
        return w.reshape(cout, cin * ksz * ksz), b

    keys = jax.random.split(key, 4)
    p = {}
    p['f1_w'], p['f1_b'] = conv_w(keys[0], 5, 3, 6)
    p['f1_g'], p['f1_beta'] = jnp.ones((6,), jnp.float32), jnp.zeros((6,), jnp.float32)
    p['f2_w'], p['f2_b'] = conv_w(keys[1], 3, 6, 12)
    p['f2_g'], p['f2_beta'] = jnp.ones((12,), jnp.float32), jnp.zeros((12,), jnp.float32)
    p['f3_w'], p['f3_b'] = conv_w(keys[2], 2, 12, 24)
    p['f3_g'], p['f3_beta'] = jnp.ones((24,), jnp.float32), jnp.zeros((24,), jnp.float32)
    w4, b4 = conv_w(keys[3], 1, 24, 1)
    p['f4_w'], p['f4_b'] = w4.reshape(24), b4
    return p


def discriminator_forward(params, x_nchw):
    # (N, C, H, W) -> (C, N, H, W): W stays on the lane axis (lane-dense).
    x = jnp.transpose(x_nchw, (1, 0, 2, 3))
    # f1: Conv2d(3,6,k=5,s=3) + BN + ReLU + MaxPool(3,3)
    y = conv_bn_relu_pool(x, params['f1_w'], params['f1_b'],
                          params['f1_g'], params['f1_beta'], k=5, s=3, p=3, q=3)
    # f2: Conv2d(6,12,k=3,s=1) + BN + ReLU + MaxPool(3,3)
    y = conv_bn_relu_pool(y, params['f2_w'], params['f2_b'],
                          params['f2_g'], params['f2_beta'], k=3, s=1, p=3, q=3)
    # f3: Conv2d(12,24,k=2,s=2) + BN + ReLU + MaxPool(2,1)
    # f4: Conv2d(24,1,k=1,s=1) + Sigmoid   (fused into the same kernel)
    return conv_head(y, params['f3_w'], params['f3_b'],
                     params['f3_g'], params['f3_beta'],
                     params['f4_w'], params['f4_b'], k=2, s=2, p=2, q=1)


if __name__ == "__main__":
    key = jax.random.PRNGKey(0)
    kx, kp = jax.random.split(key)
    # 128x128 is the smallest spatial size for which every conv/pool stage of
    # this module stays valid (final output is (N, 1, 1, 1)).
    x = jax.random.normal(kx, (2, 3, 128, 128), jnp.float32)
    params = init_params(kp)

    fwd = jax.jit(discriminator_forward)
    out = fwd(params, x)
    jax.block_until_ready(out)

    assert out.shape == (2, 1, 1, 1), out.shape
    assert bool(jnp.all(jnp.isfinite(out)))
    assert bool(jnp.all((out >= 0.0) & (out <= 1.0)))  # sigmoid range
    print("KERNEL_OK")
</pallas_src>

<mosaic_0001>
module attributes {stable_mosaic.version = 11 : i64} {
  func.func @kernel(%arg0: memref<9x75x392xbf16, #tpu.memory_space<vmem>>, %arg1: memref<6x75xbf16, #tpu.memory_space<vmem>>, %arg2: memref<6x1xf32, #tpu.memory_space<vmem>>, %arg3: memref<6x1xf32, #tpu.memory_space<vmem>>, %arg4: memref<6x1xf32, #tpu.memory_space<vmem>>, %arg5: memref<6x392xf32, #tpu.memory_space<vmem>>) attributes {dimension_semantics = [], scalar_prefetch = 0 : i64, scratch_operands = 0 : i64, tpu.core_type = #tpu.core_type<tc>} {
    %c0 = arith.constant 0 : index
    %c0_0 = arith.constant 0 : index
    %0 = vector.load %arg1[%c0, %c0_0] : memref<6x75xbf16, #tpu.memory_space<vmem>>, vector<6x75xbf16>
    %c0_1 = arith.constant 0 : index
    %c0_2 = arith.constant 0 : index
    %1 = vector.load %arg2[%c0_1, %c0_2] : memref<6x1xf32, #tpu.memory_space<vmem>>, vector<6x1xf32>
    %c0_3 = arith.constant 0 : index
    %c0_4 = arith.constant 0 : index
    %c0_5 = arith.constant 0 : index
    %2 = vector.load %arg0[%c0_3, %c0_4, %c0_5] : memref<9x75x392xbf16, #tpu.memory_space<vmem>>, vector<1x75x392xbf16>
    %3 = vector.shape_cast %2 : vector<1x75x392xbf16> to vector<75x392xbf16>
    %cst = arith.constant dense<0.000000e+00> : vector<6x392xf32>
    %4 = tpu.matmul %0, %3, %cst {dimension_numbers = #tpu.dot_dimension_numbers<[1], [0], [0], [1], [0, 0, 1, 1], [], []>} : vector<6x75xbf16>, vector<75x392xbf16>, vector<6x392xf32> -> vector<6x392xf32>
    %5 = vector.broadcast %1 : vector<6x1xf32> to vector<6x392xf32>
    %6 = arith.addf %4, %5 : vector<6x392xf32>
    %cst_6 = arith.constant dense<0.000000e+00> : vector<6xf32>
    %7 = vector.multi_reduction <add>, %6, %cst_6 [1] : vector<6x392xf32> to vector<6xf32>
    %8 = vector.shape_cast %7 : vector<6xf32> to vector<6x1xf32>
    %9 = arith.mulf %6, %6 : vector<6x392xf32>
    %cst_7 = arith.constant dense<0.000000e+00> : vector<6xf32>
    %10 = vector.multi_reduction <add>, %9, %cst_7 [1] : vector<6x392xf32> to vector<6xf32>
    %11 = vector.shape_cast %10 : vector<6xf32> to vector<6x1xf32>
    %c1 = arith.constant 1 : index
    %c0_8 = arith.constant 0 : index
    %c0_9 = arith.constant 0 : index
    %12 = vector.load %arg0[%c1, %c0_8, %c0_9] : memref<9x75x392xbf16, #tpu.memory_space<vmem>>, vector<1x75x392xbf16>
    %13 = vector.shape_cast %12 : vector<1x75x392xbf16> to vector<75x392xbf16>
    %cst_10 = arith.constant dense<0.000000e+00> : vector<6x392xf32>
    %14 = tpu.matmul %0, %13, %cst_10 {dimension_numbers = #tpu.dot_dimension_numbers<[1], [0], [0], [1], [0, 0, 1, 1], [], []>} : vector<6x75xbf16>, vector<75x392xbf16>, vector<6x392xf32> -> vector<6x392xf32>
    %15 = vector.broadcast %1 : vector<6x1xf32> to vector<6x392xf32>
    %16 = arith.addf %14, %15 : vector<6x392xf32>
    %cst_11 = arith.constant dense<0.000000e+00> : vector<6xf32>
    %17 = vector.multi_reduction <add>, %16, %cst_11 [1] : vector<6x392xf32> to vector<6xf32>
    %18 = vector.shape_cast %17 : vector<6xf32> to vector<6x1xf32>
    %19 = arith.mulf %16, %16 : vector<6x392xf32>
    %cst_12 = arith.constant dense<0.000000e+00> : vector<6xf32>
    %20 = vector.multi_reduction <add>, %19, %cst_12 [1] : vector<6x392xf32> to vector<6xf32>
    %21 = vector.shape_cast %20 : vector<6xf32> to vector<6x1xf32>
    %22 = arith.addf %8, %18 : vector<6x1xf32>
    %23 = arith.addf %11, %21 : vector<6x1xf32>
    %c2 = arith.constant 2 : index
    %c0_13 = arith.constant 0 : index
    %c0_14 = arith.constant 0 : index
    %24 = vector.load %arg0[%c2, %c0_13, %c0_14] : memref<9x75x392xbf16, #tpu.memory_space<vmem>>, vector<1x75x392xbf16>
    %25 = vector.shape_cast %24 : vector<1x75x392xbf16> to vector<75x392xbf16>
    %cst_15 = arith.constant dense<0.000000e+00> : vector<6x392xf32>
    %26 = tpu.matmul %0, %25, %cst_15 {dimension_numbers = #tpu.dot_dimension_numbers<[1], [0], [0], [1], [0, 0, 1, 1], [], []>} : vector<6x75xbf16>, vector<75x392xbf16>, vector<6x392xf32> -> vector<6x392xf32>
    %27 = vector.broadcast %1 : vector<6x1xf32> to vector<6x392xf32>
    %28 = arith.addf %26, %27 : vector<6x392xf32>
    %cst_16 = arith.constant dense<0.000000e+00> : vector<6xf32>
    %29 = vector.multi_reduction <add>, %28, %cst_16 [1] : vector<6x392xf32> to vector<6xf32>
    %30 = vector.shape_cast %29 : vector<6xf32> to vector<6x1xf32>
    %31 = arith.mulf %28, %28 : vector<6x392xf32>
    %cst_17 = arith.constant dense<0.000000e+00> : vector<6xf32>
    %32 = vector.multi_reduction <add>, %31, %cst_17 [1] : vector<6x392xf32> to vector<6xf32>
    %33 = vector.shape_cast %32 : vector<6xf32> to vector<6x1xf32>
    %34 = arith.addf %22, %30 : vector<6x1xf32>
    %35 = arith.addf %23, %33 : vector<6x1xf32>
    %c3 = arith.constant 3 : index
    %c0_18 = arith.constant 0 : index
    %c0_19 = arith.constant 0 : index
    %36 = vector.load %arg0[%c3, %c0_18, %c0_19] : memref<9x75x392xbf16, #tpu.memory_space<vmem>>, vector<1x75x392xbf16>
    %37 = vector.shape_cast %36 : vector<1x75x392xbf16> to vector<75x392xbf16>
    %cst_20 = arith.constant dense<0.000000e+00> : vector<6x392xf32>
    %38 = tpu.matmul %0, %37, %cst_20 {dimension_numbers = #tpu.dot_dimension_numbers<[1], [0], [0], [1], [0, 0, 1, 1], [], []>} : vector<6x75xbf16>, vector<75x392xbf16>, vector<6x392xf32> -> vector<6x392xf32>
    %39 = vector.broadcast %1 : vector<6x1xf32> to vector<6x392xf32>
    %40 = arith.addf %38, %39 : vector<6x392xf32>
    %cst_21 = arith.constant dense<0.000000e+00> : vector<6xf32>
    %41 = vector.multi_reduction <add>, %40, %cst_21 [1] : vector<6x392xf32> to vector<6xf32>
    %42 = vector.shape_cast %41 : vector<6xf32> to vector<6x1xf32>
    %43 = arith.mulf %40, %40 : vector<6x392xf32>
    %cst_22 = arith.constant dense<0.000000e+00> : vector<6xf32>
    %44 = vector.multi_reduction <add>, %43, %cst_22 [1] : vector<6x392xf32> to vector<6xf32>
    %45 = vector.shape_cast %44 : vector<6xf32> to vector<6x1xf32>
    %46 = arith.addf %34, %42 : vector<6x1xf32>
    %47 = arith.addf %35, %45 : vector<6x1xf32>
    %c4 = arith.constant 4 : index
    %c0_23 = arith.constant 0 : index
    %c0_24 = arith.constant 0 : index
    %48 = vector.load %arg0[%c4, %c0_23, %c0_24] : memref<9x75x392xbf16, #tpu.memory_space<vmem>>, vector<1x75x392xbf16>
    %49 = vector.shape_cast %48 : vector<1x75x392xbf16> to vector<75x392xbf16>
    %cst_25 = arith.constant dense<0.000000e+00> : vector<6x392xf32>
    %50 = tpu.matmul %0, %49, %cst_25 {dimension_numbers = #tpu.dot_dimension_numbers<[1], [0], [0], [1], [0, 0, 1, 1], [], []>} : vector<6x75xbf16>, vector<75x392xbf16>, vector<6x392xf32> -> vector<6x392xf32>
    %51 = vector.broadcast %1 : vector<6x1xf32> to vector<6x392xf32>
    %52 = arith.addf %50, %51 : vector<6x392xf32>
    %cst_26 = arith.constant dense<0.000000e+00> : vector<6xf32>
    %53 = vector.multi_reduction <add>, %52, %cst_26 [1] : vector<6x392xf32> to vector<6xf32>
    %54 = vector.shape_cast %53 : vector<6xf32> to vector<6x1xf32>
    %55 = arith.mulf %52, %52 : vector<6x392xf32>
    %cst_27 = arith.constant dense<0.000000e+00> : vector<6xf32>
    %56 = vector.multi_reduction <add>, %55, %cst_27 [1] : vector<6x392xf32> to vector<6xf32>
    %57 = vector.shape_cast %56 : vector<6xf32> to vector<6x1xf32>
    %58 = arith.addf %46, %54 : vector<6x1xf32>
    %59 = arith.addf %47, %57 : vector<6x1xf32>
    %c5 = arith.constant 5 : index
    %c0_28 = arith.constant 0 : index
    %c0_29 = arith.constant 0 : index
    %60 = vector.load %arg0[%c5, %c0_28, %c0_29] : memref<9x75x392xbf16, #tpu.memory_space<vmem>>, vector<1x75x392xbf16>
    %61 = vector.shape_cast %60 : vector<1x75x392xbf16> to vector<75x392xbf16>
    %cst_30 = arith.constant dense<0.000000e+00> : vector<6x392xf32>
    %62 = tpu.matmul %0, %61, %cst_30 {dimension_numbers = #tpu.dot_dimension_numbers<[1], [0], [0], [1], [0, 0, 1, 1], [], []>} : vector<6x75xbf16>, vector<75x392xbf16>, vector<6x392xf32> -> vector<6x392xf32>
    %63 = vector.broadcast %1 : vector<6x1xf32> to vector<6x392xf32>
    %64 = arith.addf %62, %63 : vector<6x392xf32>
    %cst_31 = arith.constant dense<0.000000e+00> : vector<6xf32>
    %65 = vector.multi_reduction <add>, %64, %cst_31 [1] : vector<6x392xf32> to vector<6xf32>
    %66 = vector.shape_cast %65 : vector<6xf32> to vector<6x1xf32>
    %67 = arith.mulf %64, %64 : vector<6x392xf32>
    %cst_32 = arith.constant dense<0.000000e+00> : vector<6xf32>
    %68 = vector.multi_reduction <add>, %67, %cst_32 [1] : vector<6x392xf32> to vector<6xf32>
    %69 = vector.shape_cast %68 : vector<6xf32> to vector<6x1xf32>
    %70 = arith.addf %58, %66 : vector<6x1xf32>
    %71 = arith.addf %59, %69 : vector<6x1xf32>
    %c6 = arith.constant 6 : index
    %c0_33 = arith.constant 0 : index
    %c0_34 = arith.constant 0 : index
    %72 = vector.load %arg0[%c6, %c0_33, %c0_34] : memref<9x75x392xbf16, #tpu.memory_space<vmem>>, vector<1x75x392xbf16>
    %73 = vector.shape_cast %72 : vector<1x75x392xbf16> to vector<75x392xbf16>
    %cst_35 = arith.constant dense<0.000000e+00> : vector<6x392xf32>
    %74 = tpu.matmul %0, %73, %cst_35 {dimension_numbers = #tpu.dot_dimension_numbers<[1], [0], [0], [1], [0, 0, 1, 1], [], []>} : vector<6x75xbf16>, vector<75x392xbf16>, vector<6x392xf32> -> vector<6x392xf32>
    %75 = vector.broadcast %1 : vector<6x1xf32> to vector<6x392xf32>
    %76 = arith.addf %74, %75 : vector<6x392xf32>
    %cst_36 = arith.constant dense<0.000000e+00> : vector<6xf32>
    %77 = vector.multi_reduction <add>, %76, %cst_36 [1] : vector<6x392xf32> to vector<6xf32>
    %78 = vector.shape_cast %77 : vector<6xf32> to vector<6x1xf32>
    %79 = arith.mulf %76, %76 : vector<6x392xf32>
    %cst_37 = arith.constant dense<0.000000e+00> : vector<6xf32>
    %80 = vector.multi_reduction <add>, %79, %cst_37 [1] : vector<6x392xf32> to vector<6xf32>
    %81 = vector.shape_cast %80 : vector<6xf32> to vector<6x1xf32>
    %82 = arith.addf %70, %78 : vector<6x1xf32>
    %83 = arith.addf %71, %81 : vector<6x1xf32>
    %c7 = arith.constant 7 : index
    %c0_38 = arith.constant 0 : index
    %c0_39 = arith.constant 0 : index
    %84 = vector.load %arg0[%c7, %c0_38, %c0_39] : memref<9x75x392xbf16, #tpu.memory_space<vmem>>, vector<1x75x392xbf16>
    %85 = vector.shape_cast %84 : vector<1x75x392xbf16> to vector<75x392xbf16>
    %cst_40 = arith.constant dense<0.000000e+00> : vector<6x392xf32>
    %86 = tpu.matmul %0, %85, %cst_40 {dimension_numbers = #tpu.dot_dimension_numbers<[1], [0], [0], [1], [0, 0, 1, 1], [], []>} : vector<6x75xbf16>, vector<75x392xbf16>, vector<6x392xf32> -> vector<6x392xf32>
    %87 = vector.broadcast %1 : vector<6x1xf32> to vector<6x392xf32>
    %88 = arith.addf %86, %87 : vector<6x392xf32>
    %cst_41 = arith.constant dense<0.000000e+00> : vector<6xf32>
    %89 = vector.multi_reduction <add>, %88, %cst_41 [1] : vector<6x392xf32> to vector<6xf32>
    %90 = vector.shape_cast %89 : vector<6xf32> to vector<6x1xf32>
    %91 = arith.mulf %88, %88 : vector<6x392xf32>
    %cst_42 = arith.constant dense<0.000000e+00> : vector<6xf32>
    %92 = vector.multi_reduction <add>, %91, %cst_42 [1] : vector<6x392xf32> to vector<6xf32>
    %93 = vector.shape_cast %92 : vector<6xf32> to vector<6x1xf32>
    %94 = arith.addf %82, %90 : vector<6x1xf32>
    %95 = arith.addf %83, %93 : vector<6x1xf32>
    %c8 = arith.constant 8 : index
    %c0_43 = arith.constant 0 : index
    %c0_44 = arith.constant 0 : index
    %96 = vector.load %arg0[%c8, %c0_43, %c0_44] : memref<9x75x392xbf16, #tpu.memory_space<vmem>>, vector<1x75x392xbf16>
    %97 = vector.shape_cast %96 : vector<1x75x392xbf16> to vector<75x392xbf16>
    %cst_45 = arith.constant dense<0.000000e+00> : vector<6x392xf32>
    %98 = tpu.matmul %0, %97, %cst_45 {dimension_numbers = #tpu.dot_dimension_numbers<[1], [0], [0], [1], [0, 0, 1, 1], [], []>} : vector<6x75xbf16>, vector<75x392xbf16>, vector<6x392xf32> -> vector<6x392xf32>
    %99 = vector.broadcast %1 : vector<6x1xf32> to vector<6x392xf32>
    %100 = arith.addf %98, %99 : vector<6x392xf32>
    %cst_46 = arith.constant dense<0.000000e+00> : vector<6xf32>
    %101 = vector.multi_reduction <add>, %100, %cst_46 [1] : vector<6x392xf32> to vector<6xf32>
    %102 = vector.shape_cast %101 : vector<6xf32> to vector<6x1xf32>
    %103 = arith.mulf %100, %100 : vector<6x392xf32>
    %cst_47 = arith.constant dense<0.000000e+00> : vector<6xf32>
    %104 = vector.multi_reduction <add>, %103, %cst_47 [1] : vector<6x392xf32> to vector<6xf32>
    %105 = vector.shape_cast %104 : vector<6xf32> to vector<6x1xf32>
    %106 = arith.addf %94, %102 : vector<6x1xf32>
    %107 = arith.addf %95, %105 : vector<6x1xf32>
    %cst_48 = arith.constant 2.83446716E-4 : f32
    %108 = vector.broadcast %cst_48 : f32 to vector<6x1xf32>
    %109 = arith.mulf %106, %108 : vector<6x1xf32>
    %cst_49 = arith.constant 2.83446716E-4 : f32
    %110 = vector.broadcast %cst_49 : f32 to vector<6x1xf32>
    %111 = arith.mulf %107, %110 : vector<6x1xf32>
    %112 = arith.mulf %109, %109 : vector<6x1xf32>
    %113 = arith.subf %111, %112 : vector<6x1xf32>
    %cst_50 = arith.constant 0.000000e+00 : f32
    %114 = vector.broadcast %cst_50 : f32 to vector<6x1xf32>
    %115 = arith.maximumf %113, %114 : vector<6x1xf32>
    %cst_51 = arith.constant 9.99999974E-6 : f32
    %116 = vector.broadcast %cst_51 : f32 to vector<6x1xf32>
    %117 = arith.addf %115, %116 : vector<6x1xf32>
    %118 = math.rsqrt %117 : vector<6x1xf32>
    %c0_52 = arith.constant 0 : index
    %c0_53 = arith.constant 0 : index
    %119 = vector.load %arg3[%c0_52, %c0_53] : memref<6x1xf32, #tpu.memory_space<vmem>>, vector<6x1xf32>
    %120 = arith.mulf %118, %119 : vector<6x1xf32>
    %c0_54 = arith.constant 0 : index
    %c0_55 = arith.constant 0 : index
    %121 = vector.load %arg4[%c0_54, %c0_55] : memref<6x1xf32, #tpu.memory_space<vmem>>, vector<6x1xf32>
    %122 = arith.mulf %109, %120 : vector<6x1xf32>
    %123 = arith.subf %121, %122 : vector<6x1xf32>
    %124 = vector.broadcast %120 : vector<6x1xf32> to vector<6x392xf32>
    %125 = arith.mulf %6, %124 : vector<6x392xf32>
    %126 = vector.broadcast %123 : vector<6x1xf32> to vector<6x392xf32>
    %127 = arith.addf %125, %126 : vector<6x392xf32>
    %cst_56 = arith.constant 0.000000e+00 : f32
    %128 = vector.broadcast %cst_56 : f32 to vector<6x392xf32>
    %129 = arith.maximumf %127, %128 : vector<6x392xf32>
    %130 = vector.broadcast %120 : vector<6x1xf32> to vector<6x392xf32>
    %131 = arith.mulf %16, %130 : vector<6x392xf32>
    %132 = vector.broadcast %123 : vector<6x1xf32> to vector<6x392xf32>
    %133 = arith.addf %131, %132 : vector<6x392xf32>
    %cst_57 = arith.constant 0.000000e+00 : f32
    %134 = vector.broadcast %cst_57 : f32 to vector<6x392xf32>
    %135 = arith.maximumf %133, %134 : vector<6x392xf32>
    %136 = arith.maximumf %129, %135 : vector<6x392xf32>
    %137 = vector.broadcast %120 : vector<6x1xf32> to vector<6x392xf32>
    %138 = arith.mulf %28, %137 : vector<6x392xf32>
    %139 = vector.broadcast %123 : vector<6x1xf32> to vector<6x392xf32>
    %140 = arith.addf %138, %139 : vector<6x392xf32>
    %cst_58 = arith.constant 0.000000e+00 : f32
    %141 = vector.broadcast %cst_58 : f32 to vector<6x392xf32>
    %142 = arith.maximumf %140, %141 : vector<6x392xf32>
    %143 = arith.maximumf %136, %142 : vector<6x392xf32>
    %144 = vector.broadcast %120 : vector<6x1xf32> to vector<6x392xf32>
    %145 = arith.mulf %40, %144 : vector<6x392xf32>
    %146 = vector.broadcast %123 : vector<6x1xf32> to vector<6x392xf32>
    %147 = arith.addf %145, %146 : vector<6x392xf32>
    %cst_59 = arith.constant 0.000000e+00 : f32
    %148 = vector.broadcast %cst_59 : f32 to vector<6x392xf32>
    %149 = arith.maximumf %147, %148 : vector<6x392xf32>
    %150 = arith.maximumf %143, %149 : vector<6x392xf32>
    %151 = vector.broadcast %120 : vector<6x1xf32> to vector<6x392xf32>
    %152 = arith.mulf %52, %151 : vector<6x392xf32>
    %153 = vector.broadcast %123 : vector<6x1xf32> to vector<6x392xf32>
    %154 = arith.addf %152, %153 : vector<6x392xf32>
    %cst_60 = arith.constant 0.000000e+00 : f32
    %155 = vector.broadcast %cst_60 : f32 to vector<6x392xf32>
    %156 = arith.maximumf %154, %155 : vector<6x392xf32>
    %157 = arith.maximumf %150, %156 : vector<6x392xf32>
    %158 = vector.broadcast %120 : vector<6x1xf32> to vector<6x392xf32>
    %159 = arith.mulf %64, %158 : vector<6x392xf32>
    %160 = vector.broadcast %123 : vector<6x1xf32> to vector<6x392xf32>
    %161 = arith.addf %159, %160 : vector<6x392xf32>
    %cst_61 = arith.constant 0.000000e+00 : f32
    %162 = vector.broadcast %cst_61 : f32 to vector<6x392xf32>
    %163 = arith.maximumf %161, %162 : vector<6x392xf32>
    %164 = arith.maximumf %157, %163 : vector<6x392xf32>
    %165 = vector.broadcast %120 : vector<6x1xf32> to vector<6x392xf32>
    %166 = arith.mulf %76, %165 : vector<6x392xf32>
    %167 = vector.broadcast %123 : vector<6x1xf32> to vector<6x392xf32>
    %168 = arith.addf %166, %167 : vector<6x392xf32>
    %cst_62 = arith.constant 0.000000e+00 : f32
    %169 = vector.broadcast %cst_62 : f32 to vector<6x392xf32>
    %170 = arith.maximumf %168, %169 : vector<6x392xf32>
    %171 = arith.maximumf %164, %170 : vector<6x392xf32>
    %172 = vector.broadcast %120 : vector<6x1xf32> to vector<6x392xf32>
    %173 = arith.mulf %88, %172 : vector<6x392xf32>
    %174 = vector.broadcast %123 : vector<6x1xf32> to vector<6x392xf32>
    %175 = arith.addf %173, %174 : vector<6x392xf32>
    %cst_63 = arith.constant 0.000000e+00 : f32
    %176 = vector.broadcast %cst_63 : f32 to vector<6x392xf32>
    %177 = arith.maximumf %175, %176 : vector<6x392xf32>
    %178 = arith.maximumf %171, %177 : vector<6x392xf32>
    %179 = vector.broadcast %120 : vector<6x1xf32> to vector<6x392xf32>
    %180 = arith.mulf %100, %179 : vector<6x392xf32>
    %181 = vector.broadcast %123 : vector<6x1xf32> to vector<6x392xf32>
    %182 = arith.addf %180, %181 : vector<6x392xf32>
    %cst_64 = arith.constant 0.000000e+00 : f32
    %183 = vector.broadcast %cst_64 : f32 to vector<6x392xf32>
    %184 = arith.maximumf %182, %183 : vector<6x392xf32>
    %185 = arith.maximumf %178, %184 : vector<6x392xf32>
    %c0_65 = arith.constant 0 : index
    %c0_66 = arith.constant 0 : index
    %186 = vector.load %arg5[%c0_65, %c0_66] : memref<6x392xf32, #tpu.memory_space<vmem>>, vector<6x392xf32>
    tpu.vector_store %arg5[%c0_65, %c0_66], %185 {strides = array<i32>} : memref<6x392xf32, #tpu.memory_space<vmem>>, vector<6x392xf32>,
    return
  }
}

module attributes {stable_mosaic.version = 11 : i64} {
  func.func @kernel(%arg0: memref<9x54x32xbf16, #tpu.memory_space<vmem>>, %arg1: memref<12x54xbf16, #tpu.memory_space<vmem>>, %arg2: memref<12x1xf32, #tpu.memory_space<vmem>>, %arg3: memref<12x1xf32, #tpu.memory_space<vmem>>, %arg4: memref<12x1xf32, #tpu.memory_space<vmem>>, %arg5: memref<12x32xf32, #tpu.memory_space<vmem>>) attributes {dimension_semantics = [], scalar_prefetch = 0 : i64, scratch_operands = 0 : i64, tpu.core_type = #tpu.core_type<tc>} {
    %c0 = arith.constant 0 : index
    %c0_0 = arith.constant 0 : index
    %0 = vector.load %arg1[%c0, %c0_0] : memref<12x54xbf16, #tpu.memory_space<vmem>>, vector<12x54xbf16>
    %c0_1 = arith.constant 0 : index
    %c0_2 = arith.constant 0 : index
    %1 = vector.load %arg2[%c0_1, %c0_2] : memref<12x1xf32, #tpu.memory_space<vmem>>, vector<12x1xf32>
    %c0_3 = arith.constant 0 : index
    %c0_4 = arith.constant 0 : index
    %c0_5 = arith.constant 0 : index
    %2 = vector.load %arg0[%c0_3, %c0_4, %c0_5] : memref<9x54x32xbf16, #tpu.memory_space<vmem>>, vector<1x54x32xbf16>
    %3 = vector.shape_cast %2 : vector<1x54x32xbf16> to vector<54x32xbf16>
    %cst = arith.constant dense<0.000000e+00> : vector<12x32xf32>
    %4 = tpu.matmul %0, %3, %cst {dimension_numbers = #tpu.dot_dimension_numbers<[1], [0], [0], [1], [0, 0, 1, 1], [], []>} : vector<12x54xbf16>, vector<54x32xbf16>, vector<12x32xf32> -> vector<12x32xf32>
    %5 = vector.broadcast %1 : vector<12x1xf32> to vector<12x32xf32>
    %6 = arith.addf %4, %5 : vector<12x32xf32>
    %cst_6 = arith.constant dense<0.000000e+00> : vector<12xf32>
    %7 = vector.multi_reduction <add>, %6, %cst_6 [1] : vector<12x32xf32> to vector<12xf32>
    %8 = vector.shape_cast %7 : vector<12xf32> to vector<12x1xf32>
    %9 = arith.mulf %6, %6 : vector<12x32xf32>
    %cst_7 = arith.constant dense<0.000000e+00> : vector<12xf32>
    %10 = vector.multi_reduction <add>, %9, %cst_7 [1] : vector<12x32xf32> to vector<12xf32>
    %11 = vector.shape_cast %10 : vector<12xf32> to vector<12x1xf32>
    %c1 = arith.constant 1 : index
    %c0_8 = arith.constant 0 : index
    %c0_9 = arith.constant 0 : index
    %12 = vector.load %arg0[%c1, %c0_8, %c0_9] : memref<9x54x32xbf16, #tpu.memory_space<vmem>>, vector<1x54x32xbf16>
    %13 = vector.shape_cast %12 : vector<1x54x32xbf16> to vector<54x32xbf16>
    %cst_10 = arith.constant dense<0.000000e+00> : vector<12x32xf32>
    %14 = tpu.matmul %0, %13, %cst_10 {dimension_numbers = #tpu.dot_dimension_numbers<[1], [0], [0], [1], [0, 0, 1, 1], [], []>} : vector<12x54xbf16>, vector<54x32xbf16>, vector<12x32xf32> -> vector<12x32xf32>
    %15 = vector.broadcast %1 : vector<12x1xf32> to vector<12x32xf32>
    %16 = arith.addf %14, %15 : vector<12x32xf32>
    %cst_11 = arith.constant dense<0.000000e+00> : vector<12xf32>
    %17 = vector.multi_reduction <add>, %16, %cst_11 [1] : vector<12x32xf32> to vector<12xf32>
    %18 = vector.shape_cast %17 : vector<12xf32> to vector<12x1xf32>
    %19 = arith.mulf %16, %16 : vector<12x32xf32>
    %cst_12 = arith.constant dense<0.000000e+00> : vector<12xf32>
    %20 = vector.multi_reduction <add>, %19, %cst_12 [1] : vector<12x32xf32> to vector<12xf32>
    %21 = vector.shape_cast %20 : vector<12xf32> to vector<12x1xf32>
    %22 = arith.addf %8, %18 : vector<12x1xf32>
    %23 = arith.addf %11, %21 : vector<12x1xf32>
    %c2 = arith.constant 2 : index
    %c0_13 = arith.constant 0 : index
    %c0_14 = arith.constant 0 : index
    %24 = vector.load %arg0[%c2, %c0_13, %c0_14] : memref<9x54x32xbf16, #tpu.memory_space<vmem>>, vector<1x54x32xbf16>
    %25 = vector.shape_cast %24 : vector<1x54x32xbf16> to vector<54x32xbf16>
    %cst_15 = arith.constant dense<0.000000e+00> : vector<12x32xf32>
    %26 = tpu.matmul %0, %25, %cst_15 {dimension_numbers = #tpu.dot_dimension_numbers<[1], [0], [0], [1], [0, 0, 1, 1], [], []>} : vector<12x54xbf16>, vector<54x32xbf16>, vector<12x32xf32> -> vector<12x32xf32>
    %27 = vector.broadcast %1 : vector<12x1xf32> to vector<12x32xf32>
    %28 = arith.addf %26, %27 : vector<12x32xf32>
    %cst_16 = arith.constant dense<0.000000e+00> : vector<12xf32>
    %29 = vector.multi_reduction <add>, %28, %cst_16 [1] : vector<12x32xf32> to vector<12xf32>
    %30 = vector.shape_cast %29 : vector<12xf32> to vector<12x1xf32>
    %31 = arith.mulf %28, %28 : vector<12x32xf32>
    %cst_17 = arith.constant dense<0.000000e+00> : vector<12xf32>
    %32 = vector.multi_reduction <add>, %31, %cst_17 [1] : vector<12x32xf32> to vector<12xf32>
    %33 = vector.shape_cast %32 : vector<12xf32> to vector<12x1xf32>
    %34 = arith.addf %22, %30 : vector<12x1xf32>
    %35 = arith.addf %23, %33 : vector<12x1xf32>
    %c3 = arith.constant 3 : index
    %c0_18 = arith.constant 0 : index
    %c0_19 = arith.constant 0 : index
    %36 = vector.load %arg0[%c3, %c0_18, %c0_19] : memref<9x54x32xbf16, #tpu.memory_space<vmem>>, vector<1x54x32xbf16>
    %37 = vector.shape_cast %36 : vector<1x54x32xbf16> to vector<54x32xbf16>
    %cst_20 = arith.constant dense<0.000000e+00> : vector<12x32xf32>
    %38 = tpu.matmul %0, %37, %cst_20 {dimension_numbers = #tpu.dot_dimension_numbers<[1], [0], [0], [1], [0, 0, 1, 1], [], []>} : vector<12x54xbf16>, vector<54x32xbf16>, vector<12x32xf32> -> vector<12x32xf32>
    %39 = vector.broadcast %1 : vector<12x1xf32> to vector<12x32xf32>
    %40 = arith.addf %38, %39 : vector<12x32xf32>
    %cst_21 = arith.constant dense<0.000000e+00> : vector<12xf32>
    %41 = vector.multi_reduction <add>, %40, %cst_21 [1] : vector<12x32xf32> to vector<12xf32>
    %42 = vector.shape_cast %41 : vector<12xf32> to vector<12x1xf32>
    %43 = arith.mulf %40, %40 : vector<12x32xf32>
    %cst_22 = arith.constant dense<0.000000e+00> : vector<12xf32>
    %44 = vector.multi_reduction <add>, %43, %cst_22 [1] : vector<12x32xf32> to vector<12xf32>
    %45 = vector.shape_cast %44 : vector<12xf32> to vector<12x1xf32>
    %46 = arith.addf %34, %42 : vector<12x1xf32>
    %47 = arith.addf %35, %45 : vector<12x1xf32>
    %c4 = arith.constant 4 : index
    %c0_23 = arith.constant 0 : index
    %c0_24 = arith.constant 0 : index
    %48 = vector.load %arg0[%c4, %c0_23, %c0_24] : memref<9x54x32xbf16, #tpu.memory_space<vmem>>, vector<1x54x32xbf16>
    %49 = vector.shape_cast %48 : vector<1x54x32xbf16> to vector<54x32xbf16>
    %cst_25 = arith.constant dense<0.000000e+00> : vector<12x32xf32>
    %50 = tpu.matmul %0, %49, %cst_25 {dimension_numbers = #tpu.dot_dimension_numbers<[1], [0], [0], [1], [0, 0, 1, 1], [], []>} : vector<12x54xbf16>, vector<54x32xbf16>, vector<12x32xf32> -> vector<12x32xf32>
    %51 = vector.broadcast %1 : vector<12x1xf32> to vector<12x32xf32>
    %52 = arith.addf %50, %51 : vector<12x32xf32>
    %cst_26 = arith.constant dense<0.000000e+00> : vector<12xf32>
    %53 = vector.multi_reduction <add>, %52, %cst_26 [1] : vector<12x32xf32> to vector<12xf32>
    %54 = vector.shape_cast %53 : vector<12xf32> to vector<12x1xf32>
    %55 = arith.mulf %52, %52 : vector<12x32xf32>
    %cst_27 = arith.constant dense<0.000000e+00> : vector<12xf32>
    %56 = vector.multi_reduction <add>, %55, %cst_27 [1] : vector<12x32xf32> to vector<12xf32>
    %57 = vector.shape_cast %56 : vector<12xf32> to vector<12x1xf32>
    %58 = arith.addf %46, %54 : vector<12x1xf32>
    %59 = arith.addf %47, %57 : vector<12x1xf32>
    %c5 = arith.constant 5 : index
    %c0_28 = arith.constant 0 : index
    %c0_29 = arith.constant 0 : index
    %60 = vector.load %arg0[%c5, %c0_28, %c0_29] : memref<9x54x32xbf16, #tpu.memory_space<vmem>>, vector<1x54x32xbf16>
    %61 = vector.shape_cast %60 : vector<1x54x32xbf16> to vector<54x32xbf16>
    %cst_30 = arith.constant dense<0.000000e+00> : vector<12x32xf32>
    %62 = tpu.matmul %0, %61, %cst_30 {dimension_numbers = #tpu.dot_dimension_numbers<[1], [0], [0], [1], [0, 0, 1, 1], [], []>} : vector<12x54xbf16>, vector<54x32xbf16>, vector<12x32xf32> -> vector<12x32xf32>
    %63 = vector.broadcast %1 : vector<12x1xf32> to vector<12x32xf32>
    %64 = arith.addf %62, %63 : vector<12x32xf32>
    %cst_31 = arith.constant dense<0.000000e+00> : vector<12xf32>
    %65 = vector.multi_reduction <add>, %64, %cst_31 [1] : vector<12x32xf32> to vector<12xf32>
    %66 = vector.shape_cast %65 : vector<12xf32> to vector<12x1xf32>
    %67 = arith.mulf %64, %64 : vector<12x32xf32>
    %cst_32 = arith.constant dense<0.000000e+00> : vector<12xf32>
    %68 = vector.multi_reduction <add>, %67, %cst_32 [1] : vector<12x32xf32> to vector<12xf32>
    %69 = vector.shape_cast %68 : vector<12xf32> to vector<12x1xf32>
    %70 = arith.addf %58, %66 : vector<12x1xf32>
    %71 = arith.addf %59, %69 : vector<12x1xf32>
    %c6 = arith.constant 6 : index
    %c0_33 = arith.constant 0 : index
    %c0_34 = arith.constant 0 : index
    %72 = vector.load %arg0[%c6, %c0_33, %c0_34] : memref<9x54x32xbf16, #tpu.memory_space<vmem>>, vector<1x54x32xbf16>
    %73 = vector.shape_cast %72 : vector<1x54x32xbf16> to vector<54x32xbf16>
    %cst_35 = arith.constant dense<0.000000e+00> : vector<12x32xf32>
    %74 = tpu.matmul %0, %73, %cst_35 {dimension_numbers = #tpu.dot_dimension_numbers<[1], [0], [0], [1], [0, 0, 1, 1], [], []>} : vector<12x54xbf16>, vector<54x32xbf16>, vector<12x32xf32> -> vector<12x32xf32>
    %75 = vector.broadcast %1 : vector<12x1xf32> to vector<12x32xf32>
    %76 = arith.addf %74, %75 : vector<12x32xf32>
    %cst_36 = arith.constant dense<0.000000e+00> : vector<12xf32>
    %77 = vector.multi_reduction <add>, %76, %cst_36 [1] : vector<12x32xf32> to vector<12xf32>
    %78 = vector.shape_cast %77 : vector<12xf32> to vector<12x1xf32>
    %79 = arith.mulf %76, %76 : vector<12x32xf32>
    %cst_37 = arith.constant dense<0.000000e+00> : vector<12xf32>
    %80 = vector.multi_reduction <add>, %79, %cst_37 [1] : vector<12x32xf32> to vector<12xf32>
    %81 = vector.shape_cast %80 : vector<12xf32> to vector<12x1xf32>
    %82 = arith.addf %70, %78 : vector<12x1xf32>
    %83 = arith.addf %71, %81 : vector<12x1xf32>
    %c7 = arith.constant 7 : index
    %c0_38 = arith.constant 0 : index
    %c0_39 = arith.constant 0 : index
    %84 = vector.load %arg0[%c7, %c0_38, %c0_39] : memref<9x54x32xbf16, #tpu.memory_space<vmem>>, vector<1x54x32xbf16>
    %85 = vector.shape_cast %84 : vector<1x54x32xbf16> to vector<54x32xbf16>
    %cst_40 = arith.constant dense<0.000000e+00> : vector<12x32xf32>
    %86 = tpu.matmul %0, %85, %cst_40 {dimension_numbers = #tpu.dot_dimension_numbers<[1], [0], [0], [1], [0, 0, 1, 1], [], []>} : vector<12x54xbf16>, vector<54x32xbf16>, vector<12x32xf32> -> vector<12x32xf32>
    %87 = vector.broadcast %1 : vector<12x1xf32> to vector<12x32xf32>
    %88 = arith.addf %86, %87 : vector<12x32xf32>
    %cst_41 = arith.constant dense<0.000000e+00> : vector<12xf32>
    %89 = vector.multi_reduction <add>, %88, %cst_41 [1] : vector<12x32xf32> to vector<12xf32>
    %90 = vector.shape_cast %89 : vector<12xf32> to vector<12x1xf32>
    %91 = arith.mulf %88, %88 : vector<12x32xf32>
    %cst_42 = arith.constant dense<0.000000e+00> : vector<12xf32>
    %92 = vector.multi_reduction <add>, %91, %cst_42 [1] : vector<12x32xf32> to vector<12xf32>
    %93 = vector.shape_cast %92 : vector<12xf32> to vector<12x1xf32>
    %94 = arith.addf %82, %90 : vector<12x1xf32>
    %95 = arith.addf %83, %93 : vector<12x1xf32>
    %c8 = arith.constant 8 : index
    %c0_43 = arith.constant 0 : index
    %c0_44 = arith.constant 0 : index
    %96 = vector.load %arg0[%c8, %c0_43, %c0_44] : memref<9x54x32xbf16, #tpu.memory_space<vmem>>, vector<1x54x32xbf16>
    %97 = vector.shape_cast %96 : vector<1x54x32xbf16> to vector<54x32xbf16>
    %cst_45 = arith.constant dense<0.000000e+00> : vector<12x32xf32>
    %98 = tpu.matmul %0, %97, %cst_45 {dimension_numbers = #tpu.dot_dimension_numbers<[1], [0], [0], [1], [0, 0, 1, 1], [], []>} : vector<12x54xbf16>, vector<54x32xbf16>, vector<12x32xf32> -> vector<12x32xf32>
    %99 = vector.broadcast %1 : vector<12x1xf32> to vector<12x32xf32>
    %100 = arith.addf %98, %99 : vector<12x32xf32>
    %cst_46 = arith.constant dense<0.000000e+00> : vector<12xf32>
    %101 = vector.multi_reduction <add>, %100, %cst_46 [1] : vector<12x32xf32> to vector<12xf32>
    %102 = vector.shape_cast %101 : vector<12xf32> to vector<12x1xf32>
    %103 = arith.mulf %100, %100 : vector<12x32xf32>
    %cst_47 = arith.constant dense<0.000000e+00> : vector<12xf32>
    %104 = vector.multi_reduction <add>, %103, %cst_47 [1] : vector<12x32xf32> to vector<12xf32>
    %105 = vector.shape_cast %104 : vector<12xf32> to vector<12x1xf32>
    %106 = arith.addf %94, %102 : vector<12x1xf32>
    %107 = arith.addf %95, %105 : vector<12x1xf32>
    %cst_48 = arith.constant 0.00347222225 : f32
    %108 = vector.broadcast %cst_48 : f32 to vector<12x1xf32>
    %109 = arith.mulf %106, %108 : vector<12x1xf32>
    %cst_49 = arith.constant 0.00347222225 : f32
    %110 = vector.broadcast %cst_49 : f32 to vector<12x1xf32>
    %111 = arith.mulf %107, %110 : vector<12x1xf32>
    %112 = arith.mulf %109, %109 : vector<12x1xf32>
    %113 = arith.subf %111, %112 : vector<12x1xf32>
    %cst_50 = arith.constant 0.000000e+00 : f32
    %114 = vector.broadcast %cst_50 : f32 to vector<12x1xf32>
    %115 = arith.maximumf %113, %114 : vector<12x1xf32>
    %cst_51 = arith.constant 9.99999974E-6 : f32
    %116 = vector.broadcast %cst_51 : f32 to vector<12x1xf32>
    %117 = arith.addf %115, %116 : vector<12x1xf32>
    %118 = math.rsqrt %117 : vector<12x1xf32>
    %c0_52 = arith.constant 0 : index
    %c0_53 = arith.constant 0 : index
    %119 = vector.load %arg3[%c0_52, %c0_53] : memref<12x1xf32, #tpu.memory_space<vmem>>, vector<12x1xf32>
    %120 = arith.mulf %118, %119 : vector<12x1xf32>
    %c0_54 = arith.constant 0 : index
    %c0_55 = arith.constant 0 : index
    %121 = vector.load %arg4[%c0_54, %c0_55] : memref<12x1xf32, #tpu.memory_space<vmem>>, vector<12x1xf32>
    %122 = arith.mulf %109, %120 : vector<12x1xf32>
    %123 = arith.subf %121, %122 : vector<12x1xf32>
    %124 = vector.broadcast %120 : vector<12x1xf32> to vector<12x32xf32>
    %125 = arith.mulf %6, %124 : vector<12x32xf32>
    %126 = vector.broadcast %123 : vector<12x1xf32> to vector<12x32xf32>
    %127 = arith.addf %125, %126 : vector<12x32xf32>
    %cst_56 = arith.constant 0.000000e+00 : f32
    %128 = vector.broadcast %cst_56 : f32 to vector<12x32xf32>
    %129 = arith.maximumf %127, %128 : vector<12x32xf32>
    %130 = vector.broadcast %120 : vector<12x1xf32> to vector<12x32xf32>
    %131 = arith.mulf %16, %130 : vector<12x32xf32>
    %132 = vector.broadcast %123 : vector<12x1xf32> to vector<12x32xf32>
    %133 = arith.addf %131, %132 : vector<12x32xf32>
    %cst_57 = arith.constant 0.000000e+00 : f32
    %134 = vector.broadcast %cst_57 : f32 to vector<12x32xf32>
    %135 = arith.maximumf %133, %134 : vector<12x32xf32>
    %136 = arith.maximumf %129, %135 : vector<12x32xf32>
    %137 = vector.broadcast %120 : vector<12x1xf32> to vector<12x32xf32>
    %138 = arith.mulf %28, %137 : vector<12x32xf32>
    %139 = vector.broadcast %123 : vector<12x1xf32> to vector<12x32xf32>
    %140 = arith.addf %138, %139 : vector<12x32xf32>
    %cst_58 = arith.constant 0.000000e+00 : f32
    %141 = vector.broadcast %cst_58 : f32 to vector<12x32xf32>
    %142 = arith.maximumf %140, %141 : vector<12x32xf32>
    %143 = arith.maximumf %136, %142 : vector<12x32xf32>
    %144 = vector.broadcast %120 : vector<12x1xf32> to vector<12x32xf32>
    %145 = arith.mulf %40, %144 : vector<12x32xf32>
    %146 = vector.broadcast %123 : vector<12x1xf32> to vector<12x32xf32>
    %147 = arith.addf %145, %146 : vector<12x32xf32>
    %cst_59 = arith.constant 0.000000e+00 : f32
    %148 = vector.broadcast %cst_59 : f32 to vector<12x32xf32>
    %149 = arith.maximumf %147, %148 : vector<12x32xf32>
    %150 = arith.maximumf %143, %149 : vector<12x32xf32>
    %151 = vector.broadcast %120 : vector<12x1xf32> to vector<12x32xf32>
    %152 = arith.mulf %52, %151 : vector<12x32xf32>
    %153 = vector.broadcast %123 : vector<12x1xf32> to vector<12x32xf32>
    %154 = arith.addf %152, %153 : vector<12x32xf32>
    %cst_60 = arith.constant 0.000000e+00 : f32
    %155 = vector.broadcast %cst_60 : f32 to vector<12x32xf32>
    %156 = arith.maximumf %154, %155 : vector<12x32xf32>
    %157 = arith.maximumf %150, %156 : vector<12x32xf32>
    %158 = vector.broadcast %120 : vector<12x1xf32> to vector<12x32xf32>
    %159 = arith.mulf %64, %158 : vector<12x32xf32>
    %160 = vector.broadcast %123 : vector<12x1xf32> to vector<12x32xf32>
    %161 = arith.addf %159, %160 : vector<12x32xf32>
    %cst_61 = arith.constant 0.000000e+00 : f32
    %162 = vector.broadcast %cst_61 : f32 to vector<12x32xf32>
    %163 = arith.maximumf %161, %162 : vector<12x32xf32>
    %164 = arith.maximumf %157, %163 : vector<12x32xf32>
    %165 = vector.broadcast %120 : vector<12x1xf32> to vector<12x32xf32>
    %166 = arith.mulf %76, %165 : vector<12x32xf32>
    %167 = vector.broadcast %123 : vector<12x1xf32> to vector<12x32xf32>
    %168 = arith.addf %166, %167 : vector<12x32xf32>
    %cst_62 = arith.constant 0.000000e+00 : f32
    %169 = vector.broadcast %cst_62 : f32 to vector<12x32xf32>
    %170 = arith.maximumf %168, %169 : vector<12x32xf32>
    %171 = arith.maximumf %164, %170 : vector<12x32xf32>
    %172 = vector.broadcast %120 : vector<12x1xf32> to vector<12x32xf32>
    %173 = arith.mulf %88, %172 : vector<12x32xf32>
    %174 = vector.broadcast %123 : vector<12x1xf32> to vector<12x32xf32>
    %175 = arith.addf %173, %174 : vector<12x32xf32>
    %cst_63 = arith.constant 0.000000e+00 : f32
    %176 = vector.broadcast %cst_63 : f32 to vector<12x32xf32>
    %177 = arith.maximumf %175, %176 : vector<12x32xf32>
    %178 = arith.maximumf %171, %177 : vector<12x32xf32>
    %179 = vector.broadcast %120 : vector<12x1xf32> to vector<12x32xf32>
    %180 = arith.mulf %100, %179 : vector<12x32xf32>
    %181 = vector.broadcast %123 : vector<12x1xf32> to vector<12x32xf32>
    %182 = arith.addf %180, %181 : vector<12x32xf32>
    %cst_64 = arith.constant 0.000000e+00 : f32
    %183 = vector.broadcast %cst_64 : f32 to vector<12x32xf32>
    %184 = arith.maximumf %182, %183 : vector<12x32xf32>
    %185 = arith.maximumf %178, %184 : vector<12x32xf32>
    %c0_65 = arith.constant 0 : index
    %c0_66 = arith.constant 0 : index
    %186 = vector.load %arg5[%c0_65, %c0_66] : memref<12x32xf32, #tpu.memory_space<vmem>>, vector<12x32xf32>
    tpu.vector_store %arg5[%c0_65, %c0_66], %185 {strides = array<i32>} : memref<12x32xf32, #tpu.memory_space<vmem>>, vector<12x32xf32>,
    return
  }
}

module attributes {stable_mosaic.version = 11 : i64} {
  func.func @kernel(%arg0: memref<4x48x2xbf16, #tpu.memory_space<vmem>>, %arg1: memref<24x48xbf16, #tpu.memory_space<vmem>>, %arg2: memref<24x1xf32, #tpu.memory_space<vmem>>, %arg3: memref<24x1xf32, #tpu.memory_space<vmem>>, %arg4: memref<24x1xf32, #tpu.memory_space<vmem>>, %arg5: memref<24x1xf32, #tpu.memory_space<vmem>>, %arg6: memref<1x1xf32, #tpu.memory_space<vmem>>, %arg7: memref<1x2xf32, #tpu.memory_space<vmem>>) attributes {dimension_semantics = [], scalar_prefetch = 0 : i64, scratch_operands = 0 : i64, tpu.core_type = #tpu.core_type<tc>} {
    %c0 = arith.constant 0 : index
    %c0_0 = arith.constant 0 : index
    %0 = vector.load %arg1[%c0, %c0_0] : memref<24x48xbf16, #tpu.memory_space<vmem>>, vector<24x48xbf16>
    %c0_1 = arith.constant 0 : index
    %c0_2 = arith.constant 0 : index
    %1 = vector.load %arg2[%c0_1, %c0_2] : memref<24x1xf32, #tpu.memory_space<vmem>>, vector<24x1xf32>
    %c0_3 = arith.constant 0 : index
    %c0_4 = arith.constant 0 : index
    %c0_5 = arith.constant 0 : index
    %2 = vector.load %arg0[%c0_3, %c0_4, %c0_5] : memref<4x48x2xbf16, #tpu.memory_space<vmem>>, vector<1x48x2xbf16>
    %3 = vector.shape_cast %2 : vector<1x48x2xbf16> to vector<48x2xbf16>
    %cst = arith.constant dense<0.000000e+00> : vector<24x2xf32>
    %4 = tpu.matmul %0, %3, %cst {dimension_numbers = #tpu.dot_dimension_numbers<[1], [0], [0], [1], [0, 0, 1, 1], [], []>} : vector<24x48xbf16>, vector<48x2xbf16>, vector<24x2xf32> -> vector<24x2xf32>
    %5 = vector.broadcast %1 : vector<24x1xf32> to vector<24x2xf32>
    %6 = arith.addf %4, %5 : vector<24x2xf32>
    %cst_6 = arith.constant dense<0.000000e+00> : vector<24xf32>
    %7 = vector.multi_reduction <add>, %6, %cst_6 [1] : vector<24x2xf32> to vector<24xf32>
    %8 = vector.shape_cast %7 : vector<24xf32> to vector<24x1xf32>
    %9 = arith.mulf %6, %6 : vector<24x2xf32>
    %cst_7 = arith.constant dense<0.000000e+00> : vector<24xf32>
    %10 = vector.multi_reduction <add>, %9, %cst_7 [1] : vector<24x2xf32> to vector<24xf32>
    %11 = vector.shape_cast %10 : vector<24xf32> to vector<24x1xf32>
    %c1 = arith.constant 1 : index
    %c0_8 = arith.constant 0 : index
    %c0_9 = arith.constant 0 : index
    %12 = vector.load %arg0[%c1, %c0_8, %c0_9] : memref<4x48x2xbf16, #tpu.memory_space<vmem>>, vector<1x48x2xbf16>
    %13 = vector.shape_cast %12 : vector<1x48x2xbf16> to vector<48x2xbf16>
    %cst_10 = arith.constant dense<0.000000e+00> : vector<24x2xf32>
    %14 = tpu.matmul %0, %13, %cst_10 {dimension_numbers = #tpu.dot_dimension_numbers<[1], [0], [0], [1], [0, 0, 1, 1], [], []>} : vector<24x48xbf16>, vector<48x2xbf16>, vector<24x2xf32> -> vector<24x2xf32>
    %15 = vector.broadcast %1 : vector<24x1xf32> to vector<24x2xf32>
    %16 = arith.addf %14, %15 : vector<24x2xf32>
    %cst_11 = arith.constant dense<0.000000e+00> : vector<24xf32>
    %17 = vector.multi_reduction <add>, %16, %cst_11 [1] : vector<24x2xf32> to vector<24xf32>
    %18 = vector.shape_cast %17 : vector<24xf32> to vector<24x1xf32>
    %19 = arith.mulf %16, %16 : vector<24x2xf32>
    %cst_12 = arith.constant dense<0.000000e+00> : vector<24xf32>
    %20 = vector.multi_reduction <add>, %19, %cst_12 [1] : vector<24x2xf32> to vector<24xf32>
    %21 = vector.shape_cast %20 : vector<24xf32> to vector<24x1xf32>
    %22 = arith.addf %8, %18 : vector<24x1xf32>
    %23 = arith.addf %11, %21 : vector<24x1xf32>
    %c2 = arith.constant 2 : index
    %c0_13 = arith.constant 0 : index
    %c0_14 = arith.constant 0 : index
    %24 = vector.load %arg0[%c2, %c0_13, %c0_14] : memref<4x48x2xbf16, #tpu.memory_space<vmem>>, vector<1x48x2xbf16>
    %25 = vector.shape_cast %24 : vector<1x48x2xbf16> to vector<48x2xbf16>
    %cst_15 = arith.constant dense<0.000000e+00> : vector<24x2xf32>
    %26 = tpu.matmul %0, %25, %cst_15 {dimension_numbers = #tpu.dot_dimension_numbers<[1], [0], [0], [1], [0, 0, 1, 1], [], []>} : vector<24x48xbf16>, vector<48x2xbf16>, vector<24x2xf32> -> vector<24x2xf32>
    %27 = vector.broadcast %1 : vector<24x1xf32> to vector<24x2xf32>
    %28 = arith.addf %26, %27 : vector<24x2xf32>
    %cst_16 = arith.constant dense<0.000000e+00> : vector<24xf32>
    %29 = vector.multi_reduction <add>, %28, %cst_16 [1] : vector<24x2xf32> to vector<24xf32>
    %30 = vector.shape_cast %29 : vector<24xf32> to vector<24x1xf32>
    %31 = arith.mulf %28, %28 : vector<24x2xf32>
    %cst_17 = arith.constant dense<0.000000e+00> : vector<24xf32>
    %32 = vector.multi_reduction <add>, %31, %cst_17 [1] : vector<24x2xf32> to vector<24xf32>
    %33 = vector.shape_cast %32 : vector<24xf32> to vector<24x1xf32>
    %34 = arith.addf %22, %30 : vector<24x1xf32>
    %35 = arith.addf %23, %33 : vector<24x1xf32>
    %c3 = arith.constant 3 : index
    %c0_18 = arith.constant 0 : index
    %c0_19 = arith.constant 0 : index
    %36 = vector.load %arg0[%c3, %c0_18, %c0_19] : memref<4x48x2xbf16, #tpu.memory_space<vmem>>, vector<1x48x2xbf16>
    %37 = vector.shape_cast %36 : vector<1x48x2xbf16> to vector<48x2xbf16>
    %cst_20 = arith.constant dense<0.000000e+00> : vector<24x2xf32>
    %38 = tpu.matmul %0, %37, %cst_20 {dimension_numbers = #tpu.dot_dimension_numbers<[1], [0], [0], [1], [0, 0, 1, 1], [], []>} : vector<24x48xbf16>, vector<48x2xbf16>, vector<24x2xf32> -> vector<24x2xf32>
    %39 = vector.broadcast %1 : vector<24x1xf32> to vector<24x2xf32>
    %40 = arith.addf %38, %39 : vector<24x2xf32>
    %cst_21 = arith.constant dense<0.000000e+00> : vector<24xf32>
    %41 = vector.multi_reduction <add>, %40, %cst_21 [1] : vector<24x2xf32> to vector<24xf32>
    %42 = vector.shape_cast %41 : vector<24xf32> to vector<24x1xf32>
    %43 = arith.mulf %40, %40 : vector<24x2xf32>
    %cst_22 = arith.constant dense<0.000000e+00> : vector<24xf32>
    %44 = vector.multi_reduction <add>, %43, %cst_22 [1] : vector<24x2xf32> to vector<24xf32>
    %45 = vector.shape_cast %44 : vector<24xf32> to vector<24x1xf32>
    %46 = arith.addf %34, %42 : vector<24x1xf32>
    %47 = arith.addf %35, %45 : vector<24x1xf32>
    %cst_23 = arith.constant 1.250000e-01 : f32
    %48 = vector.broadcast %cst_23 : f32 to vector<24x1xf32>
    %49 = arith.mulf %46, %48 : vector<24x1xf32>
    %cst_24 = arith.constant 1.250000e-01 : f32
    %50 = vector.broadcast %cst_24 : f32 to vector<24x1xf32>
    %51 = arith.mulf %47, %50 : vector<24x1xf32>
    %52 = arith.mulf %49, %49 : vector<24x1xf32>
    %53 = arith.subf %51, %52 : vector<24x1xf32>
    %cst_25 = arith.constant 0.000000e+00 : f32
    %54 = vector.broadcast %cst_25 : f32 to vector<24x1xf32>
    %55 = arith.maximumf %53, %54 : vector<24x1xf32>
    %cst_26 = arith.constant 9.99999974E-6 : f32
    %56 = vector.broadcast %cst_26 : f32 to vector<24x1xf32>
    %57 = arith.addf %55, %56 : vector<24x1xf32>
    %58 = math.rsqrt %57 : vector<24x1xf32>
    %c0_27 = arith.constant 0 : index
    %c0_28 = arith.constant 0 : index
    %59 = vector.load %arg3[%c0_27, %c0_28] : memref<24x1xf32, #tpu.memory_space<vmem>>, vector<24x1xf32>
    %60 = arith.mulf %58, %59 : vector<24x1xf32>
    %c0_29 = arith.constant 0 : index
    %c0_30 = arith.constant 0 : index
    %61 = vector.load %arg4[%c0_29, %c0_30] : memref<24x1xf32, #tpu.memory_space<vmem>>, vector<24x1xf32>
    %62 = arith.mulf %49, %60 : vector<24x1xf32>
    %63 = arith.subf %61, %62 : vector<24x1xf32>
    %64 = vector.broadcast %60 : vector<24x1xf32> to vector<24x2xf32>
    %65 = arith.mulf %6, %64 : vector<24x2xf32>
    %66 = vector.broadcast %63 : vector<24x1xf32> to vector<24x2xf32>
    %67 = arith.addf %65, %66 : vector<24x2xf32>
    %cst_31 = arith.constant 0.000000e+00 : f32
    %68 = vector.broadcast %cst_31 : f32 to vector<24x2xf32>
    %69 = arith.maximumf %67, %68 : vector<24x2xf32>
    %70 = vector.broadcast %60 : vector<24x1xf32> to vector<24x2xf32>
    %71 = arith.mulf %16, %70 : vector<24x2xf32>
    %72 = vector.broadcast %63 : vector<24x1xf32> to vector<24x2xf32>
    %73 = arith.addf %71, %72 : vector<24x2xf32>
    %cst_32 = arith.constant 0.000000e+00 : f32
    %74 = vector.broadcast %cst_32 : f32 to vector<24x2xf32>
    %75 = arith.maximumf %73, %74 : vector<24x2xf32>
    %76 = arith.maximumf %69, %75 : vector<24x2xf32>
    %77 = vector.broadcast %60 : vector<24x1xf32> to vector<24x2xf32>
    %78 = arith.mulf %28, %77 : vector<24x2xf32>
    %79 = vector.broadcast %63 : vector<24x1xf32> to vector<24x2xf32>
    %80 = arith.addf %78, %79 : vector<24x2xf32>
    %cst_33 = arith.constant 0.000000e+00 : f32
    %81 = vector.broadcast %cst_33 : f32 to vector<24x2xf32>
    %82 = arith.maximumf %80, %81 : vector<24x2xf32>
    %83 = arith.maximumf %76, %82 : vector<24x2xf32>
    %84 = vector.broadcast %60 : vector<24x1xf32> to vector<24x2xf32>
    %85 = arith.mulf %40, %84 : vector<24x2xf32>
    %86 = vector.broadcast %63 : vector<24x1xf32> to vector<24x2xf32>
    %87 = arith.addf %85, %86 : vector<24x2xf32>
    %cst_34 = arith.constant 0.000000e+00 : f32
    %88 = vector.broadcast %cst_34 : f32 to vector<24x2xf32>
    %89 = arith.maximumf %87, %88 : vector<24x2xf32>
    %90 = arith.maximumf %83, %89 : vector<24x2xf32>
    %c0_35 = arith.constant 0 : index
    %c0_36 = arith.constant 0 : index
    %91 = vector.load %arg5[%c0_35, %c0_36] : memref<24x1xf32, #tpu.memory_space<vmem>>, vector<24x1xf32>
    %92 = vector.broadcast %91 : vector<24x1xf32> to vector<24x2xf32>
    %93 = arith.mulf %92, %90 : vector<24x2xf32>
    %cst_37 = arith.constant dense<0.000000e+00> : vector<2xf32>
    %94 = vector.multi_reduction <add>, %93, %cst_37 [0] : vector<24x2xf32> to vector<2xf32>
    %95 = vector.shape_cast %94 : vector<2xf32> to vector<1x2xf32>
    %c0_38 = arith.constant 0 : index
    %c0_39 = arith.constant 0 : index
    %96 = vector.load %arg6[%c0_38, %c0_39] : memref<1x1xf32, #tpu.memory_space<vmem>>, vector<1x1xf32>
    %97 = vector.broadcast %96 : vector<1x1xf32> to vector<1x2xf32>
    %98 = arith.addf %95, %97 : vector<1x2xf32>
    %cst_40 = arith.constant 0.000000e+00 : f32
    %99 = vector.broadcast %cst_40 : f32 to vector<1x2xf32>
    %100 = arith.subf %99, %98 : vector<1x2xf32>
    %101 = math.exp %100 : vector<1x2xf32>
    %cst_41 = arith.constant 1.000000e+00 : f32
    %102 = vector.broadcast %cst_41 : f32 to vector<1x2xf32>
    %103 = arith.addf %102, %101 : vector<1x2xf32>
    %cst_42 = arith.constant 1.000000e+00 : f32
    %104 = vector.broadcast %cst_42 : f32 to vector<1x2xf32>
    %105 = arith.divf %104, %103 : vector<1x2xf32>
    %c0_43 = arith.constant 0 : index
    %c0_44 = arith.constant 0 : index
    %106 = vector.load %arg7[%c0_43, %c0_44] : memref<1x2xf32, #tpu.memory_space<vmem>>, vector<1x2xf32>
    tpu.vector_store %arg7[%c0_43, %c0_44], %105 {strides = array<i32>} : memref<1x2xf32, #tpu.memory_space<vmem>>, vector<1x2xf32>,
    return
  }
}

</mosaic_0001>

<llo_original>
// kernel: discriminator_forward.3
$region0: #{discriminator_forward.3}
  #allocation0 [shape = 'u32[]', space=smem, size = 0x4, offset = 0x4, fixed_abs, tag = 'smem constant byte address 0x4 - core index']
  #allocation1 [shape = 'u32[72,128]{1,0:T(1,128)}', space=vmem, size = 0x9000, scoped, tag = 'internal scratch']
  %s0 = inlined_call_operand.vmem [shape: bf16[9,75,392], index: 0, kind: input, shape index: {}]
  %s1 = inlined_call_operand.vmem [shape: bf16[6,75], index: 1, kind: input, shape index: {}]
  %s2 = inlined_call_operand.vmem [shape: f32[6,1], index: 2, kind: input, shape index: {}]
  %s3 = inlined_call_operand.vmem [shape: f32[6,1], index: 3, kind: input, shape index: {}]
  %s4 = inlined_call_operand.vmem [shape: f32[6,1], index: 4, kind: input, shape index: {}]
  %s5 = inlined_call_operand.vmem [shape: f32[6,392], index: 5, kind: output, shape index: {}]
  %s6 = sld [smem:[#allocation0]]
  $region30: #{discriminator_forward.3} parent=0
    _
  %s8 = ssub.s32 1, %s6
  %s9 = scalar_select 0, %s8, %s6
  // Predicated region
  $region2: #{discriminator_forward.3} parent=0 // pred_check
    _
  $region3: #{discriminator_forward.3} parent=0 // pred_check_branch
    %11 = sbr.rel (0) target = $region5
  $region4: #{discriminator_forward.3} parent=0 // pred_region
    _
  $region5: #{discriminator_forward.3} parent=0 // pred_fallthru
    _
  // Predicated region
  $region6: #{discriminator_forward.3} parent=0 // pred_check
    _
  $region7: #{discriminator_forward.3} parent=0 // pred_check_branch
    %13 = sbr.rel (0) target = $region9
  $region8: #{discriminator_forward.3} parent=0 // pred_region
    _
  $region9: #{discriminator_forward.3} parent=0 // pred_fallthru
    _
  // Predicated region
  $region10: #{discriminator_forward.3} parent=0 // pred_check
    _
  $region11: #{discriminator_forward.3} parent=0 // pred_check_branch
    %15 = sbr.rel (0) target = $region13
  $region12: #{discriminator_forward.3} parent=0 // pred_region
    _
  $region13: #{discriminator_forward.3} parent=0 // pred_fallthru
    _
  // Predicated region
  $region14: #{discriminator_forward.3} parent=0 // pred_check
    _
  $region15: #{discriminator_forward.3} parent=0 // pred_check_branch
    %17 = sbr.rel (0) target = $region17
  $region16: #{discriminator_forward.3} parent=0 // pred_region
    _
  $region17: #{discriminator_forward.3} parent=0 // pred_fallthru
    _
  // Predicated region
  $region18: #{discriminator_forward.3} parent=0 // pred_check
    _
  $region19: #{discriminator_forward.3} parent=0 // pred_check_branch
    %19 = sbr.rel (0) target = $region21
  $region20: #{discriminator_forward.3} parent=0 // pred_region
    _
  $region21: #{discriminator_forward.3} parent=0 // pred_fallthru
    _
  %v21 = vld [vmem:[%s1] sm:$0x7]
  %v22 = vld [vmem:[%s2] sm:$0x3f]
  %v23 = vld [vmem:[%s0] sm:$0xff]
  %v24 = vld [vmem:[%s0 + $0x8] sm:$0xff]
  %v25 = vld [vmem:[%s0 + $0x10] sm:$0xff]
  %v26 = vld [vmem:[%s0 + $0x18] sm:$0xff]
  %v27 = vld [vmem:[%s0 + $0x20] sm:$0xff]
  %v28 = vld [vmem:[%s0 + $0x28] sm:$0xff]
  %v29 = vld [vmem:[%s0 + $0x30] sm:$0xff]
  %v30 = vld [vmem:[%s0 + $0x38] sm:$0xff]
  %v31 = vld [vmem:[%s0 + $0x40] sm:$0xff]
  %v32 = vld [vmem:[%s0 + $0x48] sm:$0xff]
  %v33 = vld [vmem:[%s0 + $0x50] sm:$0xff]
  %v34 = vld [vmem:[%s0 + $0x58] sm:$0xff]
  %v35 = vld [vmem:[%s0 + $0x60] sm:$0xff]
  %v36 = vld [vmem:[%s0 + $0x68] sm:$0xff]
  %v37 = vld [vmem:[%s0 + $0x70] sm:$0xff]
  %v38 = vld [vmem:[%s0 + $0x78] sm:$0xff]
  %v39 = vld [vmem:[%s0 + $0x80] sm:$0xff]
  %v40 = vld [vmem:[%s0 + $0x88] sm:$0xff]
  %v41 = vld [vmem:[%s0 + $0x90] sm:$0x33]
  %v42 = vld [vmem:[%s0 + $0x98] sm:$0x33]
  %44 = vset.pattern.permute.xlu0 0
  %45 = vperm.xlu0 %44, %v22
  %v46 = vpop.permute.xlu0 %45
  %v68 = vunpack.c.l.b16 %v23
  %v69 = vunpack.c.h.b16 %v23
  %v70 = vunpack.c.l.b16 %v24
  %v71 = vunpack.c.h.b16 %v24
  %v72 = vunpack.c.l.b16 %v25
  %v73 = vunpack.c.h.b16 %v25
  %v74 = vunpack.c.l.b16 %v26
  %v75 = vunpack.c.h.b16 %v26
  %v76 = vunpack.c.l.b16 %v27
  %v77 = vunpack.c.h.b16 %v27
  %v78 = vunpack.c.l.b16 %v28
  %v79 = vunpack.c.h.b16 %v28
  %v80 = vunpack.c.l.b16 %v29
  %v81 = vunpack.c.h.b16 %v29
  %v82 = vunpack.c.l.b16 %v30
  %v83 = vunpack.c.h.b16 %v30
  %v84 = vunpack.c.l.b16 %v31
  %v85 = vunpack.c.h.b16 %v31
  %v86 = vunpack.c.l.b16 %v32
  %v87 = vunpack.c.h.b16 %v32
  %v88 = vunpack.c.l.b16 %v33
  %v89 = vunpack.c.h.b16 %v33
  %v90 = vunpack.c.l.b16 %v34
  %v91 = vunpack.c.h.b16 %v34
  %v92 = vunpack.c.l.b16 %v35
  %v93 = vunpack.c.h.b16 %v35
  %v94 = vunpack.c.l.b16 %v36
  %v95 = vunpack.c.h.b16 %v36
  %v96 = vunpack.c.l.b16 %v37
  %v97 = vunpack.c.h.b16 %v37
  %v98 = vunpack.c.l.b16 %v38
  %v99 = vunpack.c.h.b16 %v38
  %v100 = vunpack.c.l.b16 %v39
  %v101 = vunpack.c.h.b16 %v39
  %v102 = vunpack.c.l.b16 %v40
  %v103 = vunpack.c.h.b16 %v40
  %v104 = vunpack.c.l.b16 %v41
  %v105 = vunpack.c.h.b16 %v41
  %v106 = vunpack.c.l.b16 %v42
  %v107 = vunpack.c.h.b16 %v42
  %v108 = vpack.c.b16 %v72, %v68
  %v109 = vpack.c.b16 %v73, %v69
  %v110 = vpack.c.b16 %v74, %v70
  %v111 = vpack.c.b16 %v75, %v71
  %v112 = vpack.c.b16 %v80, %v76
  %v113 = vpack.c.b16 %v81, %v77
  %v114 = vpack.c.b16 %v82, %v78
  %v115 = vpack.c.b16 %v83, %v79
  %v116 = vpack.c.b16 %v88, %v84
  %v117 = vpack.c.b16 %v89, %v85
  %v118 = vpack.c.b16 %v90, %v86
  %v119 = vpack.c.b16 %v91, %v87
  %v120 = vpack.c.b16 %v96, %v92
  %v121 = vpack.c.b16 %v97, %v93
  %v122 = vpack.c.b16 %v98, %v94
  %v123 = vpack.c.b16 %v99, %v95
  %v124 = vpack.c.b16 %v104, %v100
  %v125 = vpack.c.b16 %v105, %v101
  %v126 = vpack.c.b16 %v106, %v102
  %v127 = vpack.c.b16 %v107, %v103
  %vm144 = vcmask 613376
  %v146 = vsel %vm144, %v21, 0
  %vm148 = vcmask 1044480
  %vm149 = vcmask 1045504
  %v150 = vsel %vm148, 4294967295, 65535
  %v151 = vsel %vm149, %v150, 0
  %v153 = vand.u32 %v124, %v151
  %v156 = vand.u32 %v125, %v151
  %v159 = vand.u32 %v126, %v151
  %v162 = vand.u32 %v127, %v151
  %164 = vmatpush.bf16.msra.mxu0 0
  %165 = vmatpush.bf16.msra.mxu0 0
  %166 = vmatpush.bf16.msra.mxu0 0
  %167 = vmatpush.bf16.msra.mxu0 %v153
  %168 = vmatpush.bf16.msra.mxu0 %v120
  %169 = vmatpush.bf16.msra.mxu0 %v116
  %170 = vmatpush.bf16.msra.mxu0 %v112
  %171 = vmatpush.bf16.msra.mxu0 %v108
  %172 = vmatmul.bf16.gmra.mxu0 %v146
  %v173 = vpop.f32.mrf.mxu0
  %v174 = vadd.f32 %v46, %v173
  %v175 = vpop.f32.mrf.mxu0
  %176 = vdwg.mxu0
  %177 = vmatpush.bf16.msra.mxu0 0
  %178 = vmatpush.bf16.msra.mxu0 0
  %179 = vmatpush.bf16.msra.mxu0 0
  %180 = vmatpush.bf16.msra.mxu0 %v156
  %181 = vmatpush.bf16.msra.mxu0 %v121
  %182 = vmatpush.bf16.msra.mxu0 %v117
  %183 = vmatpush.bf16.msra.mxu0 %v113
  %184 = vmatpush.bf16.msra.mxu0 %v109
  %185 = vmatmul.bf16.gmra.mxu0 %v146
  %v186 = vpop.f32.mrf.mxu0
  %v187 = vadd.f32 %v46, %v186
  %v188 = vpop.f32.mrf.mxu0
  %189 = vdwg.mxu0
  %190 = vmatpush.bf16.msra.mxu0 0
  %191 = vmatpush.bf16.msra.mxu0 0
  %192 = vmatpush.bf16.msra.mxu0 0
  %193 = vmatpush.bf16.msra.mxu0 %v159
  %194 = vmatpush.bf16.msra.mxu0 %v122
  %195 = vmatpush.bf16.msra.mxu0 %v118
  %196 = vmatpush.bf16.msra.mxu0 %v114
  %197 = vmatpush.bf16.msra.mxu0 %v110
  %198 = vmatmul.bf16.gmra.mxu0 %v146
  %v199 = vpop.f32.mrf.mxu0
  %v200 = vadd.f32 %v46, %v199
  %v201 = vpop.f32.mrf.mxu0
  %202 = vdwg.mxu0
  %203 = vmatpush.bf16.msra.mxu0 0
  %204 = vmatpush.bf16.msra.mxu0 0
  %205 = vmatpush.bf16.msra.mxu0 0
  %206 = vmatpush.bf16.msra.mxu0 %v162
  %207 = vmatpush.bf16.msra.mxu0 %v123
  %208 = vmatpush.bf16.msra.mxu0 %v119
  %209 = vmatpush.bf16.msra.mxu0 %v115
  %210 = vmatpush.bf16.msra.mxu0 %v111
  %211 = vmatmul.bf16.gmra.mxu0 %v146
  %v212 = vpop.f32.mrf.mxu0
  %v213 = vadd.f32 %v46, %v212
  %v214 = vpop.f32.mrf.mxu0
  %215 = vdwg.mxu0
  %v216 = vsel %vm149, %v174, 0.0
  %v217 = vsel %vm149, %v187, 0.0
  %v218 = vadd.f32 %v216, %v217
  %v219 = vsel %vm149, %v200, 0.0
  %v220 = vadd.f32 %v218, %v219
  %vm221 = vcmask 62464
  %v222 = vsel %vm221, %v213, 0.0
  %v223 = vadd.f32 %v220, %v222
  %224 = vadd.xlane.f32.xlu0 %v223
  %v225 = vpop.xlane.xlu0 %224
  %v226 = vmul.f32 %v174, %v174
  %v227 = vmul.f32 %v187, %v187
  %v228 = vmul.f32 %v200, %v200
  %v229 = vmul.f32 %v213, %v213
  %v230 = vsel %vm149, %v226, 0.0
  %v231 = vsel %vm149, %v227, 0.0
  %v232 = vadd.f32 %v230, %v231
  %v233 = vsel %vm149, %v228, 0.0
  %v234 = vadd.f32 %v232, %v233
  %v235 = vsel %vm221, %v229, 0.0
  %v236 = vadd.f32 %v234, %v235
  %237 = vadd.xlane.f32.xlu0 %v236
  %v238 = vpop.xlane.xlu0 %237
  %s239 = scalar_lea.vmem %s0, 160
  %v240 = vld [vmem:[%s239] sm:$0xff]
  %v241 = vld [vmem:[%s239 + $0x8] sm:$0xff]
  %v242 = vld [vmem:[%s239 + $0x10] sm:$0xff]
  %v243 = vld [vmem:[%s239 + $0x18] sm:$0xff]
  %v244 = vld [vmem:[%s239 + $0x20] sm:$0xff]
  %v245 = vld [vmem:[%s239 + $0x28] sm:$0xff]
  %v246 = vld [vmem:[%s239 + $0x30] sm:$0xff]
  %v247 = vld [vmem:[%s239 + $0x38] sm:$0xff]
  %v248 = vld [vmem:[%s239 + $0x40] sm:$0xff]
  %v249 = vld [vmem:[%s239 + $0x48] sm:$0xff]
  %v250 = vld [vmem:[%s239 + $0x50] sm:$0xff]
  %v251 = vld [vmem:[%s239 + $0x58] sm:$0xff]
  %v252 = vld [vmem:[%s239 + $0x60] sm:$0xff]
  %v253 = vld [vmem:[%s239 + $0x68] sm:$0xff]
  %v254 = vld [vmem:[%s239 + $0x70] sm:$0xff]
  %v255 = vld [vmem:[%s239 + $0x78] sm:$0xff]
  %v256 = vld [vmem:[%s239 + $0x80] sm:$0xff]
  %v257 = vld [vmem:[%s239 + $0x88] sm:$0xff]
  %v258 = vld [vmem:[%s239 + $0x90] sm:$0x33]
  %v259 = vld [vmem:[%s239 + $0x98] sm:$0x33]
  %v280 = vunpack.c.l.b16 %v240
  %v281 = vunpack.c.h.b16 %v240
  %v282 = vunpack.c.l.b16 %v241
  %v283 = vunpack.c.h.b16 %v241
  %v284 = vunpack.c.l.b16 %v242
  %v285 = vunpack.c.h.b16 %v242
  %v286 = vunpack.c.l.b16 %v243
  %v287 = vunpack.c.h.b16 %v243
  %v288 = vunpack.c.l.b16 %v244
  %v289 = vunpack.c.h.b16 %v244
  %v290 = vunpack.c.l.b16 %v245
  %v291 = vunpack.c.h.b16 %v245
  %v292 = vunpack.c.l.b16 %v246
  %v293 = vunpack.c.h.b16 %v246
  %v294 = vunpack.c.l.b16 %v247
  %v295 = vunpack.c.h.b16 %v247
  %v296 = vunpack.c.l.b16 %v248
  %v297 = vunpack.c.h.b16 %v248
  %v298 = vunpack.c.l.b16 %v249
  %v299 = vunpack.c.h.b16 %v249
  %v300 = vunpack.c.l.b16 %v250
  %v301 = vunpack.c.h.b16 %v250
  %v302 = vunpack.c.l.b16 %v251
  %v303 = vunpack.c.h.b16 %v251
  %v304 = vunpack.c.l.b16 %v252
  %v305 = vunpack.c.h.b16 %v252
  %v306 = vunpack.c.l.b16 %v253
  %v307 = vunpack.c.h.b16 %v253
  %v308 = vunpack.c.l.b16 %v254
  %v309 = vunpack.c.h.b16 %v254
  %v310 = vunpack.c.l.b16 %v255
  %v311 = vunpack.c.h.b16 %v255
  %v312 = vunpack.c.l.b16 %v256
  %v313 = vunpack.c.h.b16 %v256
  %v314 = vunpack.c.l.b16 %v257
  %v315 = vunpack.c.h.b16 %v257
  %v316 = vunpack.c.l.b16 %v258
  %v317 = vunpack.c.h.b16 %v258
  %v318 = vunpack.c.l.b16 %v259
  %v319 = vunpack.c.h.b16 %v259
  %v320 = vpack.c.b16 %v284, %v280
  %v321 = vpack.c.b16 %v285, %v281
  %v322 = vpack.c.b16 %v286, %v282
  %v323 = vpack.c.b16 %v287, %v283
  %v324 = vpack.c.b16 %v292, %v288
  %v325 = vpack.c.b16 %v293, %v289
  %v326 = vpack.c.b16 %v294, %v290
  %v327 = vpack.c.b16 %v295, %v291
  %v328 = vpack.c.b16 %v300, %v296
  %v329 = vpack.c.b16 %v301, %v297
  %v330 = vpack.c.b16 %v302, %v298
  %v331 = vpack.c.b16 %v303, %v299
  %v332 = vpack.c.b16 %v308, %v304
  %v333 = vpack.c.b16 %v309, %v305
  %v334 = vpack.c.b16 %v310, %v306
  %v335 = vpack.c.b16 %v311, %v307
  %v336 = vpack.c.b16 %v316, %v312
  %v337 = vpack.c.b16 %v317, %v313
  %v338 = vpack.c.b16 %v318, %v314
  %v339 = vpack.c.b16 %v319, %v315
  %v357 = vand.u32 %v336, %v151
  %v360 = vand.u32 %v337, %v151
  %v363 = vand.u32 %v338, %v151
  %v366 = vand.u32 %v339, %v151
  %368 = vmatpush.bf16.msra.mxu0 0
  %369 = vmatpush.bf16.msra.mxu0 0
  %370 = vmatpush.bf16.msra.mxu0 0
  %371 = vmatpush.bf16.msra.mxu0 %v357
  %372 = vmatpush.bf16.msra.mxu0 %v332
  %373 = vmatpush.bf16.msra.mxu0 %v328
  %374 = vmatpush.bf16.msra.mxu0 %v324
  %375 = vmatpush.bf16.msra.mxu0 %v320
  %376 = vmatmul.bf16.gmra.mxu0 %v146
  %v377 = vpop.f32.mrf.mxu0
  %v378 = vadd.f32 %v46, %v377
  %v379 = vpop.f32.mrf.mxu0
  %380 = vdwg.mxu0
  %381 = vmatpush.bf16.msra.mxu0 0
  %382 = vmatpush.bf16.msra.mxu0 0
  %383 = vmatpush.bf16.msra.mxu0 0
  %384 = vmatpush.bf16.msra.mxu0 %v360
  %385 = vmatpush.bf16.msra.mxu0 %v333
  %386 = vmatpush.bf16.msra.mxu0 %v329
  %387 = vmatpush.bf16.msra.mxu0 %v325
  %388 = vmatpush.bf16.msra.mxu0 %v321
  %389 = vmatmul.bf16.gmra.mxu0 %v146
  %v390 = vpop.f32.mrf.mxu0
  %v391 = vadd.f32 %v46, %v390
  %v392 = vpop.f32.mrf.mxu0
  %393 = vdwg.mxu0
  %394 = vmatpush.bf16.msra.mxu0 0
  %395 = vmatpush.bf16.msra.mxu0 0
  %396 = vmatpush.bf16.msra.mxu0 0
  %397 = vmatpush.bf16.msra.mxu0 %v363
  %398 = vmatpush.bf16.msra.mxu0 %v334
  %399 = vmatpush.bf16.msra.mxu0 %v330
  %400 = vmatpush.bf16.msra.mxu0 %v326
  %401 = vmatpush.bf16.msra.mxu0 %v322
  %402 = vmatmul.bf16.gmra.mxu0 %v146
  %v403 = vpop.f32.mrf.mxu0
  %v404 = vadd.f32 %v46, %v403
  %v405 = vpop.f32.mrf.mxu0
  %406 = vdwg.mxu0
  %407 = vmatpush.bf16.msra.mxu0 0
  %408 = vmatpush.bf16.msra.mxu0 0
  %409 = vmatpush.bf16.msra.mxu0 0
  %410 = vmatpush.bf16.msra.mxu0 %v366
  %411 = vmatpush.bf16.msra.mxu0 %v335
  %412 = vmatpush.bf16.msra.mxu0 %v331
  %413 = vmatpush.bf16.msra.mxu0 %v327
  %414 = vmatpush.bf16.msra.mxu0 %v323
  %415 = vmatmul.bf16.gmra.mxu0 %v146
  %v416 = vpop.f32.mrf.mxu0
  %v417 = vadd.f32 %v46, %v416
  %v418 = vpop.f32.mrf.mxu0
  %419 = vdwg.mxu0
  %v420 = vsel %vm149, %v378, 0.0
  %v421 = vsel %vm149, %v391, 0.0
  %v422 = vadd.f32 %v420, %v421
  %v423 = vsel %vm149, %v404, 0.0
  %v424 = vadd.f32 %v422, %v423
  %v425 = vsel %vm221, %v417, 0.0
  %v426 = vadd.f32 %v424, %v425
  %427 = vadd.xlane.f32.xlu0 %v426
  %v428 = vpop.xlane.xlu0 %427
  %v429 = vmul.f32 %v378, %v378
  %v430 = vmul.f32 %v391, %v391
  %v431 = vmul.f32 %v404, %v404
  %v432 = vmul.f32 %v417, %v417
  %v433 = vsel %vm149, %v429, 0.0
  %v434 = vsel %vm149, %v430, 0.0
  %v435 = vadd.f32 %v433, %v434
  %v436 = vsel %vm149, %v431, 0.0
  %v437 = vadd.f32 %v435, %v436
  %v438 = vsel %vm221, %v432, 0.0
  %v439 = vadd.f32 %v437, %v438
  %440 = vadd.xlane.f32.xlu0 %v439
  %v441 = vpop.xlane.xlu0 %440
  %v442 = vadd.f32 %v225, %v428
  %v443 = vadd.f32 %v238, %v441
  %s444 = scalar_lea.vmem %s0, 320
  %v445 = vld [vmem:[%s444] sm:$0xff]
  %v446 = vld [vmem:[%s444 + $0x8] sm:$0xff]
  %v447 = vld [vmem:[%s444 + $0x10] sm:$0xff]
  %v448 = vld [vmem:[%s444 + $0x18] sm:$0xff]
  %v449 = vld [vmem:[%s444 + $0x20] sm:$0xff]
  %v450 = vld [vmem:[%s444 + $0x28] sm:$0xff]
  %v451 = vld [vmem:[%s444 + $0x30] sm:$0xff]
  %v452 = vld [vmem:[%s444 + $0x38] sm:$0xff]
  %v453 = vld [vmem:[%s444 + $0x40] sm:$0xff]
  %v454 = vld [vmem:[%s444 + $0x48] sm:$0xff]
  %v455 = vld [vmem:[%s444 + $0x50] sm:$0xff]
  %v456 = vld [vmem:[%s444 + $0x58] sm:$0xff]
  %v457 = vld [vmem:[%s444 + $0x60] sm:$0xff]
  %v458 = vld [vmem:[%s444 + $0x68] sm:$0xff]
  %v459 = vld [vmem:[%s444 + $0x70] sm:$0xff]
  %v460 = vld [vmem:[%s444 + $0x78] sm:$0xff]
  %v461 = vld [vmem:[%s444 + $0x80] sm:$0xff]
  %v462 = vld [vmem:[%s444 + $0x88] sm:$0xff]
  %v463 = vld [vmem:[%s444 + $0x90] sm:$0x33]
  %v464 = vld [vmem:[%s444 + $0x98] sm:$0x33]
  %v485 = vunpack.c.l.b16 %v445
  %v486 = vunpack.c.h.b16 %v445
  %v487 = vunpack.c.l.b16 %v446
  %v488 = vunpack.c.h.b16 %v446
  %v489 = vunpack.c.l.b16 %v447
  %v490 = vunpack.c.h.b16 %v447
  %v491 = vunpack.c.l.b16 %v448
  %v492 = vunpack.c.h.b16 %v448
  %v493 = vunpack.c.l.b16 %v449
  %v494 = vunpack.c.h.b16 %v449
  %v495 = vunpack.c.l.b16 %v450
  %v496 = vunpack.c.h.b16 %v450
  %v497 = vunpack.c.l.b16 %v451
  %v498 = vunpack.c.h.b16 %v451
  %v499 = vunpack.c.l.b16 %v452
  %v500 = vunpack.c.h.b16 %v452
  %v501 = vunpack.c.l.b16 %v453
  %v502 = vunpack.c.h.b16 %v453
  %v503 = vunpack.c.l.b16 %v454
  %v504 = vunpack.c.h.b16 %v454
  %v505 = vunpack.c.l.b16 %v455
  %v506 = vunpack.c.h.b16 %v455
  %v507 = vunpack.c.l.b16 %v456
  %v508 = vunpack.c.h.b16 %v456
  %v509 = vunpack.c.l.b16 %v457
  %v510 = vunpack.c.h.b16 %v457
  %v511 = vunpack.c.l.b16 %v458
  %v512 = vunpack.c.h.b16 %v458
  %v513 = vunpack.c.l.b16 %v459
  %v514 = vunpack.c.h.b16 %v459
  %v515 = vunpack.c.l.b16 %v460
  %v516 = vunpack.c.h.b16 %v460
  %v517 = vunpack.c.l.b16 %v461
  %v518 = vunpack.c.h.b16 %v461
  %v519 = vunpack.c.l.b16 %v462
  %v520 = vunpack.c.h.b16 %v462
  %v521 = vunpack.c.l.b16 %v463
  %v522 = vunpack.c.h.b16 %v463
  %v523 = vunpack.c.l.b16 %v464
  %v524 = vunpack.c.h.b16 %v464
  %v525 = vpack.c.b16 %v489, %v485
  %v526 = vpack.c.b16 %v490, %v486
  %v527 = vpack.c.b16 %v491, %v487
  %v528 = vpack.c.b16 %v492, %v488
  %v529 = vpack.c.b16 %v497, %v493
  %v530 = vpack.c.b16 %v498, %v494
  %v531 = vpack.c.b16 %v499, %v495
  %v532 = vpack.c.b16 %v500, %v496
  %v533 = vpack.c.b16 %v505, %v501
  %v534 = vpack.c.b16 %v506, %v502
  %v535 = vpack.c.b16 %v507, %v503
  %v536 = vpack.c.b16 %v508, %v504
  %v537 = vpack.c.b16 %v513, %v509
  %v538 = vpack.c.b16 %v514, %v510
  %v539 = vpack.c.b16 %v515, %v511
  %v540 = vpack.c.b16 %v516, %v512
  %v541 = vpack.c.b16 %v521, %v517
  %v542 = vpack.c.b16 %v522, %v518
  %v543 = vpack.c.b16 %v523, %v519
  %v544 = vpack.c.b16 %v524, %v520
  %v562 = vand.u32 %v541, %v151
  %v565 = vand.u32 %v542, %v151
  %v568 = vand.u32 %v543, %v151
  %v571 = vand.u32 %v544, %v151
  %573 = vmatpush.bf16.msra.mxu0 0
  %574 = vmatpush.bf16.msra.mxu0 0
  %575 = vmatpush.bf16.msra.mxu0 0
  %576 = vmatpush.bf16.msra.mxu0 %v562
  %577 = vmatpush.bf16.msra.mxu0 %v537
  %578 = vmatpush.bf16.msra.mxu0 %v533
  %579 = vmatpush.bf16.msra.mxu0 %v529
  %580 = vmatpush.bf16.msra.mxu0 %v525
  %581 = vmatmul.bf16.gmra.mxu0 %v146
  %v582 = vpop.f32.mrf.mxu0
  %v583 = vadd.f32 %v46, %v582
  %v584 = vpop.f32.mrf.mxu0
  %585 = vdwg.mxu0
  %586 = vmatpush.bf16.msra.mxu0 0
  %587 = vmatpush.bf16.msra.mxu0 0
  %588 = vmatpush.bf16.msra.mxu0 0
  %589 = vmatpush.bf16.msra.mxu0 %v565
  %590 = vmatpush.bf16.msra.mxu0 %v538
  %591 = vmatpush.bf16.msra.mxu0 %v534
  %592 = vmatpush.bf16.msra.mxu0 %v530
  %593 = vmatpush.bf16.msra.mxu0 %v526
  %594 = vmatmul.bf16.gmra.mxu0 %v146
  %v595 = vpop.f32.mrf.mxu0
  %v596 = vadd.f32 %v46, %v595
  %v597 = vpop.f32.mrf.mxu0
  %598 = vdwg.mxu0
  %599 = vmatpush.bf16.msra.mxu0 0
  %600 = vmatpush.bf16.msra.mxu0 0
  %601 = vmatpush.bf16.msra.mxu0 0
  %602 = vmatpush.bf16.msra.mxu0 %v568
  %603 = vmatpush.bf16.msra.mxu0 %v539
  %604 = vmatpush.bf16.msra.mxu0 %v535
  %605 = vmatpush.bf16.msra.mxu0 %v531
  %606 = vmatpush.bf16.msra.mxu0 %v527
  %607 = vmatmul.bf16.gmra.mxu0 %v146
  %v608 = vpop.f32.mrf.mxu0
  %v609 = vadd.f32 %v46, %v608
  %v610 = vpop.f32.mrf.mxu0
  %611 = vdwg.mxu0
  %612 = vmatpush.bf16.msra.mxu0 0
  %613 = vmatpush.bf16.msra.mxu0 0
  %614 = vmatpush.bf16.msra.mxu0 0
  %615 = vmatpush.bf16.msra.mxu0 %v571
  %616 = vmatpush.bf16.msra.mxu0 %v540
  %617 = vmatpush.bf16.msra.mxu0 %v536
  %618 = vmatpush.bf16.msra.mxu0 %v532
  %619 = vmatpush.bf16.msra.mxu0 %v528
  %620 = vmatmul.bf16.gmra.mxu0 %v146
  %v621 = vpop.f32.mrf.mxu0
  %v622 = vadd.f32 %v46, %v621
  %v623 = vpop.f32.mrf.mxu0
  %624 = vdwg.mxu0
  %v625 = vsel %vm149, %v583, 0.0
  %v626 = vsel %vm149, %v596, 0.0
  %v627 = vadd.f32 %v625, %v626
  %v628 = vsel %vm149, %v609, 0.0
  %v629 = vadd.f32 %v627, %v628
  %v630 = vsel %vm221, %v622, 0.0
  %v631 = vadd.f32 %v629, %v630
  %632 = vadd.xlane.f32.xlu0 %v631
  %v633 = vpop.xlane.xlu0 %632
  %v634 = vmul.f32 %v583, %v583
  %v635 = vmul.f32 %v596, %v596
  %v636 = vmul.f32 %v609, %v609
  %v637 = vmul.f32 %v622, %v622
  %v638 = vsel %vm149, %v634, 0.0
  %v639 = vsel %vm149, %v635, 0.0
  %v640 = vadd.f32 %v638, %v639
  %v641 = vsel %vm149, %v636, 0.0
  %v642 = vadd.f32 %v640, %v641
  %v643 = vsel %vm221, %v637, 0.0
  %v644 = vadd.f32 %v642, %v643
  %645 = vadd.xlane.f32.xlu0 %v644
  %v646 = vpop.xlane.xlu0 %645
  %v647 = vadd.f32 %v442, %v633
  %v648 = vadd.f32 %v443, %v646
  %s649 = scalar_lea.vmem %s0, 480
  %v650 = vld [vmem:[%s649] sm:$0xff]
  %v651 = vld [vmem:[%s649 + $0x8] sm:$0xff]
  %v652 = vld [vmem:[%s649 + $0x10] sm:$0xff]
  %v653 = vld [vmem:[%s649 + $0x18] sm:$0xff]
  %v654 = vld [vmem:[%s649 + $0x20] sm:$0xff]
  %v655 = vld [vmem:[%s649 + $0x28] sm:$0xff]
  %v656 = vld [vmem:[%s649 + $0x30] sm:$0xff]
  %v657 = vld [vmem:[%s649 + $0x38] sm:$0xff]
  %v658 = vld [vmem:[%s649 + $0x40] sm:$0xff]
  %v659 = vld [vmem:[%s649 + $0x48] sm:$0xff]
  %v660 = vld [vmem:[%s649 + $0x50] sm:$0xff]
  %v661 = vld [vmem:[%s649 + $0x58] sm:$0xff]
  %v662 = vld [vmem:[%s649 + $0x60] sm:$0xff]
  %v663 = vld [vmem:[%s649 + $0x68] sm:$0xff]
  %v664 = vld [vmem:[%s649 + $0x70] sm:$0xff]
  %v665 = vld [vmem:[%s649 + $0x78] sm:$0xff]
  %v666 = vld [vmem:[%s649 + $0x80] sm:$0xff]
  %v667 = vld [vmem:[%s649 + $0x88] sm:$0xff]
  %v668 = vld [vmem:[%s649 + $0x90] sm:$0x33]
  %v669 = vld [vmem:[%s649 + $0x98] sm:$0x33]
  %v690 = vunpack.c.l.b16 %v650
  %v691 = vunpack.c.h.b16 %v650
  %v692 = vunpack.c.l.b16 %v651
  %v693 = vunpack.c.h.b16 %v651
  %v694 = vunpack.c.l.b16 %v652
  %v695 = vunpack.c.h.b16 %v652
  %v696 = vunpack.c.l.b16 %v653
  %v697 = vunpack.c.h.b16 %v653
  %v698 = vunpack.c.l.b16 %v654
  %v699 = vunpack.c.h.b16 %v654
  %v700 = vunpack.c.l.b16 %v655
  %v701 = vunpack.c.h.b16 %v655
  %v702 = vunpack.c.l.b16 %v656
  %v703 = vunpack.c.h.b16 %v656
  %v704 = vunpack.c.l.b16 %v657
  %v705 = vunpack.c.h.b16 %v657
  %v706 = vunpack.c.l.b16 %v658
  %v707 = vunpack.c.h.b16 %v658
  %v708 = vunpack.c.l.b16 %v659
  %v709 = vunpack.c.h.b16 %v659
  %v710 = vunpack.c.l.b16 %v660
  %v711 = vunpack.c.h.b16 %v660
  %v712 = vunpack.c.l.b16 %v661
  %v713 = vunpack.c.h.b16 %v661
  %v714 = vunpack.c.l.b16 %v662
  %v715 = vunpack.c.h.b16 %v662
  %v716 = vunpack.c.l.b16 %v663
  %v717 = vunpack.c.h.b16 %v663
  %v718 = vunpack.c.l.b16 %v664
  %v719 = vunpack.c.h.b16 %v664
  %v720 = vunpack.c.l.b16 %v665
  %v721 = vunpack.c.h.b16 %v665
  %v722 = vunpack.c.l.b16 %v666
  %v723 = vunpack.c.h.b16 %v666
  %v724 = vunpack.c.l.b16 %v667
  %v725 = vunpack.c.h.b16 %v667
  %v726 = vunpack.c.l.b16 %v668
  %v727 = vunpack.c.h.b16 %v668
  %v728 = vunpack.c.l.b16 %v669
  %v729 = vunpack.c.h.b16 %v669
  %v730 = vpack.c.b16 %v694, %v690
  %v731 = vpack.c.b16 %v695, %v691
  %v732 = vpack.c.b16 %v696, %v692
  %v733 = vpack.c.b16 %v697, %v693
  %v734 = vpack.c.b16 %v702, %v698
  %v735 = vpack.c.b16 %v703, %v699
  %v736 = vpack.c.b16 %v704, %v700
  %v737 = vpack.c.b16 %v705, %v701
  %v738 = vpack.c.b16 %v710, %v706
  %v739 = vpack.c.b16 %v711, %v707
  %v740 = vpack.c.b16 %v712, %v708
  %v741 = vpack.c.b16 %v713, %v709
  %v742 = vpack.c.b16 %v718, %v714
  %v743 = vpack.c.b16 %v719, %v715
  %v744 = vpack.c.b16 %v720, %v716
  %v745 = vpack.c.b16 %v721, %v717
  %v746 = vpack.c.b16 %v726, %v722
  %v747 = vpack.c.b16 %v727, %v723
  %v748 = vpack.c.b16 %v728, %v724
  %v749 = vpack.c.b16 %v729, %v725
  %v767 = vand.u32 %v746, %v151
  %v770 = vand.u32 %v747, %v151
  %v773 = vand.u32 %v748, %v151
  %v776 = vand.u32 %v749, %v151
  %778 = vmatpush.bf16.msra.mxu0 0
  %779 = vmatpush.bf16.msra.mxu0 0
  %780 = vmatpush.bf16.msra.mxu0 0
  %781 = vmatpush.bf16.msra.mxu0 %v767
  %782 = vmatpush.bf16.msra.mxu0 %v742
  %783 = vmatpush.bf16.msra.mxu0 %v738
  %784 = vmatpush.bf16.msra.mxu0 %v734
  %785 = vmatpush.bf16.msra.mxu0 %v730
  %786 = vmatmul.bf16.gmra.mxu0 %v146
  %v787 = vpop.f32.mrf.mxu0
  %v788 = vadd.f32 %v46, %v787
  %v789 = vpop.f32.mrf.mxu0
  %790 = vdwg.mxu0
  %791 = vmatpush.bf16.msra.mxu0 0
  %792 = vmatpush.bf16.msra.mxu0 0
  %793 = vmatpush.bf16.msra.mxu0 0
  %794 = vmatpush.bf16.msra.mxu0 %v770
  %795 = vmatpush.bf16.msra.mxu0 %v743
  %796 = vmatpush.bf16.msra.mxu0 %v739
  %797 = vmatpush.bf16.msra.mxu0 %v735
  %798 = vmatpush.bf16.msra.mxu0 %v731
  %799 = vmatmul.bf16.gmra.mxu0 %v146
  %v800 = vpop.f32.mrf.mxu0
  %v801 = vadd.f32 %v46, %v800
  %v802 = vpop.f32.mrf.mxu0
  %803 = vdwg.mxu0
  %804 = vmatpush.bf16.msra.mxu0 0
  %805 = vmatpush.bf16.msra.mxu0 0
  %806 = vmatpush.bf16.msra.mxu0 0
  %807 = vmatpush.bf16.msra.mxu0 %v773
  %808 = vmatpush.bf16.msra.mxu0 %v744
  %809 = vmatpush.bf16.msra.mxu0 %v740
  %810 = vmatpush.bf16.msra.mxu0 %v736
  %811 = vmatpush.bf16.msra.mxu0 %v732
  %812 = vmatmul.bf16.gmra.mxu0 %v146
  %v813 = vpop.f32.mrf.mxu0
  %v814 = vadd.f32 %v46, %v813
  %v815 = vpop.f32.mrf.mxu0
  %816 = vdwg.mxu0
  %817 = vmatpush.bf16.msra.mxu0 0
  %818 = vmatpush.bf16.msra.mxu0 0
  %819 = vmatpush.bf16.msra.mxu0 0
  %820 = vmatpush.bf16.msra.mxu0 %v776
  %821 = vmatpush.bf16.msra.mxu0 %v745
  %822 = vmatpush.bf16.msra.mxu0 %v741
  %823 = vmatpush.bf16.msra.mxu0 %v737
  %824 = vmatpush.bf16.msra.mxu0 %v733
  %825 = vmatmul.bf16.gmra.mxu0 %v146
  %v826 = vpop.f32.mrf.mxu0
  %v827 = vadd.f32 %v46, %v826
  %v828 = vpop.f32.mrf.mxu0
  %829 = vdwg.mxu0
  %v830 = vsel %vm149, %v788, 0.0
  %v831 = vsel %vm149, %v801, 0.0
  %v832 = vadd.f32 %v830, %v831
  %v833 = vsel %vm149, %v814, 0.0
  %v834 = vadd.f32 %v832, %v833
  %v835 = vsel %vm221, %v827, 0.0
  %v836 = vadd.f32 %v834, %v835
  %837 = vadd.xlane.f32.xlu0 %v836
  %v838 = vpop.xlane.xlu0 %837
  %v839 = vmul.f32 %v788, %v788
  %v840 = vmul.f32 %v801, %v801
  %v841 = vmul.f32 %v814, %v814
  %v842 = vmul.f32 %v827, %v827
  %v843 = vsel %vm149, %v839, 0.0
  %v844 = vsel %vm149, %v840, 0.0
  %v845 = vadd.f32 %v843, %v844
  %v846 = vsel %vm149, %v841, 0.0
  %v847 = vadd.f32 %v845, %v846
  %v848 = vsel %vm221, %v842, 0.0
  %v849 = vadd.f32 %v847, %v848
  %850 = vadd.xlane.f32.xlu0 %v849
  %v851 = vpop.xlane.xlu0 %850
  %v852 = vadd.f32 %v647, %v838
  %v853 = vadd.f32 %v648, %v851
  %s854 = scalar_lea.vmem %s0, 640
  %v855 = vld [vmem:[%s854] sm:$0xff]
  %v856 = vld [vmem:[%s854 + $0x8] sm:$0xff]
  %v857 = vld [vmem:[%s854 + $0x10] sm:$0xff]
  %v858 = vld [vmem:[%s854 + $0x18] sm:$0xff]
  %v859 = vld [vmem:[%s854 + $0x20] sm:$0xff]
  %v860 = vld [vmem:[%s854 + $0x28] sm:$0xff]
  %v861 = vld [vmem:[%s854 + $0x30] sm:$0xff]
  %v862 = vld [vmem:[%s854 + $0x38] sm:$0xff]
  %v863 = vld [vmem:[%s854 + $0x40] sm:$0xff]
  %v864 = vld [vmem:[%s854 + $0x48] sm:$0xff]
  %v865 = vld [vmem:[%s854 + $0x50] sm:$0xff]
  %v866 = vld [vmem:[%s854 + $0x58] sm:$0xff]
  %v867 = vld [vmem:[%s854 + $0x60] sm:$0xff]
  %v868 = vld [vmem:[%s854 + $0x68] sm:$0xff]
  %v869 = vld [vmem:[%s854 + $0x70] sm:$0xff]
  %v870 = vld [vmem:[%s854 + $0x78] sm:$0xff]
  %v871 = vld [vmem:[%s854 + $0x80] sm:$0xff]
  %v872 = vld [vmem:[%s854 + $0x88] sm:$0xff]
  %v873 = vld [vmem:[%s854 + $0x90] sm:$0x33]
  %v874 = vld [vmem:[%s854 + $0x98] sm:$0x33]
  %v895 = vunpack.c.l.b16 %v855
  %v896 = vunpack.c.h.b16 %v855
  %v897 = vunpack.c.l.b16 %v856
  %v898 = vunpack.c.h.b16 %v856
  %v899 = vunpack.c.l.b16 %v857
  %v900 = vunpack.c.h.b16 %v857
  %v901 = vunpack.c.l.b16 %v858
  %v902 = vunpack.c.h.b16 %v858
  %v903 = vunpack.c.l.b16 %v859
  %v904 = vunpack.c.h.b16 %v859
  %v905 = vunpack.c.l.b16 %v860
  %v906 = vunpack.c.h.b16 %v860
  %v907 = vunpack.c.l.b16 %v861
  %v908 = vunpack.c.h.b16 %v861
  %v909 = vunpack.c.l.b16 %v862
  %v910 = vunpack.c.h.b16 %v862
  %v911 = vunpack.c.l.b16 %v863
  %v912 = vunpack.c.h.b16 %v863
  %v913 = vunpack.c.l.b16 %v864
  %v914 = vunpack.c.h.b16 %v864
  %v915 = vunpack.c.l.b16 %v865
  %v916 = vunpack.c.h.b16 %v865
  %v917 = vunpack.c.l.b16 %v866
  %v918 = vunpack.c.h.b16 %v866
  %v919 = vunpack.c.l.b16 %v867
  %v920 = vunpack.c.h.b16 %v867
  %v921 = vunpack.c.l.b16 %v868
  %v922 = vunpack.c.h.b16 %v868
  %v923 = vunpack.c.l.b16 %v869
  %v924 = vunpack.c.h.b16 %v869
  %v925 = vunpack.c.l.b16 %v870
  %v926 = vunpack.c.h.b16 %v870
  %v927 = vunpack.c.l.b16 %v871
  %v928 = vunpack.c.h.b16 %v871
  %v929 = vunpack.c.l.b16 %v872
  %v930 = vunpack.c.h.b16 %v872
  %v931 = vunpack.c.l.b16 %v873
  %v932 = vunpack.c.h.b16 %v873
  %v933 = vunpack.c.l.b16 %v874
  %v934 = vunpack.c.h.b16 %v874
  %v935 = vpack.c.b16 %v899, %v895
  %v936 = vpack.c.b16 %v900, %v896
  %v937 = vpack.c.b16 %v901, %v897
  %v938 = vpack.c.b16 %v902, %v898
  %v939 = vpack.c.b16 %v907, %v903
  %v940 = vpack.c.b16 %v908, %v904
  %v941 = vpack.c.b16 %v909, %v905
  %v942 = vpack.c.b16 %v910, %v906
  %v943 = vpack.c.b16 %v915, %v911
  %v944 = vpack.c.b16 %v916, %v912
  %v945 = vpack.c.b16 %v917, %v913
  %v946 = vpack.c.b16 %v918, %v914
  %v947 = vpack.c.b16 %v923, %v919
  %v948 = vpack.c.b16 %v924, %v920
  %v949 = vpack.c.b16 %v925, %v921
  %v950 = vpack.c.b16 %v926, %v922
  %v951 = vpack.c.b16 %v931, %v927
  %v952 = vpack.c.b16 %v932, %v928
  %v953 = vpack.c.b16 %v933, %v929
  %v954 = vpack.c.b16 %v934, %v930
  %v972 = vand.u32 %v951, %v151
  %v975 = vand.u32 %v952, %v151
  %v978 = vand.u32 %v953, %v151
  %v981 = vand.u32 %v954, %v151
  %983 = vmatpush.bf16.msra.mxu0 0
  %984 = vmatpush.bf16.msra.mxu0 0
  %985 = vmatpush.bf16.msra.mxu0 0
  %986 = vmatpush.bf16.msra.mxu0 %v972
  %987 = vmatpush.bf16.msra.mxu0 %v947
  %988 = vmatpush.bf16.msra.mxu0 %v943
  %989 = vmatpush.bf16.msra.mxu0 %v939
  %990 = vmatpush.bf16.msra.mxu0 %v935
  %991 = vmatmul.bf16.gmra.mxu0 %v146
  %v992 = vpop.f32.mrf.mxu0
  %v993 = vadd.f32 %v46, %v992
  %v994 = vpop.f32.mrf.mxu0
  %995 = vdwg.mxu0
  %996 = vmatpush.bf16.msra.mxu0 0
  %997 = vmatpush.bf16.msra.mxu0 0
  %998 = vmatpush.bf16.msra.mxu0 0
  %999 = vmatpush.bf16.msra.mxu0 %v975
  %1000 = vmatpush.bf16.msra.mxu0 %v948
  %1001 = vmatpush.bf16.msra.mxu0 %v944
  %1002 = vmatpush.bf16.msra.mxu0 %v940
  %1003 = vmatpush.bf16.msra.mxu0 %v936
  %1004 = vmatmul.bf16.gmra.mxu0 %v146
  %v1005 = vpop.f32.mrf.mxu0
  %v1006 = vadd.f32 %v46, %v1005
  %v1007 = vpop.f32.mrf.mxu0
  %1008 = vdwg.mxu0
  %1009 = vmatpush.bf16.msra.mxu0 0
  %1010 = vmatpush.bf16.msra.mxu0 0
  %1011 = vmatpush.bf16.msra.mxu0 0
  %1012 = vmatpush.bf16.msra.mxu0 %v978
  %1013 = vmatpush.bf16.msra.mxu0 %v949
  %1014 = vmatpush.bf16.msra.mxu0 %v945
  %1015 = vmatpush.bf16.msra.mxu0 %v941
  %1016 = vmatpush.bf16.msra.mxu0 %v937
  %1017 = vmatmul.bf16.gmra.mxu0 %v146
  %v1018 = vpop.f32.mrf.mxu0
  %v1019 = vadd.f32 %v46, %v1018
  %v1020 = vpop.f32.mrf.mxu0
  %1021 = vdwg.mxu0
  %1022 = vmatpush.bf16.msra.mxu0 0
  %1023 = vmatpush.bf16.msra.mxu0 0
  %1024 = vmatpush.bf16.msra.mxu0 0
  %1025 = vmatpush.bf16.msra.mxu0 %v981
  %1026 = vmatpush.bf16.msra.mxu0 %v950
  %1027 = vmatpush.bf16.msra.mxu0 %v946
  %1028 = vmatpush.bf16.msra.mxu0 %v942
  %1029 = vmatpush.bf16.msra.mxu0 %v938
  %1030 = vmatmul.bf16.gmra.mxu0 %v146
  %v1031 = vpop.f32.mrf.mxu0
  %v1032 = vadd.f32 %v46, %v1031
  %v1033 = vpop.f32.mrf.mxu0
  %1034 = vdwg.mxu0
  %v1035 = vsel %vm149, %v993, 0.0
  %v1036 = vsel %vm149, %v1006, 0.0
  %v1037 = vadd.f32 %v1035, %v1036
  %v1038 = vsel %vm149, %v1019, 0.0
  %v1039 = vadd.f32 %v1037, %v1038
  %v1040 = vsel %vm221, %v1032, 0.0
  %v1041 = vadd.f32 %v1039, %v1040
  %1042 = vadd.xlane.f32.xlu0 %v1041
  %v1043 = vpop.xlane.xlu0 %1042
  %v1044 = vmul.f32 %v993, %v993
  %v1045 = vmul.f32 %v1006, %v1006
  %v1046 = vmul.f32 %v1019, %v1019
  %v1047 = vmul.f32 %v1032, %v1032
  %v1048 = vsel %vm149, %v1044, 0.0
  %v1049 = vsel %vm149, %v1045, 0.0
  %v1050 = vadd.f32 %v1048, %v1049
  %v1051 = vsel %vm149, %v1046, 0.0
  %v1052 = vadd.f32 %v1050, %v1051
  %v1053 = vsel %vm221, %v1047, 0.0
  %v1054 = vadd.f32 %v1052, %v1053
  %1055 = vadd.xlane.f32.xlu0 %v1054
  %v1056 = vpop.xlane.xlu0 %1055
  %v1057 = vadd.f32 %v852, %v1043
  %v1058 = vadd.f32 %v853, %v1056
  %s1059 = scalar_lea.vmem %s0, 800
  %v1060 = vld [vmem:[%s1059] sm:$0xff]
  %v1061 = vld [vmem:[%s1059 + $0x8] sm:$0xff]
  %v1062 = vld [vmem:[%s1059 + $0x10] sm:$0xff]
  %v1063 = vld [vmem:[%s1059 + $0x18] sm:$0xff]
  %v1064 = vld [vmem:[%s1059 + $0x20] sm:$0xff]
  %v1065 = vld [vmem:[%s1059 + $0x28] sm:$0xff]
  %v1066 = vld [vmem:[%s1059 + $0x30] sm:$0xff]
  %v1067 = vld [vmem:[%s1059 + $0x38] sm:$0xff]
  %v1068 = vld [vmem:[%s1059 + $0x40] sm:$0xff]
  %v1069 = vld [vmem:[%s1059 + $0x48] sm:$0xff]
  %v1070 = vld [vmem:[%s1059 + $0x50] sm:$0xff]
  %v1071 = vld [vmem:[%s1059 + $0x58] sm:$0xff]
  %v1072 = vld [vmem:[%s1059 + $0x60] sm:$0xff]
  %v1073 = vld [vmem:[%s1059 + $0x68] sm:$0xff]
  %v1074 = vld [vmem:[%s1059 + $0x70] sm:$0xff]
  %v1075 = vld [vmem:[%s1059 + $0x78] sm:$0xff]
  %v1076 = vld [vmem:[%s1059 + $0x80] sm:$0xff]
  %v1077 = vld [vmem:[%s1059 + $0x88] sm:$0xff]
  %v1078 = vld [vmem:[%s1059 + $0x90] sm:$0x33]
  %v1079 = vld [vmem:[%s1059 + $0x98] sm:$0x33]
  %v1100 = vunpack.c.l.b16 %v1060
  %v1101 = vunpack.c.h.b16 %v1060
  %v1102 = vunpack.c.l.b16 %v1061
  %v1103 = vunpack.c.h.b16 %v1061
  %v1104 = vunpack.c.l.b16 %v1062
  %v1105 = vunpack.c.h.b16 %v1062
  %v1106 = vunpack.c.l.b16 %v1063
  %v1107 = vunpack.c.h.b16 %v1063
  %v1108 = vunpack.c.l.b16 %v1064
  %v1109 = vunpack.c.h.b16 %v1064
  %v1110 = vunpack.c.l.b16 %v1065
  %v1111 = vunpack.c.h.b16 %v1065
  %v1112 = vunpack.c.l.b16 %v1066
  %v1113 = vunpack.c.h.b16 %v1066
  %v1114 = vunpack.c.l.b16 %v1067
  %v1115 = vunpack.c.h.b16 %v1067
  %v1116 = vunpack.c.l.b16 %v1068
  %v1117 = vunpack.c.h.b16 %v1068
  %v1118 = vunpack.c.l.b16 %v1069
  %v1119 = vunpack.c.h.b16 %v1069
  %v1120 = vunpack.c.l.b16 %v1070
  %v1121 = vunpack.c.h.b16 %v1070
  %v1122 = vunpack.c.l.b16 %v1071
  %v1123 = vunpack.c.h.b16 %v1071
  %v1124 = vunpack.c.l.b16 %v1072
  %v1125 = vunpack.c.h.b16 %v1072
  %v1126 = vunpack.c.l.b16 %v1073
  %v1127 = vunpack.c.h.b16 %v1073
  %v1128 = vunpack.c.l.b16 %v1074
  %v1129 = vunpack.c.h.b16 %v1074
  %v1130 = vunpack.c.l.b16 %v1075
  %v1131 = vunpack.c.h.b16 %v1075
  %v1132 = vunpack.c.l.b16 %v1076
  %v1133 = vunpack.c.h.b16 %v1076
  %v1134 = vunpack.c.l.b16 %v1077
  %v1135 = vunpack.c.h.b16 %v1077
  %v1136 = vunpack.c.l.b16 %v1078
  %v1137 = vunpack.c.h.b16 %v1078
  %v1138 = vunpack.c.l.b16 %v1079
  %v1139 = vunpack.c.h.b16 %v1079
  %v1140 = vpack.c.b16 %v1104, %v1100
  %v1141 = vpack.c.b16 %v1105, %v1101
  %v1142 = vpack.c.b16 %v1106, %v1102
  %v1143 = vpack.c.b16 %v1107, %v1103
  %v1144 = vpack.c.b16 %v1112, %v1108
  %v1145 = vpack.c.b16 %v1113, %v1109
  %v1146 = vpack.c.b16 %v1114, %v1110
  %v1147 = vpack.c.b16 %v1115, %v1111
  %v1148 = vpack.c.b16 %v1120, %v1116
  %v1149 = vpack.c.b16 %v1121, %v1117
  %v1150 = vpack.c.b16 %v1122, %v1118
  %v1151 = vpack.c.b16 %v1123, %v1119
  %v1152 = vpack.c.b16 %v1128, %v1124
  %v1153 = vpack.c.b16 %v1129, %v1125
  %v1154 = vpack.c.b16 %v1130, %v1126
  %v1155 = vpack.c.b16 %v1131, %v1127
  %v1156 = vpack.c.b16 %v1136, %v1132
  %v1157 = vpack.c.b16 %v1137, %v1133
  %v1158 = vpack.c.b16 %v1138, %v1134
  %v1159 = vpack.c.b16 %v1139, %v1135
  %v1177 = vand.u32 %v1156, %v151
  %v1180 = vand.u32 %v1157, %v151
  %v1183 = vand.u32 %v1158, %v151
  %v1186 = vand.u32 %v1159, %v151
  %1188 = vmatpush.bf16.msra.mxu0 0
  %1189 = vmatpush.bf16.msra.mxu0 0
  %1190 = vmatpush.bf16.msra.mxu0 0
  %1191 = vmatpush.bf16.msra.mxu0 %v1177
  %1192 = vmatpush.bf16.msra.mxu0 %v1152
  %1193 = vmatpush.bf16.msra.mxu0 %v1148
  %1194 = vmatpush.bf16.msra.mxu0 %v1144
  %1195 = vmatpush.bf16.msra.mxu0 %v1140
  %1196 = vmatmul.bf16.gmra.mxu0 %v146
  %v1197 = vpop.f32.mrf.mxu0
  %v1198 = vadd.f32 %v46, %v1197
  %v1199 = vpop.f32.mrf.mxu0
  %1200 = vdwg.mxu0
  %1201 = vmatpush.bf16.msra.mxu0 0
  %1202 = vmatpush.bf16.msra.mxu0 0
  %1203 = vmatpush.bf16.msra.mxu0 0
  %1204 = vmatpush.bf16.msra.mxu0 %v1180
  %1205 = vmatpush.bf16.msra.mxu0 %v1153
  %1206 = vmatpush.bf16.msra.mxu0 %v1149
  %1207 = vmatpush.bf16.msra.mxu0 %v1145
  %1208 = vmatpush.bf16.msra.mxu0 %v1141
  %1209 = vmatmul.bf16.gmra.mxu0 %v146
  %v1210 = vpop.f32.mrf.mxu0
  %v1211 = vadd.f32 %v46, %v1210
  %v1212 = vpop.f32.mrf.mxu0
  %1213 = vdwg.mxu0
  %1214 = vmatpush.bf16.msra.mxu0 0
  %1215 = vmatpush.bf16.msra.mxu0 0
  %1216 = vmatpush.bf16.msra.mxu0 0
  %1217 = vmatpush.bf16.msra.mxu0 %v1183
  %1218 = vmatpush.bf16.msra.mxu0 %v1154
  %1219 = vmatpush.bf16.msra.mxu0 %v1150
  %1220 = vmatpush.bf16.msra.mxu0 %v1146
  %1221 = vmatpush.bf16.msra.mxu0 %v1142
  %1222 = vmatmul.bf16.gmra.mxu0 %v146
  %v1223 = vpop.f32.mrf.mxu0
  %v1224 = vadd.f32 %v46, %v1223
  %v1225 = vpop.f32.mrf.mxu0
  %1226 = vdwg.mxu0
  %1227 = vmatpush.bf16.msra.mxu0 0
  %1228 = vmatpush.bf16.msra.mxu0 0
  %1229 = vmatpush.bf16.msra.mxu0 0
  %1230 = vmatpush.bf16.msra.mxu0 %v1186
  %1231 = vmatpush.bf16.msra.mxu0 %v1155
  %1232 = vmatpush.bf16.msra.mxu0 %v1151
  %1233 = vmatpush.bf16.msra.mxu0 %v1147
  %1234 = vmatpush.bf16.msra.mxu0 %v1143
  %1235 = vmatmul.bf16.gmra.mxu0 %v146
  %v1236 = vpop.f32.mrf.mxu0
  %v1237 = vadd.f32 %v46, %v1236
  %v1238 = vpop.f32.mrf.mxu0
  %1239 = vdwg.mxu0
  %v1240 = vsel %vm149, %v1198, 0.0
  %v1241 = vsel %vm149, %v1211, 0.0
  %v1242 = vadd.f32 %v1240, %v1241
  %v1243 = vsel %vm149, %v1224, 0.0
  %v1244 = vadd.f32 %v1242, %v1243
  %v1245 = vsel %vm221, %v1237, 0.0
  %v1246 = vadd.f32 %v1244, %v1245
  %1247 = vadd.xlane.f32.xlu0 %v1246
  %v1248 = vpop.xlane.xlu0 %1247
  %v1249 = vmul.f32 %v1198, %v1198
  %v1250 = vmul.f32 %v1211, %v1211
  %v1251 = vmul.f32 %v1224, %v1224
  %v1252 = vmul.f32 %v1237, %v1237
  %v1253 = vsel %vm149, %v1249, 0.0
  %v1254 = vsel %vm149, %v1250, 0.0
  %v1255 = vadd.f32 %v1253, %v1254
  %v1256 = vsel %vm149, %v1251, 0.0
  %v1257 = vadd.f32 %v1255, %v1256
  %v1258 = vsel %vm221, %v1252, 0.0
  %v1259 = vadd.f32 %v1257, %v1258
  %1260 = vadd.xlane.f32.xlu0 %v1259
  %v1261 = vpop.xlane.xlu0 %1260
  %v1262 = vadd.f32 %v1057, %v1248
  %v1263 = vadd.f32 %v1058, %v1261
  %s1264 = scalar_lea.vmem %s0, 960
  %v1265 = vld [vmem:[%s1264] sm:$0xff]
  %v1266 = vld [vmem:[%s1264 + $0x8] sm:$0xff]
  %v1267 = vld [vmem:[%s1264 + $0x10] sm:$0xff]
  %v1268 = vld [vmem:[%s1264 + $0x18] sm:$0xff]
  %v1269 = vld [vmem:[%s1264 + $0x20] sm:$0xff]
  %v1270 = vld [vmem:[%s1264 + $0x28] sm:$0xff]
  %v1271 = vld [vmem:[%s1264 + $0x30] sm:$0xff]
  %v1272 = vld [vmem:[%s1264 + $0x38] sm:$0xff]
  %v1273 = vld [vmem:[%s1264 + $0x40] sm:$0xff]
  %v1274 = vld [vmem:[%s1264 + $0x48] sm:$0xff]
  %v1275 = vld [vmem:[%s1264 + $0x50] sm:$0xff]
  %v1276 = vld [vmem:[%s1264 + $0x58] sm:$0xff]
  %v1277 = vld [vmem:[%s1264 + $0x60] sm:$0xff]
  %v1278 = vld [vmem:[%s1264 + $0x68] sm:$0xff]
  %v1279 = vld [vmem:[%s1264 + $0x70] sm:$0xff]
  %v1280 = vld [vmem:[%s1264 + $0x78] sm:$0xff]
  %v1281 = vld [vmem:[%s1264 + $0x80] sm:$0xff]
  %v1282 = vld [vmem:[%s1264 + $0x88] sm:$0xff]
  %v1283 = vld [vmem:[%s1264 + $0x90] sm:$0x33]
  %v1284 = vld [vmem:[%s1264 + $0x98] sm:$0x33]
  %v1305 = vunpack.c.l.b16 %v1265
  %v1306 = vunpack.c.h.b16 %v1265
  %v1307 = vunpack.c.l.b16 %v1266
  %v1308 = vunpack.c.h.b16 %v1266
  %v1309 = vunpack.c.l.b16 %v1267
  %v1310 = vunpack.c.h.b16 %v1267
  %v1311 = vunpack.c.l.b16 %v1268
  %v1312 = vunpack.c.h.b16 %v1268
  %v1313 = vunpack.c.l.b16 %v1269
  %v1314 = vunpack.c.h.b16 %v1269
  %v1315 = vunpack.c.l.b16 %v1270
  %v1316 = vunpack.c.h.b16 %v1270
  %v1317 = vunpack.c.l.b16 %v1271
  %v1318 = vunpack.c.h.b16 %v1271
  %v1319 = vunpack.c.l.b16 %v1272
  %v1320 = vunpack.c.h.b16 %v1272
  %v1321 = vunpack.c.l.b16 %v1273
  %v1322 = vunpack.c.h.b16 %v1273
  %v1323 = vunpack.c.l.b16 %v1274
  %v1324 = vunpack.c.h.b16 %v1274
  %v1325 = vunpack.c.l.b16 %v1275
  %v1326 = vunpack.c.h.b16 %v1275
  %v1327 = vunpack.c.l.b16 %v1276
  %v1328 = vunpack.c.h.b16 %v1276
  %v1329 = vunpack.c.l.b16 %v1277
  %v1330 = vunpack.c.h.b16 %v1277
  %v1331 = vunpack.c.l.b16 %v1278
  %v1332 = vunpack.c.h.b16 %v1278
  %v1333 = vunpack.c.l.b16 %v1279
  %v1334 = vunpack.c.h.b16 %v1279
  %v1335 = vunpack.c.l.b16 %v1280
  %v1336 = vunpack.c.h.b16 %v1280
  %v1337 = vunpack.c.l.b16 %v1281
  %v1338 = vunpack.c.h.b16 %v1281
  %v1339 = vunpack.c.l.b16 %v1282
  %v1340 = vunpack.c.h.b16 %v1282
  %v1341 = vunpack.c.l.b16 %v1283
  %v1342 = vunpack.c.h.b16 %v1283
  %v1343 = vunpack.c.l.b16 %v1284
  %v1344 = vunpack.c.h.b16 %v1284
  %v1345 = vpack.c.b16 %v1309, %v1305
  %v1346 = vpack.c.b16 %v1310, %v1306
  %v1347 = vpack.c.b16 %v1311, %v1307
  %v1348 = vpack.c.b16 %v1312, %v1308
  %v1349 = vpack.c.b16 %v1317, %v1313
  %v1350 = vpack.c.b16 %v1318, %v1314
  %v1351 = vpack.c.b16 %v1319, %v1315
  %v1352 = vpack.c.b16 %v1320, %v1316
  %v1353 = vpack.c.b16 %v1325, %v1321
  %v1354 = vpack.c.b16 %v1326, %v1322
  %v1355 = vpack.c.b16 %v1327, %v1323
  %v1356 = vpack.c.b16 %v1328, %v1324
  %v1357 = vpack.c.b16 %v1333, %v1329
  %v1358 = vpack.c.b16 %v1334, %v1330
  %v1359 = vpack.c.b16 %v1335, %v1331
  %v1360 = vpack.c.b16 %v1336, %v1332
  %v1361 = vpack.c.b16 %v1341, %v1337
  %v1362 = vpack.c.b16 %v1342, %v1338
  %v1363 = vpack.c.b16 %v1343, %v1339
  %v1364 = vpack.c.b16 %v1344, %v1340
  %v1382 = vand.u32 %v1361, %v151
  %v1385 = vand.u32 %v1362, %v151
  %v1388 = vand.u32 %v1363, %v151
  %v1391 = vand.u32 %v1364, %v151
  %1393 = vmatpush.bf16.msra.mxu0 0
  %1394 = vmatpush.bf16.msra.mxu0 0
  %1395 = vmatpush.bf16.msra.mxu0 0
  %1396 = vmatpush.bf16.msra.mxu0 %v1382
  %1397 = vmatpush.bf16.msra.mxu0 %v1357
  %1398 = vmatpush.bf16.msra.mxu0 %v1353
  %1399 = vmatpush.bf16.msra.mxu0 %v1349
  %1400 = vmatpush.bf16.msra.mxu0 %v1345
  %1401 = vmatmul.bf16.gmra.mxu0 %v146
  %v1402 = vpop.f32.mrf.mxu0
  %v1403 = vadd.f32 %v46, %v1402
  %v1404 = vpop.f32.mrf.mxu0
  %1405 = vdwg.mxu0
  %1406 = vmatpush.bf16.msra.mxu0 0
  %1407 = vmatpush.bf16.msra.mxu0 0
  %1408 = vmatpush.bf16.msra.mxu0 0
  %1409 = vmatpush.bf16.msra.mxu0 %v1385
  %1410 = vmatpush.bf16.msra.mxu0 %v1358
  %1411 = vmatpush.bf16.msra.mxu0 %v1354
  %1412 = vmatpush.bf16.msra.mxu0 %v1350
  %1413 = vmatpush.bf16.msra.mxu0 %v1346
  %1414 = vmatmul.bf16.gmra.mxu0 %v146
  %v1415 = vpop.f32.mrf.mxu0
  %v1416 = vadd.f32 %v46, %v1415
  %v1417 = vpop.f32.mrf.mxu0
  %1418 = vdwg.mxu0
  %1419 = vmatpush.bf16.msra.mxu0 0
  %1420 = vmatpush.bf16.msra.mxu0 0
  %1421 = vmatpush.bf16.msra.mxu0 0
  %1422 = vmatpush.bf16.msra.mxu0 %v1388
  %1423 = vmatpush.bf16.msra.mxu0 %v1359
  %1424 = vmatpush.bf16.msra.mxu0 %v1355
  %1425 = vmatpush.bf16.msra.mxu0 %v1351
  %1426 = vmatpush.bf16.msra.mxu0 %v1347
  %1427 = vmatmul.bf16.gmra.mxu0 %v146
  %v1428 = vpop.f32.mrf.mxu0
  %v1429 = vadd.f32 %v46, %v1428
  %v1430 = vpop.f32.mrf.mxu0
  %1431 = vdwg.mxu0
  %1432 = vmatpush.bf16.msra.mxu0 0
  %1433 = vmatpush.bf16.msra.mxu0 0
  %1434 = vmatpush.bf16.msra.mxu0 0
  %1435 = vmatpush.bf16.msra.mxu0 %v1391
  %1436 = vmatpush.bf16.msra.mxu0 %v1360
  %1437 = vmatpush.bf16.msra.mxu0 %v1356
  %1438 = vmatpush.bf16.msra.mxu0 %v1352
  %1439 = vmatpush.bf16.msra.mxu0 %v1348
  %1440 = vmatmul.bf16.gmra.mxu0 %v146
  %v1441 = vpop.f32.mrf.mxu0
  %v1442 = vadd.f32 %v46, %v1441
  %v1443 = vpop.f32.mrf.mxu0
  %1444 = vdwg.mxu0
  %v1445 = vsel %vm149, %v1403, 0.0
  %v1446 = vsel %vm149, %v1416, 0.0
  %v1447 = vadd.f32 %v1445, %v1446
  %v1448 = vsel %vm149, %v1429, 0.0
  %v1449 = vadd.f32 %v1447, %v1448
  %v1450 = vsel %vm221, %v1442, 0.0
  %v1451 = vadd.f32 %v1449, %v1450
  %1452 = vadd.xlane.f32.xlu0 %v1451
  %v1453 = vpop.xlane.xlu0 %1452
  %v1454 = vmul.f32 %v1403, %v1403
  %v1455 = vmul.f32 %v1416, %v1416
  %v1456 = vmul.f32 %v1429, %v1429
  %v1457 = vmul.f32 %v1442, %v1442
  %v1458 = vsel %vm149, %v1454, 0.0
  %v1459 = vsel %vm149, %v1455, 0.0
  %v1460 = vadd.f32 %v1458, %v1459
  %v1461 = vsel %vm149, %v1456, 0.0
  %v1462 = vadd.f32 %v1460, %v1461
  %v1463 = vsel %vm221, %v1457, 0.0
  %v1464 = vadd.f32 %v1462, %v1463
  %1465 = vadd.xlane.f32.xlu0 %v1464
  %v1466 = vpop.xlane.xlu0 %1465
  %v1467 = vadd.f32 %v1262, %v1453
  %v1468 = vadd.f32 %v1263, %v1466
  %s1469 = scalar_lea.vmem %s0, 1120
  %v1470 = vld [vmem:[%s1469] sm:$0xff]
  %v1471 = vld [vmem:[%s1469 + $0x8] sm:$0xff]
  %v1472 = vld [vmem:[%s1469 + $0x10] sm:$0xff]
  %v1473 = vld [vmem:[%s1469 + $0x18] sm:$0xff]
  %v1474 = vld [vmem:[%s1469 + $0x20] sm:$0xff]
  %v1475 = vld [vmem:[%s1469 + $0x28] sm:$0xff]
  %v1476 = vld [vmem:[%s1469 + $0x30] sm:$0xff]
  %v1477 = vld [vmem:[%s1469 + $0x38] sm:$0xff]
  %v1478 = vld [vmem:[%s1469 + $0x40] sm:$0xff]
  %v1479 = vld [vmem:[%s1469 + $0x48] sm:$0xff]
  %v1480 = vld [vmem:[%s1469 + $0x50] sm:$0xff]
  %v1481 = vld [vmem:[%s1469 + $0x58] sm:$0xff]
  %v1482 = vld [vmem:[%s1469 + $0x60] sm:$0xff]
  %v1483 = vld [vmem:[%s1469 + $0x68] sm:$0xff]
  %v1484 = vld [vmem:[%s1469 + $0x70] sm:$0xff]
  %v1485 = vld [vmem:[%s1469 + $0x78] sm:$0xff]
  %v1486 = vld [vmem:[%s1469 + $0x80] sm:$0xff]
  %v1487 = vld [vmem:[%s1469 + $0x88] sm:$0xff]
  %v1488 = vld [vmem:[%s1469 + $0x90] sm:$0x33]
  %v1489 = vld [vmem:[%s1469 + $0x98] sm:$0x33]
  %v1510 = vunpack.c.l.b16 %v1470
  %v1511 = vunpack.c.h.b16 %v1470
  %v1512 = vunpack.c.l.b16 %v1471
  %v1513 = vunpack.c.h.b16 %v1471
  %v1514 = vunpack.c.l.b16 %v1472
  %v1515 = vunpack.c.h.b16 %v1472
  %v1516 = vunpack.c.l.b16 %v1473
  %v1517 = vunpack.c.h.b16 %v1473
  %v1518 = vunpack.c.l.b16 %v1474
  %v1519 = vunpack.c.h.b16 %v1474
  %v1520 = vunpack.c.l.b16 %v1475
  %v1521 = vunpack.c.h.b16 %v1475
  %v1522 = vunpack.c.l.b16 %v1476
  %v1523 = vunpack.c.h.b16 %v1476
  %v1524 = vunpack.c.l.b16 %v1477
  %v1525 = vunpack.c.h.b16 %v1477
  %v1526 = vunpack.c.l.b16 %v1478
  %v1527 = vunpack.c.h.b16 %v1478
  %v1528 = vunpack.c.l.b16 %v1479
  %v1529 = vunpack.c.h.b16 %v1479
  %v1530 = vunpack.c.l.b16 %v1480
  %v1531 = vunpack.c.h.b16 %v1480
  %v1532 = vunpack.c.l.b16 %v1481
  %v1533 = vunpack.c.h.b16 %v1481
  %v1534 = vunpack.c.l.b16 %v1482
  %v1535 = vunpack.c.h.b16 %v1482
  %v1536 = vunpack.c.l.b16 %v1483
  %v1537 = vunpack.c.h.b16 %v1483
  %v1538 = vunpack.c.l.b16 %v1484
  %v1539 = vunpack.c.h.b16 %v1484
  %v1540 = vunpack.c.l.b16 %v1485
  %v1541 = vunpack.c.h.b16 %v1485
  %v1542 = vunpack.c.l.b16 %v1486
  %v1543 = vunpack.c.h.b16 %v1486
  %v1544 = vunpack.c.l.b16 %v1487
  %v1545 = vunpack.c.h.b16 %v1487
  %v1546 = vunpack.c.l.b16 %v1488
  %v1547 = vunpack.c.h.b16 %v1488
  %v1548 = vunpack.c.l.b16 %v1489
  %v1549 = vunpack.c.h.b16 %v1489
  %v1550 = vpack.c.b16 %v1514, %v1510
  %v1551 = vpack.c.b16 %v1515, %v1511
  %v1552 = vpack.c.b16 %v1516, %v1512
  %v1553 = vpack.c.b16 %v1517, %v1513
  %v1554 = vpack.c.b16 %v1522, %v1518
  %v1555 = vpack.c.b16 %v1523, %v1519
  %v1556 = vpack.c.b16 %v1524, %v1520
  %v1557 = vpack.c.b16 %v1525, %v1521
  %v1558 = vpack.c.b16 %v1530, %v1526
  %v1559 = vpack.c.b16 %v1531, %v1527
  %v1560 = vpack.c.b16 %v1532, %v1528
  %v1561 = vpack.c.b16 %v1533, %v1529
  %v1562 = vpack.c.b16 %v1538, %v1534
  %v1563 = vpack.c.b16 %v1539, %v1535
  %v1564 = vpack.c.b16 %v1540, %v1536
  %v1565 = vpack.c.b16 %v1541, %v1537
  %v1566 = vpack.c.b16 %v1546, %v1542
  %v1567 = vpack.c.b16 %v1547, %v1543
  %v1568 = vpack.c.b16 %v1548, %v1544
  %v1569 = vpack.c.b16 %v1549, %v1545
  %v1587 = vand.u32 %v1566, %v151
  %v1590 = vand.u32 %v1567, %v151
  %v1593 = vand.u32 %v1568, %v151
  %v1596 = vand.u32 %v1569, %v151
  %1598 = vmatpush.bf16.msra.mxu0 0
  %1599 = vmatpush.bf16.msra.mxu0 0
  %1600 = vmatpush.bf16.msra.mxu0 0
  %1601 = vmatpush.bf16.msra.mxu0 %v1587
  %1602 = vmatpush.bf16.msra.mxu0 %v1562
  %1603 = vmatpush.bf16.msra.mxu0 %v1558
  %1604 = vmatpush.bf16.msra.mxu0 %v1554
  %1605 = vmatpush.bf16.msra.mxu0 %v1550
  %1606 = vmatmul.bf16.gmra.mxu0 %v146
  %v1607 = vpop.f32.mrf.mxu0
  %v1608 = vadd.f32 %v46, %v1607
  %v1609 = vpop.f32.mrf.mxu0
  %1610 = vdwg.mxu0
  %1611 = vmatpush.bf16.msra.mxu0 0
  %1612 = vmatpush.bf16.msra.mxu0 0
  %1613 = vmatpush.bf16.msra.mxu0 0
  %1614 = vmatpush.bf16.msra.mxu0 %v1590
  %1615 = vmatpush.bf16.msra.mxu0 %v1563
  %1616 = vmatpush.bf16.msra.mxu0 %v1559
  %1617 = vmatpush.bf16.msra.mxu0 %v1555
  %1618 = vmatpush.bf16.msra.mxu0 %v1551
  %1619 = vmatmul.bf16.gmra.mxu0 %v146
  %v1620 = vpop.f32.mrf.mxu0
  %v1621 = vadd.f32 %v46, %v1620
  %v1622 = vpop.f32.mrf.mxu0
  %1623 = vdwg.mxu0
  %1624 = vmatpush.bf16.msra.mxu0 0
  %1625 = vmatpush.bf16.msra.mxu0 0
  %1626 = vmatpush.bf16.msra.mxu0 0
  %1627 = vmatpush.bf16.msra.mxu0 %v1593
  %1628 = vmatpush.bf16.msra.mxu0 %v1564
  %1629 = vmatpush.bf16.msra.mxu0 %v1560
  %1630 = vmatpush.bf16.msra.mxu0 %v1556
  %1631 = vmatpush.bf16.msra.mxu0 %v1552
  %1632 = vmatmul.bf16.gmra.mxu0 %v146
  %v1633 = vpop.f32.mrf.mxu0
  %v1634 = vadd.f32 %v46, %v1633
  %v1635 = vpop.f32.mrf.mxu0
  %1636 = vdwg.mxu0
  %1637 = vmatpush.bf16.msra.mxu0 0
  %1638 = vmatpush.bf16.msra.mxu0 0
  %1639 = vmatpush.bf16.msra.mxu0 0
  %1640 = vmatpush.bf16.msra.mxu0 %v1596
  %1641 = vmatpush.bf16.msra.mxu0 %v1565
  %1642 = vmatpush.bf16.msra.mxu0 %v1561
  %1643 = vmatpush.bf16.msra.mxu0 %v1557
  %1644 = vmatpush.bf16.msra.mxu0 %v1553
  %1645 = vmatmul.bf16.gmra.mxu0 %v146
  %v1646 = vpop.f32.mrf.mxu0
  %v1647 = vadd.f32 %v46, %v1646
  %v1648 = vpop.f32.mrf.mxu0
  %1649 = vdwg.mxu0
  %v1650 = vsel %vm149, %v1608, 0.0
  %v1651 = vsel %vm149, %v1621, 0.0
  %v1652 = vadd.f32 %v1650, %v1651
  %v1653 = vsel %vm149, %v1634, 0.0
  %v1654 = vadd.f32 %v1652, %v1653
  %v1655 = vsel %vm221, %v1647, 0.0
  %v1656 = vadd.f32 %v1654, %v1655
  %1657 = vadd.xlane.f32.xlu0 %v1656
  %v1658 = vpop.xlane.xlu0 %1657
  %v1659 = vmul.f32 %v1608, %v1608
  %v1660 = vmul.f32 %v1621, %v1621
  %v1661 = vmul.f32 %v1634, %v1634
  %v1662 = vmul.f32 %v1647, %v1647
  %v1663 = vsel %vm149, %v1659, 0.0
  %v1664 = vsel %vm149, %v1660, 0.0
  %v1665 = vadd.f32 %v1663, %v1664
  %v1666 = vsel %vm149, %v1661, 0.0
  %v1667 = vadd.f32 %v1665, %v1666
  %v1668 = vsel %vm221, %v1662, 0.0
  %v1669 = vadd.f32 %v1667, %v1668
  %1670 = vadd.xlane.f32.xlu0 %v1669
  %v1671 = vpop.xlane.xlu0 %1670
  %v1672 = vadd.f32 %v1467, %v1658
  %v1673 = vadd.f32 %v1468, %v1671
  %s1674 = scalar_lea.vmem %s0, 1280
  %v1675 = vld [vmem:[%s1674] sm:$0xff]
  %v1676 = vld [vmem:[%s1674 + $0x8] sm:$0xff]
  %v1677 = vld [vmem:[%s1674 + $0x10] sm:$0xff]
  %v1678 = vld [vmem:[%s1674 + $0x18] sm:$0xff]
  %v1679 = vld [vmem:[%s1674 + $0x20] sm:$0xff]
  %v1680 = vld [vmem:[%s1674 + $0x28] sm:$0xff]
  %v1681 = vld [vmem:[%s1674 + $0x30] sm:$0xff]
  %v1682 = vld [vmem:[%s1674 + $0x38] sm:$0xff]
  %v1683 = vld [vmem:[%s1674 + $0x40] sm:$0xff]
  %v1684 = vld [vmem:[%s1674 + $0x48] sm:$0xff]
  %v1685 = vld [vmem:[%s1674 + $0x50] sm:$0xff]
  %v1686 = vld [vmem:[%s1674 + $0x58] sm:$0xff]
  %v1687 = vld [vmem:[%s1674 + $0x60] sm:$0xff]
  %v1688 = vld [vmem:[%s1674 + $0x68] sm:$0xff]
  %v1689 = vld [vmem:[%s1674 + $0x70] sm:$0xff]
  %v1690 = vld [vmem:[%s1674 + $0x78] sm:$0xff]
  %v1691 = vld [vmem:[%s1674 + $0x80] sm:$0xff]
  %v1692 = vld [vmem:[%s1674 + $0x88] sm:$0xff]
  %v1693 = vld [vmem:[%s1674 + $0x90] sm:$0x33]
  %v1694 = vld [vmem:[%s1674 + $0x98] sm:$0x33]
  %v1715 = vunpack.c.l.b16 %v1675
  %v1716 = vunpack.c.h.b16 %v1675
  %v1717 = vunpack.c.l.b16 %v1676
  %v1718 = vunpack.c.h.b16 %v1676
  %v1719 = vunpack.c.l.b16 %v1677
  %v1720 = vunpack.c.h.b16 %v1677
  %v1721 = vunpack.c.l.b16 %v1678
  %v1722 = vunpack.c.h.b16 %v1678
  %v1723 = vunpack.c.l.b16 %v1679
  %v1724 = vunpack.c.h.b16 %v1679
  %v1725 = vunpack.c.l.b16 %v1680
  %v1726 = vunpack.c.h.b16 %v1680
  %v1727 = vunpack.c.l.b16 %v1681
  %v1728 = vunpack.c.h.b16 %v1681
  %v1729 = vunpack.c.l.b16 %v1682
  %v1730 = vunpack.c.h.b16 %v1682
  %v1731 = vunpack.c.l.b16 %v1683
  %v1732 = vunpack.c.h.b16 %v1683
  %v1733 = vunpack.c.l.b16 %v1684
  %v1734 = vunpack.c.h.b16 %v1684
  %v1735 = vunpack.c.l.b16 %v1685
  %v1736 = vunpack.c.h.b16 %v1685
  %v1737 = vunpack.c.l.b16 %v1686
  %v1738 = vunpack.c.h.b16 %v1686
  %v1739 = vunpack.c.l.b16 %v1687
  %v1740 = vunpack.c.h.b16 %v1687
  %v1741 = vunpack.c.l.b16 %v1688
  %v1742 = vunpack.c.h.b16 %v1688
  %v1743 = vunpack.c.l.b16 %v1689
  %v1744 = vunpack.c.h.b16 %v1689
  %v1745 = vunpack.c.l.b16 %v1690
  %v1746 = vunpack.c.h.b16 %v1690
  %v1747 = vunpack.c.l.b16 %v1691
  %v1748 = vunpack.c.h.b16 %v1691
  %v1749 = vunpack.c.l.b16 %v1692
  %v1750 = vunpack.c.h.b16 %v1692
  %v1751 = vunpack.c.l.b16 %v1693
  %v1752 = vunpack.c.h.b16 %v1693
  %v1753 = vunpack.c.l.b16 %v1694
  %v1754 = vunpack.c.h.b16 %v1694
  %v1755 = vpack.c.b16 %v1719, %v1715
  %v1756 = vpack.c.b16 %v1720, %v1716
  %v1757 = vpack.c.b16 %v1721, %v1717
  %v1758 = vpack.c.b16 %v1722, %v1718
  %v1759 = vpack.c.b16 %v1727, %v1723
  %v1760 = vpack.c.b16 %v1728, %v1724
  %v1761 = vpack.c.b16 %v1729, %v1725
  %v1762 = vpack.c.b16 %v1730, %v1726
  %v1763 = vpack.c.b16 %v1735, %v1731
  %v1764 = vpack.c.b16 %v1736, %v1732
  %v1765 = vpack.c.b16 %v1737, %v1733
  %v1766 = vpack.c.b16 %v1738, %v1734
  %v1767 = vpack.c.b16 %v1743, %v1739
  %v1768 = vpack.c.b16 %v1744, %v1740
  %v1769 = vpack.c.b16 %v1745, %v1741
  %v1770 = vpack.c.b16 %v1746, %v1742
  %v1771 = vpack.c.b16 %v1751, %v1747
  %v1772 = vpack.c.b16 %v1752, %v1748
  %v1773 = vpack.c.b16 %v1753, %v1749
  %v1774 = vpack.c.b16 %v1754, %v1750
  %v1792 = vand.u32 %v1771, %v151
  %v1795 = vand.u32 %v1772, %v151
  %v1798 = vand.u32 %v1773, %v151
  %v1801 = vand.u32 %v1774, %v151
  %1803 = vmatpush.bf16.msra.mxu0 0
  %1804 = vmatpush.bf16.msra.mxu0 0
  %1805 = vmatpush.bf16.msra.mxu0 0
  %1806 = vmatpush.bf16.msra.mxu0 %v1792
  %1807 = vmatpush.bf16.msra.mxu0 %v1767
  %1808 = vmatpush.bf16.msra.mxu0 %v1763
  %1809 = vmatpush.bf16.msra.mxu0 %v1759
  %1810 = vmatpush.bf16.msra.mxu0 %v1755
  %1811 = vmatmul.bf16.gmra.mxu0 %v146
  %v1812 = vpop.f32.mrf.mxu0
  %v1813 = vadd.f32 %v46, %v1812
  %v1814 = vpop.f32.mrf.mxu0
  %1815 = vdwg.mxu0
  %1816 = vmatpush.bf16.msra.mxu0 0
  %1817 = vmatpush.bf16.msra.mxu0 0
  %1818 = vmatpush.bf16.msra.mxu0 0
  %1819 = vmatpush.bf16.msra.mxu0 %v1795
  %1820 = vmatpush.bf16.msra.mxu0 %v1768
  %1821 = vmatpush.bf16.msra.mxu0 %v1764
  %1822 = vmatpush.bf16.msra.mxu0 %v1760
  %1823 = vmatpush.bf16.msra.mxu0 %v1756
  %1824 = vmatmul.bf16.gmra.mxu0 %v146
  %v1825 = vpop.f32.mrf.mxu0
  %v1826 = vadd.f32 %v46, %v1825
  %v1827 = vpop.f32.mrf.mxu0
  %1828 = vdwg.mxu0
  %1829 = vmatpush.bf16.msra.mxu0 0
  %1830 = vmatpush.bf16.msra.mxu0 0
  %1831 = vmatpush.bf16.msra.mxu0 0
  %1832 = vmatpush.bf16.msra.mxu0 %v1798
  %1833 = vmatpush.bf16.msra.mxu0 %v1769
  %1834 = vmatpush.bf16.msra.mxu0 %v1765
  %1835 = vmatpush.bf16.msra.mxu0 %v1761
  %1836 = vmatpush.bf16.msra.mxu0 %v1757
  %1837 = vmatmul.bf16.gmra.mxu0 %v146
  %v1838 = vpop.f32.mrf.mxu0
  %v1839 = vadd.f32 %v46, %v1838
  %v1840 = vpop.f32.mrf.mxu0
  %1841 = vdwg.mxu0
  %1842 = vmatpush.bf16.msra.mxu0 0
  %1843 = vmatpush.bf16.msra.mxu0 0
  %1844 = vmatpush.bf16.msra.mxu0 0
  %1845 = vmatpush.bf16.msra.mxu0 %v1801
  %1846 = vmatpush.bf16.msra.mxu0 %v1770
  %1847 = vmatpush.bf16.msra.mxu0 %v1766
  %1848 = vmatpush.bf16.msra.mxu0 %v1762
  %1849 = vmatpush.bf16.msra.mxu0 %v1758
  %1850 = vmatmul.bf16.gmra.mxu0 %v146
  %v1851 = vpop.f32.mrf.mxu0
  %v1852 = vadd.f32 %v46, %v1851
  %v1853 = vpop.f32.mrf.mxu0
  %1854 = vdwg.mxu0
  %v1855 = vsel %vm149, %v1813, 0.0
  %v1856 = vsel %vm149, %v1826, 0.0
  %v1857 = vadd.f32 %v1855, %v1856
  %v1858 = vsel %vm149, %v1839, 0.0
  %v1859 = vadd.f32 %v1857, %v1858
  %v1860 = vsel %vm221, %v1852, 0.0
  %v1861 = vadd.f32 %v1859, %v1860
  %1862 = vadd.xlane.f32.xlu0 %v1861
  %v1863 = vpop.xlane.xlu0 %1862
  %v1864 = vmul.f32 %v1813, %v1813
  %v1865 = vmul.f32 %v1826, %v1826
  %v1866 = vmul.f32 %v1839, %v1839
  %v1867 = vmul.f32 %v1852, %v1852
  %v1868 = vsel %vm149, %v1864, 0.0
  %v1869 = vsel %vm149, %v1865, 0.0
  %v1870 = vadd.f32 %v1868, %v1869
  %v1871 = vsel %vm149, %v1866, 0.0
  %v1872 = vadd.f32 %v1870, %v1871
  %v1873 = vsel %vm221, %v1867, 0.0
  %v1874 = vadd.f32 %v1872, %v1873
  %1875 = vadd.xlane.f32.xlu0 %v1874
  %v1876 = vpop.xlane.xlu0 %1875
  %v1877 = vadd.f32 %v1672, %v1863
  %v1878 = vadd.f32 %v1673, %v1876
  %v1879 = vmul.f32 %v1877, 0.00028344672
  %v1880 = vmul.f32 %v1878, 0.00028344672
  %v1881 = vmul.f32 %v1879, %v1879
  %v1882 = vsub.f32 %v1880, %v1881
  %v1883 = vmax.f32 %v1882, 0.0
  %v1884 = vadd.f32 %v1883, 1e-05
  %v1885 = vrsqrt.pop %v1884
  %v1886 = vmul.f32 %v1885, %v1884
  %v1887 = vmul.f32 %v1886, %v1885
  %v1888 = vmul.f32 0.5, %v1887
  %v1889 = vsub.f32 1.5, %v1888
  %v1890 = vmul.f32 %v1885, %v1889
  %vm1891 = vweird.f32 %v1884
  %vm1892 = vweird.f32 %v1885
  %vm1893 = vmor %vm1891, %vm1892
  %v1894 = vsel %vm1893, %v1885, %v1890
  %v1895 = vld [vmem:[%s3] sm:$0x3f]
  %v1896 = vmul.f32 %v1894, %v1895
  %v1897 = vld [vmem:[%s4] sm:$0x3f]
  %v1898 = vmul.f32 %v1879, %v1896
  %v1899 = vsub.f32 %v1897, %v1898
  %1901 = vset.pattern.permute.xlu0 0
  %1902 = vperm.xlu0 %1901, %v1896
  %v1903 = vpop.permute.xlu0 %1902
  %v1905 = vmul.f32 %v174, %v1903
  %v1906 = vmul.f32 %v187, %v1903
  %v1907 = vmul.f32 %v200, %v1903
  %v1908 = vmul.f32 %v213, %v1903
  %1910 = vset.pattern.permute.xlu0 0
  %1911 = vperm.xlu0 %1910, %v1899
  %v1912 = vpop.permute.xlu0 %1911
  %v1914 = vadd.f32 %v1905, %v1912
  %v1915 = vadd.f32 %v1906, %v1912
  %v1916 = vadd.f32 %v1907, %v1912
  %v1917 = vadd.f32 %v1908, %v1912
  %v1918 = vmax.f32 %v1914, 0.0
  %v1919 = vmax.f32 %v1915, 0.0
  %v1920 = vmax.f32 %v1916, 0.0
  %v1921 = vmax.f32 %v1917, 0.0
  %v1922 = vmul.f32 %v378, %v1903
  %v1923 = vmul.f32 %v391, %v1903
  %v1924 = vmul.f32 %v404, %v1903
  %v1925 = vmul.f32 %v417, %v1903
  %v1926 = vadd.f32 %v1922, %v1912
  %v1927 = vadd.f32 %v1923, %v1912
  %v1928 = vadd.f32 %v1924, %v1912
  %v1929 = vadd.f32 %v1925, %v1912
  %v1930 = vmax.f32 %v1926, 0.0
  %v1931 = vmax.f32 %v1927, 0.0
  %v1932 = vmax.f32 %v1928, 0.0
  %v1933 = vmax.f32 %v1929, 0.0
  %v1934 = vmax.f32 %v1918, %v1930
  %v1935 = vmax.f32 %v1919, %v1931
  %v1936 = vmax.f32 %v1920, %v1932
  %v1937 = vmax.f32 %v1921, %v1933
  %v1938 = vmul.f32 %v583, %v1903
  %v1939 = vmul.f32 %v596, %v1903
  %v1940 = vmul.f32 %v609, %v1903
  %v1941 = vmul.f32 %v622, %v1903
  %v1942 = vadd.f32 %v1938, %v1912
  %v1943 = vadd.f32 %v1939, %v1912
  %v1944 = vadd.f32 %v1940, %v1912
  %v1945 = vadd.f32 %v1941, %v1912
  %v1946 = vmax.f32 %v1942, 0.0
  %v1947 = vmax.f32 %v1943, 0.0
  %v1948 = vmax.f32 %v1944, 0.0
  %v1949 = vmax.f32 %v1945, 0.0
  %v1950 = vmax.f32 %v1934, %v1946
  %v1951 = vmax.f32 %v1935, %v1947
  %v1952 = vmax.f32 %v1936, %v1948
  %v1953 = vmax.f32 %v1937, %v1949
  %v1954 = vmul.f32 %v788, %v1903
  %v1955 = vmul.f32 %v801, %v1903
  %v1956 = vmul.f32 %v814, %v1903
  %v1957 = vmul.f32 %v827, %v1903
  %v1958 = vadd.f32 %v1954, %v1912
  %v1959 = vadd.f32 %v1955, %v1912
  %v1960 = vadd.f32 %v1956, %v1912
  %v1961 = vadd.f32 %v1957, %v1912
  %v1962 = vmax.f32 %v1958, 0.0
  %v1963 = vmax.f32 %v1959, 0.0
  %v1964 = vmax.f32 %v1960, 0.0
  %v1965 = vmax.f32 %v1961, 0.0
  %v1966 = vmax.f32 %v1950, %v1962
  %v1967 = vmax.f32 %v1951, %v1963
  %v1968 = vmax.f32 %v1952, %v1964
  %v1969 = vmax.f32 %v1953, %v1965
  %v1970 = vmul.f32 %v993, %v1903
  %v1971 = vmul.f32 %v1006, %v1903
  %v1972 = vmul.f32 %v1019, %v1903
  %v1973 = vmul.f32 %v1032, %v1903
  %v1974 = vadd.f32 %v1970, %v1912
  %v1975 = vadd.f32 %v1971, %v1912
  %v1976 = vadd.f32 %v1972, %v1912
  %v1977 = vadd.f32 %v1973, %v1912
  %v1978 = vmax.f32 %v1974, 0.0
  %v1979 = vmax.f32 %v1975, 0.0
  %v1980 = vmax.f32 %v1976, 0.0
  %v1981 = vmax.f32 %v1977, 0.0
  %v1982 = vmax.f32 %v1966, %v1978
  %v1983 = vmax.f32 %v1967, %v1979
  %v1984 = vmax.f32 %v1968, %v1980
  %v1985 = vmax.f32 %v1969, %v1981
  %v1986 = vmul.f32 %v1198, %v1903
  %v1987 = vmul.f32 %v1211, %v1903
  %v1988 = vmul.f32 %v1224, %v1903
  %v1989 = vmul.f32 %v1237, %v1903
  %v1990 = vadd.f32 %v1986, %v1912
  %v1991 = vadd.f32 %v1987, %v1912
  %v1992 = vadd.f32 %v1988, %v1912
  %v1993 = vadd.f32 %v1989, %v1912
  %v1994 = vmax.f32 %v1990, 0.0
  %v1995 = vmax.f32 %v1991, 0.0
  %v1996 = vmax.f32 %v1992, 0.0
  %v1997 = vmax.f32 %v1993, 0.0
  %v1998 = vmax.f32 %v1982, %v1994
  %v1999 = vmax.f32 %v1983, %v1995
  %v2000 = vmax.f32 %v1984, %v1996
  %v2001 = vmax.f32 %v1985, %v1997
  %v2002 = vmul.f32 %v1403, %v1903
  %v2003 = vmul.f32 %v1416, %v1903
  %v2004 = vmul.f32 %v1429, %v1903
  %v2005 = vmul.f32 %v1442, %v1903
  %v2006 = vadd.f32 %v2002, %v1912
  %v2007 = vadd.f32 %v2003, %v1912
  %v2008 = vadd.f32 %v2004, %v1912
  %v2009 = vadd.f32 %v2005, %v1912
  %v2010 = vmax.f32 %v2006, 0.0
  %v2011 = vmax.f32 %v2007, 0.0
  %v2012 = vmax.f32 %v2008, 0.0
  %v2013 = vmax.f32 %v2009, 0.0
  %v2014 = vmax.f32 %v1998, %v2010
  %v2015 = vmax.f32 %v1999, %v2011
  %v2016 = vmax.f32 %v2000, %v2012
  %v2017 = vmax.f32 %v2001, %v2013
  %v2018 = vmul.f32 %v1608, %v1903
  %v2019 = vmul.f32 %v1621, %v1903
  %v2020 = vmul.f32 %v1634, %v1903
  %v2021 = vmul.f32 %v1647, %v1903
  %v2022 = vadd.f32 %v2018, %v1912
  %v2023 = vadd.f32 %v2019, %v1912
  %v2024 = vadd.f32 %v2020, %v1912
  %v2025 = vadd.f32 %v2021, %v1912
  %v2026 = vmax.f32 %v2022, 0.0
  %v2027 = vmax.f32 %v2023, 0.0
  %v2028 = vmax.f32 %v2024, 0.0
  %v2029 = vmax.f32 %v2025, 0.0
  %v2030 = vmax.f32 %v2014, %v2026
  %v2031 = vmax.f32 %v2015, %v2027
  %v2032 = vmax.f32 %v2016, %v2028
  %v2033 = vmax.f32 %v2017, %v2029
  %v2034 = vmul.f32 %v1813, %v1903
  %v2035 = vmul.f32 %v1826, %v1903
  %v2036 = vmul.f32 %v1839, %v1903
  %v2037 = vmul.f32 %v1852, %v1903
  %v2038 = vadd.f32 %v2034, %v1912
  %v2039 = vadd.f32 %v2035, %v1912
  %v2040 = vadd.f32 %v2036, %v1912
  %v2041 = vadd.f32 %v2037, %v1912
  %v2042 = vmax.f32 %v2038, 0.0
  %v2043 = vmax.f32 %v2039, 0.0
  %v2044 = vmax.f32 %v2040, 0.0
  %v2045 = vmax.f32 %v2041, 0.0
  %v2046 = vmax.f32 %v2030, %v2042
  %v2047 = vmax.f32 %v2031, %v2043
  %v2048 = vmax.f32 %v2032, %v2044
  %v2049 = vmax.f32 %v2033, %v2045
  %2050 = vst [vmem:[%s5] sm:$0x3f] %v2046
  %2051 = vst [vmem:[%s5 + $0x8] sm:$0x3f] %v2047
  %2052 = vst [vmem:[%s5 + $0x10] sm:$0x3f] %v2048
  %2053 = vst.msk [vmem:[%s5 + $0x18] sm:$0x3f] %vm221, %v2049
  // Predicated region
  $region22: #{discriminator_forward.3} parent=0 // pred_check
    _
  $region23: #{discriminator_forward.3} parent=0 // pred_check_branch
    %2055 = sbr.rel (0) target = $region25
  $region24: #{discriminator_forward.3} parent=0 // pred_region
    _
  $region25: #{discriminator_forward.3} parent=0 // pred_fallthru
    _
  // Predicated region
  $region26: #{discriminator_forward.3} parent=0 // pred_check
    _
  $region27: #{discriminator_forward.3} parent=0 // pred_check_branch
    %2057 = sbr.rel (0) target = $region29
  $region28: #{discriminator_forward.3} parent=0 // pred_region
    _
  $region29: #{discriminator_forward.3} parent=0 // pred_fallthru
    _

// kernel: discriminator_forward.5
$region0: #{discriminator_forward.5}
  #allocation0 [shape = 'u32[]', space=smem, size = 0x4, offset = 0x4, fixed_abs, tag = 'smem constant byte address 0x4 - core index']
  #allocation1 [shape = 'u32[72,128]{1,0:T(1,128)}', space=vmem, size = 0x9000, scoped, tag = 'internal scratch']
  #allocation2 [shape = 'f32[1,1]{1,0:T(1,128)S(1)}', space=vmem, size = 0x200, scoped, tag = 'scoped memory for discriminator_forward.5']
  %s0 = inlined_call_operand.vmem [shape: bf16[4,48,2], index: 0, kind: input, shape index: {}]
  %s1 = inlined_call_operand.vmem [shape: bf16[24,48], index: 1, kind: input, shape index: {}]
  %s2 = inlined_call_operand.vmem [shape: f32[24,1], index: 2, kind: input, shape index: {}]
  %s3 = inlined_call_operand.vmem [shape: f32[24,1], index: 3, kind: input, shape index: {}]
  %s4 = inlined_call_operand.vmem [shape: f32[24,1], index: 4, kind: input, shape index: {}]
  %s5 = inlined_call_operand.vmem [shape: f32[24,1], index: 5, kind: input, shape index: {}]
  %s6 = inlined_call_operand.<no memory space> [shape: f32[1,1], index: 6, kind: input, shape index: {}]
  %s7 = inlined_call_operand.hbm [shape: f32[1,2], index: 7, kind: output, shape index: {}]
  %s8 = sld [smem:[#allocation0]]
  $region38: #{discriminator_forward.5} parent=0
    _
  %s10 = ssub.s32 1, %s8
  %s11 = scalar_select 0, %s10, %s8
  %v12 = vstv %s6
  %13 = vst [vmem:[#allocation2] sm:$0x1] %v12
  $region1: #{discriminator_forward.5} parent=0
    #allocation3 [shape = 'u8[512]{0}', space=vmem, size = 0x400, scoped, tag = 'output window, operand 0, single buffered']
    #allocation4 [shape = 's32[1]{0}', space=sflag, size = 0x4, scoped, tag = 'scoped memory for discriminator_forward.5']
    %14 = vsyncpa [#allocation4], 0
    // Predicated region
    $region2: #{discriminator_forward.5} parent=1 // pred_check
      _
    $region3: #{discriminator_forward.5} parent=1 // pred_check_branch
      %16 = sbr.rel (0) target = $region5
    $region4: #{discriminator_forward.5} parent=1 // pred_region
      _
    $region5: #{discriminator_forward.5} parent=1 // pred_fallthru
      _
    // Predicated region
    $region6: #{discriminator_forward.5} parent=1 // pred_check
      _
    $region7: #{discriminator_forward.5} parent=1 // pred_check_branch
      %18 = sbr.rel (0) target = $region9
    $region8: #{discriminator_forward.5} parent=1 // pred_region
      _
    $region9: #{discriminator_forward.5} parent=1 // pred_fallthru
      _
    // Predicated region
    $region10: #{discriminator_forward.5} parent=1 // pred_check
      _
    $region11: #{discriminator_forward.5} parent=1 // pred_check_branch
      %20 = sbr.rel (0) target = $region13
    $region12: #{discriminator_forward.5} parent=1 // pred_region
      _
    $region13: #{discriminator_forward.5} parent=1 // pred_fallthru
      _
    // Predicated region
    $region14: #{discriminator_forward.5} parent=1 // pred_check
      _
    $region15: #{discriminator_forward.5} parent=1 // pred_check_branch
      %22 = sbr.rel (0) target = $region17
    $region16: #{discriminator_forward.5} parent=1 // pred_region
      _
    $region17: #{discriminator_forward.5} parent=1 // pred_fallthru
      _
    // Predicated region
    $region18: #{discriminator_forward.5} parent=1 // pred_check
      _
    $region19: #{discriminator_forward.5} parent=1 // pred_check_branch
      %24 = sbr.rel (0) target = $region21
    $region20: #{discriminator_forward.5} parent=1 // pred_region
      _
    $region21: #{discriminator_forward.5} parent=1 // pred_fallthru
      _
    // Predicated region
    $region22: #{discriminator_forward.5} parent=1 // pred_check
      _
    $region23: #{discriminator_forward.5} parent=1 // pred_check_branch
      %26 = sbr.rel (0) target = $region25
    $region24: #{discriminator_forward.5} parent=1 // pred_region
      _
    $region25: #{discriminator_forward.5} parent=1 // pred_fallthru
      _
    // Predicated region
    $region26: #{discriminator_forward.5} parent=1 // pred_check
      _
    $region27: #{discriminator_forward.5} parent=1 // pred_check_branch
      %28 = sbr.rel (0) target = $region29
    $region28: #{discriminator_forward.5} parent=1 // pred_region
      _
    $region29: #{discriminator_forward.5} parent=1 // pred_fallthru
      _
    %v30 = vld [vmem:[%s1] sm:$0xf]
    %v31 = vld [vmem:[%s1 + $0x4] sm:$0xf]
    %v32 = vld [vmem:[%s1 + $0x8] sm:$0xf]
    %v33 = vld [vmem:[%s2] sm:$0xff]
    %v34 = vld [vmem:[%s2 + $0x8] sm:$0xff]
    %v35 = vld [vmem:[%s2 + $0x10] sm:$0xff]
    %v36 = vld [vmem:[%s0] sm:$0xf]
    %v37 = vld [vmem:[%s0 + $0x4] sm:$0xf]
    %v38 = vld [vmem:[%s0 + $0x8] sm:$0xf]
    %v39 = vld [vmem:[%s0 + $0xc] sm:$0xf]
    %v40 = vld [vmem:[%s0 + $0x10] sm:$0xf]
    %v41 = vld [vmem:[%s0 + $0x14] sm:$0xf]
    %43 = vset.pattern.permute.xlu0 0
    %44 = vperm.xlu0 %43, %v33
    %v45 = vpop.permute.xlu0 %44
    %48 = vset.pattern.permute.xlu0 0
    %49 = vperm.xlu0 %48, %v34
    %v50 = vpop.permute.xlu0 %49
    %53 = vset.pattern.permute.xlu0 0
    %54 = vperm.xlu0 %53, %v35
    %v55 = vpop.permute.xlu0 %54
    %v60 = vunpack.c.l.b16 %v30
    %v61 = vunpack.c.l.b16 %v31
    %v62 = vunpack.c.l.b16 %v32
    %v63 = vpack.c.b16 %v61, %v60
    %v64 = vpack.c.b16 %v62, %v62
    %v71 = vunpack.c.l.b16 %v36
    %v72 = vunpack.c.l.b16 %v37
    %v73 = vunpack.c.l.b16 %v38
    %v74 = vunpack.c.l.b16 %v39
    %v75 = vunpack.c.l.b16 %v40
    %v76 = vunpack.c.l.b16 %v41
    %v77 = vpack.c.b16 %v72, %v71
    %v78 = vpack.c.b16 %v74, %v73
    %v79 = vpack.c.b16 %v76, %v75
    %vm83 = vcmask 392192
    %v85 = vsel %vm83, %v63, 0
    %v88 = vsel %vm83, %v64, 0
    %90 = vmatpush.bf16.msra.mxu0 0
    %91 = vmatpush.bf16.msra.mxu0 0
    %92 = vmatpush.bf16.msra.mxu0 0
    %93 = vmatpush.bf16.msra.mxu0 0
    %94 = vmatpush.bf16.msra.mxu0 0
    %95 = vmatpush.bf16.msra.mxu0 %v79
    %96 = vmatpush.bf16.msra.mxu0 %v78
    %97 = vmatpush.bf16.msra.mxu0 %v77
    %98 = vmatmul.bf16.gmra.mxu0 %v85
    %v99 = vpop.f32.mrf.mxu0
    %v100 = vadd.f32 %v45, %v99
    %v101 = vpop.f32.mrf.mxu0
    %v102 = vadd.f32 %v50, %v101
    %103 = vmatmul.bf16.gmra.mxu0 %v88
    %v104 = vpop.f32.mrf.mxu0
    %v105 = vadd.f32 %v55, %v104
    %v106 = vpop.f32.mrf.mxu0
    %107 = vdwg.mxu0
    %vm108 = vcmask 15360
    %v109 = vsel %vm108, %v100, 0.0
    %110 = vadd.xlane.f32.xlu0 %v109
    %v111 = vpop.xlane.xlu0 %110
    %v112 = vsel %vm108, %v102, 0.0
    %113 = vadd.xlane.f32.xlu0 %v112
    %v114 = vpop.xlane.xlu0 %113
    %v115 = vsel %vm108, %v105, 0.0
    %116 = vadd.xlane.f32.xlu0 %v115
    %v117 = vpop.xlane.xlu0 %116
    %v118 = vmul.f32 %v100, %v100
    %v119 = vmul.f32 %v102, %v102
    %v120 = vmul.f32 %v105, %v105
    %v121 = vsel %vm108, %v118, 0.0
    %122 = vadd.xlane.f32.xlu0 %v121
    %v123 = vpop.xlane.xlu0 %122
    %v124 = vsel %vm108, %v119, 0.0
    %125 = vadd.xlane.f32.xlu0 %v124
    %v126 = vpop.xlane.xlu0 %125
    %v127 = vsel %vm108, %v120, 0.0
    %128 = vadd.xlane.f32.xlu0 %v127
    %v129 = vpop.xlane.xlu0 %128
    %s130 = scalar_lea.vmem %s0, 24
    %v131 = vld [vmem:[%s130] sm:$0xf]
    %v132 = vld [vmem:[%s130 + $0x4] sm:$0xf]
    %v133 = vld [vmem:[%s130 + $0x8] sm:$0xf]
    %v134 = vld [vmem:[%s130 + $0xc] sm:$0xf]
    %v135 = vld [vmem:[%s130 + $0x10] sm:$0xf]
    %v136 = vld [vmem:[%s130 + $0x14] sm:$0xf]
    %v143 = vunpack.c.l.b16 %v131
    %v144 = vunpack.c.l.b16 %v132
    %v145 = vunpack.c.l.b16 %v133
    %v146 = vunpack.c.l.b16 %v134
    %v147 = vunpack.c.l.b16 %v135
    %v148 = vunpack.c.l.b16 %v136
    %v149 = vpack.c.b16 %v144, %v143
    %v150 = vpack.c.b16 %v146, %v145
    %v151 = vpack.c.b16 %v148, %v147
    %155 = vmatpush.bf16.msra.mxu0 0
    %156 = vmatpush.bf16.msra.mxu0 0
    %157 = vmatpush.bf16.msra.mxu0 0
    %158 = vmatpush.bf16.msra.mxu0 0
    %159 = vmatpush.bf16.msra.mxu0 0
    %160 = vmatpush.bf16.msra.mxu0 %v151
    %161 = vmatpush.bf16.msra.mxu0 %v150
    %162 = vmatpush.bf16.msra.mxu0 %v149
    %163 = vmatmul.bf16.gmra.mxu0 %v85
    %v164 = vpop.f32.mrf.mxu0
    %v165 = vadd.f32 %v45, %v164
    %v166 = vpop.f32.mrf.mxu0
    %v167 = vadd.f32 %v50, %v166
    %168 = vmatmul.bf16.gmra.mxu0 %v88
    %v169 = vpop.f32.mrf.mxu0
    %v170 = vadd.f32 %v55, %v169
    %v171 = vpop.f32.mrf.mxu0
    %172 = vdwg.mxu0
    %v173 = vsel %vm108, %v165, 0.0
    %174 = vadd.xlane.f32.xlu0 %v173
    %v175 = vpop.xlane.xlu0 %174
    %v176 = vsel %vm108, %v167, 0.0
    %177 = vadd.xlane.f32.xlu0 %v176
    %v178 = vpop.xlane.xlu0 %177
    %v179 = vsel %vm108, %v170, 0.0
    %180 = vadd.xlane.f32.xlu0 %v179
    %v181 = vpop.xlane.xlu0 %180
    %v182 = vmul.f32 %v165, %v165
    %v183 = vmul.f32 %v167, %v167
    %v184 = vmul.f32 %v170, %v170
    %v185 = vsel %vm108, %v182, 0.0
    %186 = vadd.xlane.f32.xlu0 %v185
    %v187 = vpop.xlane.xlu0 %186
    %v188 = vsel %vm108, %v183, 0.0
    %189 = vadd.xlane.f32.xlu0 %v188
    %v190 = vpop.xlane.xlu0 %189
    %v191 = vsel %vm108, %v184, 0.0
    %192 = vadd.xlane.f32.xlu0 %v191
    %v193 = vpop.xlane.xlu0 %192
    %v194 = vadd.f32 %v111, %v175
    %v195 = vadd.f32 %v114, %v178
    %v196 = vadd.f32 %v117, %v181
    %v197 = vadd.f32 %v123, %v187
    %v198 = vadd.f32 %v126, %v190
    %v199 = vadd.f32 %v129, %v193
    %s200 = scalar_lea.vmem %s0, 48
    %v201 = vld [vmem:[%s200] sm:$0xf]
    %v202 = vld [vmem:[%s200 + $0x4] sm:$0xf]
    %v203 = vld [vmem:[%s200 + $0x8] sm:$0xf]
    %v204 = vld [vmem:[%s200 + $0xc] sm:$0xf]
    %v205 = vld [vmem:[%s200 + $0x10] sm:$0xf]
    %v206 = vld [vmem:[%s200 + $0x14] sm:$0xf]
    %v213 = vunpack.c.l.b16 %v201
    %v214 = vunpack.c.l.b16 %v202
    %v215 = vunpack.c.l.b16 %v203
    %v216 = vunpack.c.l.b16 %v204
    %v217 = vunpack.c.l.b16 %v205
    %v218 = vunpack.c.l.b16 %v206
    %v219 = vpack.c.b16 %v214, %v213
    %v220 = vpack.c.b16 %v216, %v215
    %v221 = vpack.c.b16 %v218, %v217
    %225 = vmatpush.bf16.msra.mxu0 0
    %226 = vmatpush.bf16.msra.mxu0 0
    %227 = vmatpush.bf16.msra.mxu0 0
    %228 = vmatpush.bf16.msra.mxu0 0
    %229 = vmatpush.bf16.msra.mxu0 0
    %230 = vmatpush.bf16.msra.mxu0 %v221
    %231 = vmatpush.bf16.msra.mxu0 %v220
    %232 = vmatpush.bf16.msra.mxu0 %v219
    %233 = vmatmul.bf16.gmra.mxu0 %v85
    %v234 = vpop.f32.mrf.mxu0
    %v235 = vadd.f32 %v45, %v234
    %v236 = vpop.f32.mrf.mxu0
    %v237 = vadd.f32 %v50, %v236
    %238 = vmatmul.bf16.gmra.mxu0 %v88
    %v239 = vpop.f32.mrf.mxu0
    %v240 = vadd.f32 %v55, %v239
    %v241 = vpop.f32.mrf.mxu0
    %242 = vdwg.mxu0
    %v243 = vsel %vm108, %v235, 0.0
    %244 = vadd.xlane.f32.xlu0 %v243
    %v245 = vpop.xlane.xlu0 %244
    %v246 = vsel %vm108, %v237, 0.0
    %247 = vadd.xlane.f32.xlu0 %v246
    %v248 = vpop.xlane.xlu0 %247
    %v249 = vsel %vm108, %v240, 0.0
    %250 = vadd.xlane.f32.xlu0 %v249
    %v251 = vpop.xlane.xlu0 %250
    %v252 = vmul.f32 %v235, %v235
    %v253 = vmul.f32 %v237, %v237
    %v254 = vmul.f32 %v240, %v240
    %v255 = vsel %vm108, %v252, 0.0
    %256 = vadd.xlane.f32.xlu0 %v255
    %v257 = vpop.xlane.xlu0 %256
    %v258 = vsel %vm108, %v253, 0.0
    %259 = vadd.xlane.f32.xlu0 %v258
    %v260 = vpop.xlane.xlu0 %259
    %v261 = vsel %vm108, %v254, 0.0
    %262 = vadd.xlane.f32.xlu0 %v261
    %v263 = vpop.xlane.xlu0 %262
    %v264 = vadd.f32 %v194, %v245
    %v265 = vadd.f32 %v195, %v248
    %v266 = vadd.f32 %v196, %v251
    %v267 = vadd.f32 %v197, %v257
    %v268 = vadd.f32 %v198, %v260
    %v269 = vadd.f32 %v199, %v263
    %s270 = scalar_lea.vmem %s0, 72
    %v271 = vld [vmem:[%s270] sm:$0xf]
    %v272 = vld [vmem:[%s270 + $0x4] sm:$0xf]
    %v273 = vld [vmem:[%s270 + $0x8] sm:$0xf]
    %v274 = vld [vmem:[%s270 + $0xc] sm:$0xf]
    %v275 = vld [vmem:[%s270 + $0x10] sm:$0xf]
    %v276 = vld [vmem:[%s270 + $0x14] sm:$0xf]
    %v283 = vunpack.c.l.b16 %v271
    %v284 = vunpack.c.l.b16 %v272
    %v285 = vunpack.c.l.b16 %v273
    %v286 = vunpack.c.l.b16 %v274
    %v287 = vunpack.c.l.b16 %v275
    %v288 = vunpack.c.l.b16 %v276
    %v289 = vpack.c.b16 %v284, %v283
    %v290 = vpack.c.b16 %v286, %v285
    %v291 = vpack.c.b16 %v288, %v287
    %295 = vmatpush.bf16.msra.mxu0 0
    %296 = vmatpush.bf16.msra.mxu0 0
    %297 = vmatpush.bf16.msra.mxu0 0
    %298 = vmatpush.bf16.msra.mxu0 0
    %299 = vmatpush.bf16.msra.mxu0 0
    %300 = vmatpush.bf16.msra.mxu0 %v291
    %301 = vmatpush.bf16.msra.mxu0 %v290
    %302 = vmatpush.bf16.msra.mxu0 %v289
    %303 = vmatmul.bf16.gmra.mxu0 %v85
    %v304 = vpop.f32.mrf.mxu0
    %v305 = vadd.f32 %v45, %v304
    %v306 = vpop.f32.mrf.mxu0
    %v307 = vadd.f32 %v50, %v306
    %308 = vmatmul.bf16.gmra.mxu0 %v88
    %v309 = vpop.f32.mrf.mxu0
    %v310 = vadd.f32 %v55, %v309
    %v311 = vpop.f32.mrf.mxu0
    %312 = vdwg.mxu0
    %v313 = vsel %vm108, %v305, 0.0
    %314 = vadd.xlane.f32.xlu0 %v313
    %v315 = vpop.xlane.xlu0 %314
    %v316 = vsel %vm108, %v307, 0.0
    %317 = vadd.xlane.f32.xlu0 %v316
    %v318 = vpop.xlane.xlu0 %317
    %v319 = vsel %vm108, %v310, 0.0
    %320 = vadd.xlane.f32.xlu0 %v319
    %v321 = vpop.xlane.xlu0 %320
    %v322 = vmul.f32 %v305, %v305
    %v323 = vmul.f32 %v307, %v307
    %v324 = vmul.f32 %v310, %v310
    %v325 = vsel %vm108, %v322, 0.0
    %326 = vadd.xlane.f32.xlu0 %v325
    %v327 = vpop.xlane.xlu0 %326
    %v328 = vsel %vm108, %v323, 0.0
    %329 = vadd.xlane.f32.xlu0 %v328
    %v330 = vpop.xlane.xlu0 %329
    %v331 = vsel %vm108, %v324, 0.0
    %332 = vadd.xlane.f32.xlu0 %v331
    %v333 = vpop.xlane.xlu0 %332
    %v334 = vadd.f32 %v264, %v315
    %v335 = vadd.f32 %v265, %v318
    %v336 = vadd.f32 %v266, %v321
    %v337 = vadd.f32 %v267, %v327
    %v338 = vadd.f32 %v268, %v330
    %v339 = vadd.f32 %v269, %v333
    %v340 = vmul.f32 %v334, 0.125
    %v341 = vmul.f32 %v335, 0.125
    %v342 = vmul.f32 %v336, 0.125
    %v343 = vmul.f32 %v337, 0.125
    %v344 = vmul.f32 %v338, 0.125
    %v345 = vmul.f32 %v339, 0.125
    %v346 = vmul.f32 %v340, %v340
    %v347 = vmul.f32 %v341, %v341
    %v348 = vmul.f32 %v342, %v342
    %v349 = vsub.f32 %v343, %v346
    %v350 = vsub.f32 %v344, %v347
    %v351 = vsub.f32 %v345, %v348
    %v352 = vmax.f32 %v349, 0.0
    %v353 = vmax.f32 %v350, 0.0
    %v354 = vmax.f32 %v351, 0.0
    %v355 = vadd.f32 %v352, 1e-05
    %v356 = vadd.f32 %v353, 1e-05
    %v357 = vadd.f32 %v354, 1e-05
    %v358 = vrsqrt.pop %v355
    %v359 = vmul.f32 %v358, %v355
    %v360 = vmul.f32 %v359, %v358
    %v361 = vmul.f32 0.5, %v360
    %v362 = vsub.f32 1.5, %v361
    %v363 = vmul.f32 %v358, %v362
    %vm364 = vweird.f32 %v355
    %vm365 = vweird.f32 %v358
    %vm366 = vmor %vm364, %vm365
    %v367 = vsel %vm366, %v358, %v363
    %v368 = vrsqrt.pop %v356
    %v369 = vmul.f32 %v368, %v356
    %v370 = vmul.f32 %v369, %v368
    %v371 = vmul.f32 0.5, %v370
    %v372 = vsub.f32 1.5, %v371
    %v373 = vmul.f32 %v368, %v372
    %vm374 = vweird.f32 %v356
    %vm375 = vweird.f32 %v368
    %vm376 = vmor %vm374, %vm375
    %v377 = vsel %vm376, %v368, %v373
    %v378 = vrsqrt.pop %v357
    %v379 = vmul.f32 %v378, %v357
    %v380 = vmul.f32 %v379, %v378
    %v381 = vmul.f32 0.5, %v380
    %v382 = vsub.f32 1.5, %v381
    %v383 = vmul.f32 %v378, %v382
    %vm384 = vweird.f32 %v357
    %vm385 = vweird.f32 %v378
    %vm386 = vmor %vm384, %vm385
    %v387 = vsel %vm386, %v378, %v383
    %v388 = vld [vmem:[%s3] sm:$0xff]
    %v389 = vld [vmem:[%s3 + $0x8] sm:$0xff]
    %v390 = vld [vmem:[%s3 + $0x10] sm:$0xff]
    %v391 = vmul.f32 %v367, %v388
    %v392 = vmul.f32 %v377, %v389
    %v393 = vmul.f32 %v387, %v390
    %v394 = vld [vmem:[%s4] sm:$0xff]
    %v395 = vld [vmem:[%s4 + $0x8] sm:$0xff]
    %v396 = vld [vmem:[%s4 + $0x10] sm:$0xff]
    %v397 = vmul.f32 %v340, %v391
    %v398 = vmul.f32 %v341, %v392
    %v399 = vmul.f32 %v342, %v393
    %v400 = vsub.f32 %v394, %v397
    %v401 = vsub.f32 %v395, %v398
    %v402 = vsub.f32 %v396, %v399
    %404 = vset.pattern.permute.xlu0 0
    %405 = vperm.xlu0 %404, %v391
    %v406 = vpop.permute.xlu0 %405
    %409 = vset.pattern.permute.xlu0 0
    %410 = vperm.xlu0 %409, %v392
    %v411 = vpop.permute.xlu0 %410
    %414 = vset.pattern.permute.xlu0 0
    %415 = vperm.xlu0 %414, %v393
    %v416 = vpop.permute.xlu0 %415
    %v418 = vmul.f32 %v100, %v406
    %v419 = vmul.f32 %v102, %v411
    %v420 = vmul.f32 %v105, %v416
    %422 = vset.pattern.permute.xlu0 0
    %423 = vperm.xlu0 %422, %v400
    %v424 = vpop.permute.xlu0 %423
    %427 = vset.pattern.permute.xlu0 0
    %428 = vperm.xlu0 %427, %v401
    %v429 = vpop.permute.xlu0 %428
    %432 = vset.pattern.permute.xlu0 0
    %433 = vperm.xlu0 %432, %v402
    %v434 = vpop.permute.xlu0 %433
    %v436 = vadd.f32 %v418, %v424
    %v437 = vadd.f32 %v419, %v429
    %v438 = vadd.f32 %v420, %v434
    %v439 = vmax.f32 %v436, 0.0
    %v440 = vmax.f32 %v437, 0.0
    %v441 = vmax.f32 %v438, 0.0
    %v442 = vmul.f32 %v165, %v406
    %v443 = vmul.f32 %v167, %v411
    %v444 = vmul.f32 %v170, %v416
    %v445 = vadd.f32 %v442, %v424
    %v446 = vadd.f32 %v443, %v429
    %v447 = vadd.f32 %v444, %v434
    %v448 = vmax.f32 %v445, 0.0
    %v449 = vmax.f32 %v446, 0.0
    %v450 = vmax.f32 %v447, 0.0
    %v451 = vmax.f32 %v439, %v448
    %v452 = vmax.f32 %v440, %v449
    %v453 = vmax.f32 %v441, %v450
    %v454 = vmul.f32 %v235, %v406
    %v455 = vmul.f32 %v237, %v411
    %v456 = vmul.f32 %v240, %v416
    %v457 = vadd.f32 %v454, %v424
    %v458 = vadd.f32 %v455, %v429
    %v459 = vadd.f32 %v456, %v434
    %v460 = vmax.f32 %v457, 0.0
    %v461 = vmax.f32 %v458, 0.0
    %v462 = vmax.f32 %v459, 0.0
    %v463 = vmax.f32 %v451, %v460
    %v464 = vmax.f32 %v452, %v461
    %v465 = vmax.f32 %v453, %v462
    %v466 = vmul.f32 %v305, %v406
    %v467 = vmul.f32 %v307, %v411
    %v468 = vmul.f32 %v310, %v416
    %v469 = vadd.f32 %v466, %v424
    %v470 = vadd.f32 %v467, %v429
    %v471 = vadd.f32 %v468, %v434
    %v472 = vmax.f32 %v469, 0.0
    %v473 = vmax.f32 %v470, 0.0
    %v474 = vmax.f32 %v471, 0.0
    %v475 = vmax.f32 %v463, %v472
    %v476 = vmax.f32 %v464, %v473
    %v477 = vmax.f32 %v465, %v474
    %v478 = vld [vmem:[%s5] sm:$0xff]
    %v479 = vld [vmem:[%s5 + $0x8] sm:$0xff]
    %v480 = vld [vmem:[%s5 + $0x10] sm:$0xff]
    %482 = vset.pattern.permute.xlu0 0
    %483 = vperm.xlu0 %482, %v478
    %v484 = vpop.permute.xlu0 %483
    %487 = vset.pattern.permute.xlu0 0
    %488 = vperm.xlu0 %487, %v479
    %v489 = vpop.permute.xlu0 %488
    %492 = vset.pattern.permute.xlu0 0
    %493 = vperm.xlu0 %492, %v480
    %v494 = vpop.permute.xlu0 %493
    %v496 = vmul.f32 %v484, %v475
    %v497 = vmul.f32 %v489, %v476
    %v498 = vmul.f32 %v494, %v477
    %v499 = vsel %vm108, %v496, 0.0
    %v500 = vsel %vm108, %v497, 0.0
    %v501 = vadd.f32 %v499, %v500
    %v502 = vsel %vm108, %v498, 0.0
    %v503 = vadd.f32 %v501, %v502
    %v504 = vrot.slane %v503, 4
    %v505 = vadd.f32 %v503, %v504
    %v506 = vrot.slane %v505, 2
    %v507 = vadd.f32 %v505, %v506
    %v508 = vrot.slane %v507, 1
    %v509 = vadd.f32 %v507, %v508
    %v510 = vld [vmem:[#allocation2] sm:$0x1]
    %512 = vset.pattern.permute.xlu0 0
    %513 = vperm.xlu0 %512, %v510
    %v514 = vpop.permute.xlu0 %513
    %v516 = vperm.slane %v514, 0
    %v517 = vadd.f32 %v509, %v516
    %v518 = vsub.f32 0.0, %v517
    %v519 = vmul.f32 %v518, 1.442695
    %v520 = vpow.pop %v519
    %v521 = vadd.f32 %v520, 1.0
    %v522 = vrcp.pop %v521
    %v523 = vmul.f32 %v521, %v522
    %v524 = vsub.f32 1.0, %v523
    %v525 = vmul.f32 %v522, %v524
    %v526 = vadd.f32 %v522, %v525
    %vm527 = vweird.f32 %v521
    %vm528 = vweird.f32 %v522
    %vm529 = vmor %vm527, %vm528
    %v530 = vsel %vm529, %v522, %v526
    %v531 = vand.u32 2147483647, %v521
    %vm532 = vcmp.eq.f32.partialorder %v531, 8.507059e+37
    %v533 = vand.u32 %v521, 2147483648
    %v534 = vor.u32 1.1754944e-38, %v533
    %v535 = vsel %vm532, %v534, %v530
    %v536 = vmul.f32 1.0, %v535
    %vm537 = vcmask 8192
    %538 = vst.msk [vmem:[#allocation3] sm:$0x1] %vm537, %v536
    // Predicated region
    $region30: #{discriminator_forward.5} parent=1 // pred_check
      _
    $region31: #{discriminator_forward.5} parent=1 // pred_check_branch
      %540 = sbr.rel (0) target = $region33
    $region32: #{discriminator_forward.5} parent=1 // pred_region
      %542 = vsyncadd [#allocation4], 0
      %s544 = sshll.u32 [#allocation3], 4
      %s545 = int_to_ptr.vmem [resolvable:$true] %s544
      %s546 = sshll.u32 %s7, 4
      %s547 = int_to_ptr.hbm [resolvable:$true] %s546
      %549 = dma.vmem_to_hbm [thread:$0]  %s545, 16, %s547, [#allocation4]
    $region33: #{discriminator_forward.5} parent=1 // pred_fallthru
      _
    // Predicated region
    $region34: #{discriminator_forward.5} parent=1 // pred_check
      _
    $region35: #{discriminator_forward.5} parent=1 // pred_check_branch
      %551 = sbr.rel (0) target = $region37
    $region36: #{discriminator_forward.5} parent=1 // pred_region
      %553 = dma.done [#allocation4], 16
    $region37: #{discriminator_forward.5} parent=1 // pred_fallthru
      _
    %554 = vsyncpa [#allocation4], 1

// kernel: discriminator_forward.4
$region0: #{discriminator_forward.4}
  #allocation0 [shape = 'u32[]', space=smem, size = 0x4, offset = 0x4, fixed_abs, tag = 'smem constant byte address 0x4 - core index']
  #allocation1 [shape = 'u32[72,128]{1,0:T(1,128)}', space=vmem, size = 0x9000, scoped, tag = 'internal scratch']
  %s0 = inlined_call_operand.vmem [shape: bf16[9,54,32], index: 0, kind: input, shape index: {}]
  %s1 = inlined_call_operand.vmem [shape: bf16[12,54], index: 1, kind: input, shape index: {}]
  %s2 = inlined_call_operand.vmem [shape: f32[12,1], index: 2, kind: input, shape index: {}]
  %s3 = inlined_call_operand.vmem [shape: f32[12,1], index: 3, kind: input, shape index: {}]
  %s4 = inlined_call_operand.vmem [shape: f32[12,1], index: 4, kind: input, shape index: {}]
  %s5 = inlined_call_operand.vmem [shape: f32[12,32], index: 5, kind: output, shape index: {}]
  %s6 = sld [smem:[#allocation0]]
  $region30: #{discriminator_forward.4} parent=0
    _
  %s8 = ssub.s32 1, %s6
  %s9 = scalar_select 0, %s8, %s6
  // Predicated region
  $region2: #{discriminator_forward.4} parent=0 // pred_check
    _
  $region3: #{discriminator_forward.4} parent=0 // pred_check_branch
    %11 = sbr.rel (0) target = $region5
  $region4: #{discriminator_forward.4} parent=0 // pred_region
    _
  $region5: #{discriminator_forward.4} parent=0 // pred_fallthru
    _
  // Predicated region
  $region6: #{discriminator_forward.4} parent=0 // pred_check
    _
  $region7: #{discriminator_forward.4} parent=0 // pred_check_branch
    %13 = sbr.rel (0) target = $region9
  $region8: #{discriminator_forward.4} parent=0 // pred_region
    _
  $region9: #{discriminator_forward.4} parent=0 // pred_fallthru
    _
  // Predicated region
  $region10: #{discriminator_forward.4} parent=0 // pred_check
    _
  $region11: #{discriminator_forward.4} parent=0 // pred_check_branch
    %15 = sbr.rel (0) target = $region13
  $region12: #{discriminator_forward.4} parent=0 // pred_region
    _
  $region13: #{discriminator_forward.4} parent=0 // pred_fallthru
    _
  // Predicated region
  $region14: #{discriminator_forward.4} parent=0 // pred_check
    _
  $region15: #{discriminator_forward.4} parent=0 // pred_check_branch
    %17 = sbr.rel (0) target = $region17
  $region16: #{discriminator_forward.4} parent=0 // pred_region
    _
  $region17: #{discriminator_forward.4} parent=0 // pred_fallthru
    _
  // Predicated region
  $region18: #{discriminator_forward.4} parent=0 // pred_check
    _
  $region19: #{discriminator_forward.4} parent=0 // pred_check_branch
    %19 = sbr.rel (0) target = $region21
  $region20: #{discriminator_forward.4} parent=0 // pred_region
    _
  $region21: #{discriminator_forward.4} parent=0 // pred_fallthru
    _
  %v21 = vld [vmem:[%s1] sm:$0xf]
  %v22 = vld [vmem:[%s1 + $0x4] sm:$0x3]
  %v23 = vld [vmem:[%s2] sm:$0xff]
  %v24 = vld [vmem:[%s2 + $0x8] sm:$0xf]
  %v25 = vld [vmem:[%s0] sm:$0xf]
  %v26 = vld [vmem:[%s0 + $0x4] sm:$0xf]
  %v27 = vld [vmem:[%s0 + $0x8] sm:$0xf]
  %v28 = vld [vmem:[%s0 + $0xc] sm:$0xf]
  %v29 = vld [vmem:[%s0 + $0x10] sm:$0xf]
  %v30 = vld [vmem:[%s0 + $0x14] sm:$0xf]
  %v31 = vld [vmem:[%s0 + $0x18] sm:$0x7]
  %33 = vset.pattern.permute.xlu0 0
  %34 = vperm.xlu0 %33, %v23
  %v35 = vpop.permute.xlu0 %34
  %38 = vset.pattern.permute.xlu0 0
  %39 = vperm.xlu0 %38, %v24
  %v40 = vpop.permute.xlu0 %39
  %v44 = vunpack.c.l.b16 %v21
  %v45 = vunpack.c.l.b16 %v22
  %v46 = vpack.c.b16 %v45, %v44
  %v54 = vunpack.c.l.b16 %v25
  %v55 = vunpack.c.l.b16 %v26
  %v56 = vunpack.c.l.b16 %v27
  %v57 = vunpack.c.l.b16 %v28
  %v58 = vunpack.c.l.b16 %v29
  %v59 = vunpack.c.l.b16 %v30
  %v60 = vunpack.c.l.b16 %v31
  %v61 = vpack.c.b16 %v55, %v54
  %v62 = vpack.c.b16 %v57, %v56
  %v63 = vpack.c.b16 %v59, %v58
  %v64 = vpack.c.b16 %v60, %v60
  %vm68 = vcmask 441344
  %v70 = vsel %vm68, %v46, 0
  %vm72 = vcmask 1042432
  %v74 = vsel %vm72, %v64, 0
  %76 = vmatpush.bf16.msra.mxu0 0
  %77 = vmatpush.bf16.msra.mxu0 0
  %78 = vmatpush.bf16.msra.mxu0 0
  %79 = vmatpush.bf16.msra.mxu0 0
  %80 = vmatpush.bf16.msra.mxu0 %v74
  %81 = vmatpush.bf16.msra.mxu0 %v63
  %82 = vmatpush.bf16.msra.mxu0 %v62
  %83 = vmatpush.bf16.msra.mxu0 %v61
  %84 = vmatmul.bf16.gmra.mxu0 %v70
  %v85 = vpop.f32.mrf.mxu0
  %v86 = vadd.f32 %v35, %v85
  %v87 = vpop.f32.mrf.mxu0
  %v88 = vadd.f32 %v40, %v87
  %89 = vdwg.mxu0
  %vm90 = vcmask 261120
  %v91 = vsel %vm90, %v86, 0.0
  %92 = vadd.xlane.f32.xlu0 %v91
  %v93 = vpop.xlane.xlu0 %92
  %vm94 = vcmask 257024
  %v95 = vsel %vm94, %v88, 0.0
  %96 = vadd.xlane.f32.xlu0 %v95
  %v97 = vpop.xlane.xlu0 %96
  %v98 = vmul.f32 %v86, %v86
  %v99 = vmul.f32 %v88, %v88
  %v100 = vsel %vm90, %v98, 0.0
  %101 = vadd.xlane.f32.xlu0 %v100
  %v102 = vpop.xlane.xlu0 %101
  %v103 = vsel %vm94, %v99, 0.0
  %104 = vadd.xlane.f32.xlu0 %v103
  %v105 = vpop.xlane.xlu0 %104
  %s106 = scalar_lea.vmem %s0, 28
  %v107 = vld [vmem:[%s106] sm:$0xf]
  %v108 = vld [vmem:[%s106 + $0x4] sm:$0xf]
  %v109 = vld [vmem:[%s106 + $0x8] sm:$0xf]
  %v110 = vld [vmem:[%s106 + $0xc] sm:$0xf]
  %v111 = vld [vmem:[%s106 + $0x10] sm:$0xf]
  %v112 = vld [vmem:[%s106 + $0x14] sm:$0xf]
  %v113 = vld [vmem:[%s106 + $0x18] sm:$0x7]
  %v121 = vunpack.c.l.b16 %v107
  %v122 = vunpack.c.l.b16 %v108
  %v123 = vunpack.c.l.b16 %v109
  %v124 = vunpack.c.l.b16 %v110
  %v125 = vunpack.c.l.b16 %v111
  %v126 = vunpack.c.l.b16 %v112
  %v127 = vunpack.c.l.b16 %v113
  %v128 = vpack.c.b16 %v122, %v121
  %v129 = vpack.c.b16 %v124, %v123
  %v130 = vpack.c.b16 %v126, %v125
  %v131 = vpack.c.b16 %v127, %v127
  %v136 = vsel %vm72, %v131, 0
  %138 = vmatpush.bf16.msra.mxu0 0
  %139 = vmatpush.bf16.msra.mxu0 0
  %140 = vmatpush.bf16.msra.mxu0 0
  %141 = vmatpush.bf16.msra.mxu0 0
  %142 = vmatpush.bf16.msra.mxu0 %v136
  %143 = vmatpush.bf16.msra.mxu0 %v130
  %144 = vmatpush.bf16.msra.mxu0 %v129
  %145 = vmatpush.bf16.msra.mxu0 %v128
  %146 = vmatmul.bf16.gmra.mxu0 %v70
  %v147 = vpop.f32.mrf.mxu0
  %v148 = vadd.f32 %v35, %v147
  %v149 = vpop.f32.mrf.mxu0
  %v150 = vadd.f32 %v40, %v149
  %151 = vdwg.mxu0
  %v152 = vsel %vm90, %v148, 0.0
  %153 = vadd.xlane.f32.xlu0 %v152
  %v154 = vpop.xlane.xlu0 %153
  %v155 = vsel %vm94, %v150, 0.0
  %156 = vadd.xlane.f32.xlu0 %v155
  %v157 = vpop.xlane.xlu0 %156
  %v158 = vmul.f32 %v148, %v148
  %v159 = vmul.f32 %v150, %v150
  %v160 = vsel %vm90, %v158, 0.0
  %161 = vadd.xlane.f32.xlu0 %v160
  %v162 = vpop.xlane.xlu0 %161
  %v163 = vsel %vm94, %v159, 0.0
  %164 = vadd.xlane.f32.xlu0 %v163
  %v165 = vpop.xlane.xlu0 %164
  %v166 = vadd.f32 %v93, %v154
  %v167 = vadd.f32 %v97, %v157
  %v168 = vadd.f32 %v102, %v162
  %v169 = vadd.f32 %v105, %v165
  %s170 = scalar_lea.vmem %s0, 56
  %v171 = vld [vmem:[%s170] sm:$0xf]
  %v172 = vld [vmem:[%s170 + $0x4] sm:$0xf]
  %v173 = vld [vmem:[%s170 + $0x8] sm:$0xf]
  %v174 = vld [vmem:[%s170 + $0xc] sm:$0xf]
  %v175 = vld [vmem:[%s170 + $0x10] sm:$0xf]
  %v176 = vld [vmem:[%s170 + $0x14] sm:$0xf]
  %v177 = vld [vmem:[%s170 + $0x18] sm:$0x7]
  %v185 = vunpack.c.l.b16 %v171
  %v186 = vunpack.c.l.b16 %v172
  %v187 = vunpack.c.l.b16 %v173
  %v188 = vunpack.c.l.b16 %v174
  %v189 = vunpack.c.l.b16 %v175
  %v190 = vunpack.c.l.b16 %v176
  %v191 = vunpack.c.l.b16 %v177
  %v192 = vpack.c.b16 %v186, %v185
  %v193 = vpack.c.b16 %v188, %v187
  %v194 = vpack.c.b16 %v190, %v189
  %v195 = vpack.c.b16 %v191, %v191
  %v200 = vsel %vm72, %v195, 0
  %202 = vmatpush.bf16.msra.mxu0 0
  %203 = vmatpush.bf16.msra.mxu0 0
  %204 = vmatpush.bf16.msra.mxu0 0
  %205 = vmatpush.bf16.msra.mxu0 0
  %206 = vmatpush.bf16.msra.mxu0 %v200
  %207 = vmatpush.bf16.msra.mxu0 %v194
  %208 = vmatpush.bf16.msra.mxu0 %v193
  %209 = vmatpush.bf16.msra.mxu0 %v192
  %210 = vmatmul.bf16.gmra.mxu0 %v70
  %v211 = vpop.f32.mrf.mxu0
  %v212 = vadd.f32 %v35, %v211
  %v213 = vpop.f32.mrf.mxu0
  %v214 = vadd.f32 %v40, %v213
  %215 = vdwg.mxu0
  %v216 = vsel %vm90, %v212, 0.0
  %217 = vadd.xlane.f32.xlu0 %v216
  %v218 = vpop.xlane.xlu0 %217
  %v219 = vsel %vm94, %v214, 0.0
  %220 = vadd.xlane.f32.xlu0 %v219
  %v221 = vpop.xlane.xlu0 %220
  %v222 = vmul.f32 %v212, %v212
  %v223 = vmul.f32 %v214, %v214
  %v224 = vsel %vm90, %v222, 0.0
  %225 = vadd.xlane.f32.xlu0 %v224
  %v226 = vpop.xlane.xlu0 %225
  %v227 = vsel %vm94, %v223, 0.0
  %228 = vadd.xlane.f32.xlu0 %v227
  %v229 = vpop.xlane.xlu0 %228
  %v230 = vadd.f32 %v166, %v218
  %v231 = vadd.f32 %v167, %v221
  %v232 = vadd.f32 %v168, %v226
  %v233 = vadd.f32 %v169, %v229
  %s234 = scalar_lea.vmem %s0, 84
  %v235 = vld [vmem:[%s234] sm:$0xf]
  %v236 = vld [vmem:[%s234 + $0x4] sm:$0xf]
  %v237 = vld [vmem:[%s234 + $0x8] sm:$0xf]
  %v238 = vld [vmem:[%s234 + $0xc] sm:$0xf]
  %v239 = vld [vmem:[%s234 + $0x10] sm:$0xf]
  %v240 = vld [vmem:[%s234 + $0x14] sm:$0xf]
  %v241 = vld [vmem:[%s234 + $0x18] sm:$0x7]
  %v249 = vunpack.c.l.b16 %v235
  %v250 = vunpack.c.l.b16 %v236
  %v251 = vunpack.c.l.b16 %v237
  %v252 = vunpack.c.l.b16 %v238
  %v253 = vunpack.c.l.b16 %v239
  %v254 = vunpack.c.l.b16 %v240
  %v255 = vunpack.c.l.b16 %v241
  %v256 = vpack.c.b16 %v250, %v249
  %v257 = vpack.c.b16 %v252, %v251
  %v258 = vpack.c.b16 %v254, %v253
  %v259 = vpack.c.b16 %v255, %v255
  %v264 = vsel %vm72, %v259, 0
  %266 = vmatpush.bf16.msra.mxu0 0
  %267 = vmatpush.bf16.msra.mxu0 0
  %268 = vmatpush.bf16.msra.mxu0 0
  %269 = vmatpush.bf16.msra.mxu0 0
  %270 = vmatpush.bf16.msra.mxu0 %v264
  %271 = vmatpush.bf16.msra.mxu0 %v258
  %272 = vmatpush.bf16.msra.mxu0 %v257
  %273 = vmatpush.bf16.msra.mxu0 %v256
  %274 = vmatmul.bf16.gmra.mxu0 %v70
  %v275 = vpop.f32.mrf.mxu0
  %v276 = vadd.f32 %v35, %v275
  %v277 = vpop.f32.mrf.mxu0
  %v278 = vadd.f32 %v40, %v277
  %279 = vdwg.mxu0
  %v280 = vsel %vm90, %v276, 0.0
  %281 = vadd.xlane.f32.xlu0 %v280
  %v282 = vpop.xlane.xlu0 %281
  %v283 = vsel %vm94, %v278, 0.0
  %284 = vadd.xlane.f32.xlu0 %v283
  %v285 = vpop.xlane.xlu0 %284
  %v286 = vmul.f32 %v276, %v276
  %v287 = vmul.f32 %v278, %v278
  %v288 = vsel %vm90, %v286, 0.0
  %289 = vadd.xlane.f32.xlu0 %v288
  %v290 = vpop.xlane.xlu0 %289
  %v291 = vsel %vm94, %v287, 0.0
  %292 = vadd.xlane.f32.xlu0 %v291
  %v293 = vpop.xlane.xlu0 %292
  %v294 = vadd.f32 %v230, %v282
  %v295 = vadd.f32 %v231, %v285
  %v296 = vadd.f32 %v232, %v290
  %v297 = vadd.f32 %v233, %v293
  %s298 = scalar_lea.vmem %s0, 112
  %v299 = vld [vmem:[%s298] sm:$0xf]
  %v300 = vld [vmem:[%s298 + $0x4] sm:$0xf]
  %v301 = vld [vmem:[%s298 + $0x8] sm:$0xf]
  %v302 = vld [vmem:[%s298 + $0xc] sm:$0xf]
  %v303 = vld [vmem:[%s298 + $0x10] sm:$0xf]
  %v304 = vld [vmem:[%s298 + $0x14] sm:$0xf]
  %v305 = vld [vmem:[%s298 + $0x18] sm:$0x7]
  %v313 = vunpack.c.l.b16 %v299
  %v314 = vunpack.c.l.b16 %v300
  %v315 = vunpack.c.l.b16 %v301
  %v316 = vunpack.c.l.b16 %v302
  %v317 = vunpack.c.l.b16 %v303
  %v318 = vunpack.c.l.b16 %v304
  %v319 = vunpack.c.l.b16 %v305
  %v320 = vpack.c.b16 %v314, %v313
  %v321 = vpack.c.b16 %v316, %v315
  %v322 = vpack.c.b16 %v318, %v317
  %v323 = vpack.c.b16 %v319, %v319
  %v328 = vsel %vm72, %v323, 0
  %330 = vmatpush.bf16.msra.mxu0 0
  %331 = vmatpush.bf16.msra.mxu0 0
  %332 = vmatpush.bf16.msra.mxu0 0
  %333 = vmatpush.bf16.msra.mxu0 0
  %334 = vmatpush.bf16.msra.mxu0 %v328
  %335 = vmatpush.bf16.msra.mxu0 %v322
  %336 = vmatpush.bf16.msra.mxu0 %v321
  %337 = vmatpush.bf16.msra.mxu0 %v320
  %338 = vmatmul.bf16.gmra.mxu0 %v70
  %v339 = vpop.f32.mrf.mxu0
  %v340 = vadd.f32 %v35, %v339
  %v341 = vpop.f32.mrf.mxu0
  %v342 = vadd.f32 %v40, %v341
  %343 = vdwg.mxu0
  %v344 = vsel %vm90, %v340, 0.0
  %345 = vadd.xlane.f32.xlu0 %v344
  %v346 = vpop.xlane.xlu0 %345
  %v347 = vsel %vm94, %v342, 0.0
  %348 = vadd.xlane.f32.xlu0 %v347
  %v349 = vpop.xlane.xlu0 %348
  %v350 = vmul.f32 %v340, %v340
  %v351 = vmul.f32 %v342, %v342
  %v352 = vsel %vm90, %v350, 0.0
  %353 = vadd.xlane.f32.xlu0 %v352
  %v354 = vpop.xlane.xlu0 %353
  %v355 = vsel %vm94, %v351, 0.0
  %356 = vadd.xlane.f32.xlu0 %v355
  %v357 = vpop.xlane.xlu0 %356
  %v358 = vadd.f32 %v294, %v346
  %v359 = vadd.f32 %v295, %v349
  %v360 = vadd.f32 %v296, %v354
  %v361 = vadd.f32 %v297, %v357
  %s362 = scalar_lea.vmem %s0, 140
  %v363 = vld [vmem:[%s362] sm:$0xf]
  %v364 = vld [vmem:[%s362 + $0x4] sm:$0xf]
  %v365 = vld [vmem:[%s362 + $0x8] sm:$0xf]
  %v366 = vld [vmem:[%s362 + $0xc] sm:$0xf]
  %v367 = vld [vmem:[%s362 + $0x10] sm:$0xf]
  %v368 = vld [vmem:[%s362 + $0x14] sm:$0xf]
  %v369 = vld [vmem:[%s362 + $0x18] sm:$0x7]
  %v377 = vunpack.c.l.b16 %v363
  %v378 = vunpack.c.l.b16 %v364
  %v379 = vunpack.c.l.b16 %v365
  %v380 = vunpack.c.l.b16 %v366
  %v381 = vunpack.c.l.b16 %v367
  %v382 = vunpack.c.l.b16 %v368
  %v383 = vunpack.c.l.b16 %v369
  %v384 = vpack.c.b16 %v378, %v377
  %v385 = vpack.c.b16 %v380, %v379
  %v386 = vpack.c.b16 %v382, %v381
  %v387 = vpack.c.b16 %v383, %v383
  %v392 = vsel %vm72, %v387, 0
  %394 = vmatpush.bf16.msra.mxu0 0
  %395 = vmatpush.bf16.msra.mxu0 0
  %396 = vmatpush.bf16.msra.mxu0 0
  %397 = vmatpush.bf16.msra.mxu0 0
  %398 = vmatpush.bf16.msra.mxu0 %v392
  %399 = vmatpush.bf16.msra.mxu0 %v386
  %400 = vmatpush.bf16.msra.mxu0 %v385
  %401 = vmatpush.bf16.msra.mxu0 %v384
  %402 = vmatmul.bf16.gmra.mxu0 %v70
  %v403 = vpop.f32.mrf.mxu0
  %v404 = vadd.f32 %v35, %v403
  %v405 = vpop.f32.mrf.mxu0
  %v406 = vadd.f32 %v40, %v405
  %407 = vdwg.mxu0
  %v408 = vsel %vm90, %v404, 0.0
  %409 = vadd.xlane.f32.xlu0 %v408
  %v410 = vpop.xlane.xlu0 %409
  %v411 = vsel %vm94, %v406, 0.0
  %412 = vadd.xlane.f32.xlu0 %v411
  %v413 = vpop.xlane.xlu0 %412
  %v414 = vmul.f32 %v404, %v404
  %v415 = vmul.f32 %v406, %v406
  %v416 = vsel %vm90, %v414, 0.0
  %417 = vadd.xlane.f32.xlu0 %v416
  %v418 = vpop.xlane.xlu0 %417
  %v419 = vsel %vm94, %v415, 0.0
  %420 = vadd.xlane.f32.xlu0 %v419
  %v421 = vpop.xlane.xlu0 %420
  %v422 = vadd.f32 %v358, %v410
  %v423 = vadd.f32 %v359, %v413
  %v424 = vadd.f32 %v360, %v418
  %v425 = vadd.f32 %v361, %v421
  %s426 = scalar_lea.vmem %s0, 168
  %v427 = vld [vmem:[%s426] sm:$0xf]
  %v428 = vld [vmem:[%s426 + $0x4] sm:$0xf]
  %v429 = vld [vmem:[%s426 + $0x8] sm:$0xf]
  %v430 = vld [vmem:[%s426 + $0xc] sm:$0xf]
  %v431 = vld [vmem:[%s426 + $0x10] sm:$0xf]
  %v432 = vld [vmem:[%s426 + $0x14] sm:$0xf]
  %v433 = vld [vmem:[%s426 + $0x18] sm:$0x7]
  %v441 = vunpack.c.l.b16 %v427
  %v442 = vunpack.c.l.b16 %v428
  %v443 = vunpack.c.l.b16 %v429
  %v444 = vunpack.c.l.b16 %v430
  %v445 = vunpack.c.l.b16 %v431
  %v446 = vunpack.c.l.b16 %v432
  %v447 = vunpack.c.l.b16 %v433
  %v448 = vpack.c.b16 %v442, %v441
  %v449 = vpack.c.b16 %v444, %v443
  %v450 = vpack.c.b16 %v446, %v445
  %v451 = vpack.c.b16 %v447, %v447
  %v456 = vsel %vm72, %v451, 0
  %458 = vmatpush.bf16.msra.mxu0 0
  %459 = vmatpush.bf16.msra.mxu0 0
  %460 = vmatpush.bf16.msra.mxu0 0
  %461 = vmatpush.bf16.msra.mxu0 0
  %462 = vmatpush.bf16.msra.mxu0 %v456
  %463 = vmatpush.bf16.msra.mxu0 %v450
  %464 = vmatpush.bf16.msra.mxu0 %v449
  %465 = vmatpush.bf16.msra.mxu0 %v448
  %466 = vmatmul.bf16.gmra.mxu0 %v70
  %v467 = vpop.f32.mrf.mxu0
  %v468 = vadd.f32 %v35, %v467
  %v469 = vpop.f32.mrf.mxu0
  %v470 = vadd.f32 %v40, %v469
  %471 = vdwg.mxu0
  %v472 = vsel %vm90, %v468, 0.0
  %473 = vadd.xlane.f32.xlu0 %v472
  %v474 = vpop.xlane.xlu0 %473
  %v475 = vsel %vm94, %v470, 0.0
  %476 = vadd.xlane.f32.xlu0 %v475
  %v477 = vpop.xlane.xlu0 %476
  %v478 = vmul.f32 %v468, %v468
  %v479 = vmul.f32 %v470, %v470
  %v480 = vsel %vm90, %v478, 0.0
  %481 = vadd.xlane.f32.xlu0 %v480
  %v482 = vpop.xlane.xlu0 %481
  %v483 = vsel %vm94, %v479, 0.0
  %484 = vadd.xlane.f32.xlu0 %v483
  %v485 = vpop.xlane.xlu0 %484
  %v486 = vadd.f32 %v422, %v474
  %v487 = vadd.f32 %v423, %v477
  %v488 = vadd.f32 %v424, %v482
  %v489 = vadd.f32 %v425, %v485
  %s490 = scalar_lea.vmem %s0, 196
  %v491 = vld [vmem:[%s490] sm:$0xf]
  %v492 = vld [vmem:[%s490 + $0x4] sm:$0xf]
  %v493 = vld [vmem:[%s490 + $0x8] sm:$0xf]
  %v494 = vld [vmem:[%s490 + $0xc] sm:$0xf]
  %v495 = vld [vmem:[%s490 + $0x10] sm:$0xf]
  %v496 = vld [vmem:[%s490 + $0x14] sm:$0xf]
  %v497 = vld [vmem:[%s490 + $0x18] sm:$0x7]
  %v505 = vunpack.c.l.b16 %v491
  %v506 = vunpack.c.l.b16 %v492
  %v507 = vunpack.c.l.b16 %v493
  %v508 = vunpack.c.l.b16 %v494
  %v509 = vunpack.c.l.b16 %v495
  %v510 = vunpack.c.l.b16 %v496
  %v511 = vunpack.c.l.b16 %v497
  %v512 = vpack.c.b16 %v506, %v505
  %v513 = vpack.c.b16 %v508, %v507
  %v514 = vpack.c.b16 %v510, %v509
  %v515 = vpack.c.b16 %v511, %v511
  %v520 = vsel %vm72, %v515, 0
  %522 = vmatpush.bf16.msra.mxu0 0
  %523 = vmatpush.bf16.msra.mxu0 0
  %524 = vmatpush.bf16.msra.mxu0 0
  %525 = vmatpush.bf16.msra.mxu0 0
  %526 = vmatpush.bf16.msra.mxu0 %v520
  %527 = vmatpush.bf16.msra.mxu0 %v514
  %528 = vmatpush.bf16.msra.mxu0 %v513
  %529 = vmatpush.bf16.msra.mxu0 %v512
  %530 = vmatmul.bf16.gmra.mxu0 %v70
  %v531 = vpop.f32.mrf.mxu0
  %v532 = vadd.f32 %v35, %v531
  %v533 = vpop.f32.mrf.mxu0
  %v534 = vadd.f32 %v40, %v533
  %535 = vdwg.mxu0
  %v536 = vsel %vm90, %v532, 0.0
  %537 = vadd.xlane.f32.xlu0 %v536
  %v538 = vpop.xlane.xlu0 %537
  %v539 = vsel %vm94, %v534, 0.0
  %540 = vadd.xlane.f32.xlu0 %v539
  %v541 = vpop.xlane.xlu0 %540
  %v542 = vmul.f32 %v532, %v532
  %v543 = vmul.f32 %v534, %v534
  %v544 = vsel %vm90, %v542, 0.0
  %545 = vadd.xlane.f32.xlu0 %v544
  %v546 = vpop.xlane.xlu0 %545
  %v547 = vsel %vm94, %v543, 0.0
  %548 = vadd.xlane.f32.xlu0 %v547
  %v549 = vpop.xlane.xlu0 %548
  %v550 = vadd.f32 %v486, %v538
  %v551 = vadd.f32 %v487, %v541
  %v552 = vadd.f32 %v488, %v546
  %v553 = vadd.f32 %v489, %v549
  %s554 = scalar_lea.vmem %s0, 224
  %v555 = vld [vmem:[%s554] sm:$0xf]
  %v556 = vld [vmem:[%s554 + $0x4] sm:$0xf]
  %v557 = vld [vmem:[%s554 + $0x8] sm:$0xf]
  %v558 = vld [vmem:[%s554 + $0xc] sm:$0xf]
  %v559 = vld [vmem:[%s554 + $0x10] sm:$0xf]
  %v560 = vld [vmem:[%s554 + $0x14] sm:$0xf]
  %v561 = vld [vmem:[%s554 + $0x18] sm:$0x7]
  %v569 = vunpack.c.l.b16 %v555
  %v570 = vunpack.c.l.b16 %v556
  %v571 = vunpack.c.l.b16 %v557
  %v572 = vunpack.c.l.b16 %v558
  %v573 = vunpack.c.l.b16 %v559
  %v574 = vunpack.c.l.b16 %v560
  %v575 = vunpack.c.l.b16 %v561
  %v576 = vpack.c.b16 %v570, %v569
  %v577 = vpack.c.b16 %v572, %v571
  %v578 = vpack.c.b16 %v574, %v573
  %v579 = vpack.c.b16 %v575, %v575
  %v584 = vsel %vm72, %v579, 0
  %586 = vmatpush.bf16.msra.mxu0 0
  %587 = vmatpush.bf16.msra.mxu0 0
  %588 = vmatpush.bf16.msra.mxu0 0
  %589 = vmatpush.bf16.msra.mxu0 0
  %590 = vmatpush.bf16.msra.mxu0 %v584
  %591 = vmatpush.bf16.msra.mxu0 %v578
  %592 = vmatpush.bf16.msra.mxu0 %v577
  %593 = vmatpush.bf16.msra.mxu0 %v576
  %594 = vmatmul.bf16.gmra.mxu0 %v70
  %v595 = vpop.f32.mrf.mxu0
  %v596 = vadd.f32 %v35, %v595
  %v597 = vpop.f32.mrf.mxu0
  %v598 = vadd.f32 %v40, %v597
  %599 = vdwg.mxu0
  %v600 = vsel %vm90, %v596, 0.0
  %601 = vadd.xlane.f32.xlu0 %v600
  %v602 = vpop.xlane.xlu0 %601
  %v603 = vsel %vm94, %v598, 0.0
  %604 = vadd.xlane.f32.xlu0 %v603
  %v605 = vpop.xlane.xlu0 %604
  %v606 = vmul.f32 %v596, %v596
  %v607 = vmul.f32 %v598, %v598
  %v608 = vsel %vm90, %v606, 0.0
  %609 = vadd.xlane.f32.xlu0 %v608
  %v610 = vpop.xlane.xlu0 %609
  %v611 = vsel %vm94, %v607, 0.0
  %612 = vadd.xlane.f32.xlu0 %v611
  %v613 = vpop.xlane.xlu0 %612
  %v614 = vadd.f32 %v550, %v602
  %v615 = vadd.f32 %v551, %v605
  %v616 = vadd.f32 %v552, %v610
  %v617 = vadd.f32 %v553, %v613
  %v618 = vmul.f32 %v614, 0.0034722222
  %v619 = vmul.f32 %v615, 0.0034722222
  %v620 = vmul.f32 %v616, 0.0034722222
  %v621 = vmul.f32 %v617, 0.0034722222
  %v622 = vmul.f32 %v618, %v618
  %v623 = vmul.f32 %v619, %v619
  %v624 = vsub.f32 %v620, %v622
  %v625 = vsub.f32 %v621, %v623
  %v626 = vmax.f32 %v624, 0.0
  %v627 = vmax.f32 %v625, 0.0
  %v628 = vadd.f32 %v626, 1e-05
  %v629 = vadd.f32 %v627, 1e-05
  %v630 = vrsqrt.pop %v628
  %v631 = vmul.f32 %v630, %v628
  %v632 = vmul.f32 %v631, %v630
  %v633 = vmul.f32 0.5, %v632
  %v634 = vsub.f32 1.5, %v633
  %v635 = vmul.f32 %v630, %v634
  %vm636 = vweird.f32 %v628
  %vm637 = vweird.f32 %v630
  %vm638 = vmor %vm636, %vm637
  %v639 = vsel %vm638, %v630, %v635
  %v640 = vrsqrt.pop %v629
  %v641 = vmul.f32 %v640, %v629
  %v642 = vmul.f32 %v641, %v640
  %v643 = vmul.f32 0.5, %v642
  %v644 = vsub.f32 1.5, %v643
  %v645 = vmul.f32 %v640, %v644
  %vm646 = vweird.f32 %v629
  %vm647 = vweird.f32 %v640
  %vm648 = vmor %vm646, %vm647
  %v649 = vsel %vm648, %v640, %v645
  %v650 = vld [vmem:[%s3] sm:$0xff]
  %v651 = vld [vmem:[%s3 + $0x8] sm:$0xf]
  %v652 = vmul.f32 %v639, %v650
  %v653 = vmul.f32 %v649, %v651
  %v654 = vld [vmem:[%s4] sm:$0xff]
  %v655 = vld [vmem:[%s4 + $0x8] sm:$0xf]
  %v656 = vmul.f32 %v618, %v652
  %v657 = vmul.f32 %v619, %v653
  %v658 = vsub.f32 %v654, %v656
  %v659 = vsub.f32 %v655, %v657
  %661 = vset.pattern.permute.xlu0 0
  %662 = vperm.xlu0 %661, %v652
  %v663 = vpop.permute.xlu0 %662
  %666 = vset.pattern.permute.xlu0 0
  %667 = vperm.xlu0 %666, %v653
  %v668 = vpop.permute.xlu0 %667
  %v670 = vmul.f32 %v86, %v663
  %v671 = vmul.f32 %v88, %v668
  %673 = vset.pattern.permute.xlu0 0
  %674 = vperm.xlu0 %673, %v658
  %v675 = vpop.permute.xlu0 %674
  %678 = vset.pattern.permute.xlu0 0
  %679 = vperm.xlu0 %678, %v659
  %v680 = vpop.permute.xlu0 %679
  %v682 = vadd.f32 %v670, %v675
  %v683 = vadd.f32 %v671, %v680
  %v684 = vmax.f32 %v682, 0.0
  %v685 = vmax.f32 %v683, 0.0
  %v686 = vmul.f32 %v148, %v663
  %v687 = vmul.f32 %v150, %v668
  %v688 = vadd.f32 %v686, %v675
  %v689 = vadd.f32 %v687, %v680
  %v690 = vmax.f32 %v688, 0.0
  %v691 = vmax.f32 %v689, 0.0
  %v692 = vmax.f32 %v684, %v690
  %v693 = vmax.f32 %v685, %v691
  %v694 = vmul.f32 %v212, %v663
  %v695 = vmul.f32 %v214, %v668
  %v696 = vadd.f32 %v694, %v675
  %v697 = vadd.f32 %v695, %v680
  %v698 = vmax.f32 %v696, 0.0
  %v699 = vmax.f32 %v697, 0.0
  %v700 = vmax.f32 %v692, %v698
  %v701 = vmax.f32 %v693, %v699
  %v702 = vmul.f32 %v276, %v663
  %v703 = vmul.f32 %v278, %v668
  %v704 = vadd.f32 %v702, %v675
  %v705 = vadd.f32 %v703, %v680
  %v706 = vmax.f32 %v704, 0.0
  %v707 = vmax.f32 %v705, 0.0
  %v708 = vmax.f32 %v700, %v706
  %v709 = vmax.f32 %v701, %v707
  %v710 = vmul.f32 %v340, %v663
  %v711 = vmul.f32 %v342, %v668
  %v712 = vadd.f32 %v710, %v675
  %v713 = vadd.f32 %v711, %v680
  %v714 = vmax.f32 %v712, 0.0
  %v715 = vmax.f32 %v713, 0.0
  %v716 = vmax.f32 %v708, %v714
  %v717 = vmax.f32 %v709, %v715
  %v718 = vmul.f32 %v404, %v663
  %v719 = vmul.f32 %v406, %v668
  %v720 = vadd.f32 %v718, %v675
  %v721 = vadd.f32 %v719, %v680
  %v722 = vmax.f32 %v720, 0.0
  %v723 = vmax.f32 %v721, 0.0
  %v724 = vmax.f32 %v716, %v722
  %v725 = vmax.f32 %v717, %v723
  %v726 = vmul.f32 %v468, %v663
  %v727 = vmul.f32 %v470, %v668
  %v728 = vadd.f32 %v726, %v675
  %v729 = vadd.f32 %v727, %v680
  %v730 = vmax.f32 %v728, 0.0
  %v731 = vmax.f32 %v729, 0.0
  %v732 = vmax.f32 %v724, %v730
  %v733 = vmax.f32 %v725, %v731
  %v734 = vmul.f32 %v532, %v663
  %v735 = vmul.f32 %v534, %v668
  %v736 = vadd.f32 %v734, %v675
  %v737 = vadd.f32 %v735, %v680
  %v738 = vmax.f32 %v736, 0.0
  %v739 = vmax.f32 %v737, 0.0
  %v740 = vmax.f32 %v732, %v738
  %v741 = vmax.f32 %v733, %v739
  %v742 = vmul.f32 %v596, %v663
  %v743 = vmul.f32 %v598, %v668
  %v744 = vadd.f32 %v742, %v675
  %v745 = vadd.f32 %v743, %v680
  %v746 = vmax.f32 %v744, 0.0
  %v747 = vmax.f32 %v745, 0.0
  %v748 = vmax.f32 %v740, %v746
  %v749 = vmax.f32 %v741, %v747
  %750 = vst.msk [vmem:[%s5] sm:$0xff] %vm90, %v748
  %751 = vst.msk [vmem:[%s5 + $0x8] sm:$0xf] %vm94, %v749
  // Predicated region
  $region22: #{discriminator_forward.4} parent=0 // pred_check
    _
  $region23: #{discriminator_forward.4} parent=0 // pred_check_branch
    %753 = sbr.rel (0) target = $region25
  $region24: #{discriminator_forward.4} parent=0 // pred_region
    _
  $region25: #{discriminator_forward.4} parent=0 // pred_fallthru
    _
  // Predicated region
  $region26: #{discriminator_forward.4} parent=0 // pred_check
    _
  $region27: #{discriminator_forward.4} parent=0 // pred_check_branch
    %755 = sbr.rel (0) target = $region29
  $region28: #{discriminator_forward.4} parent=0 // pred_region
    _
  $region29: #{discriminator_forward.4} parent=0 // pred_fallthru
    _

</llo_original>
